<compile_context>
chip_gen: v5e
topology: v5e:2x2
jax: 0.10.0
libtpu: 0.0.40
codegen_flags: <defaults>
</compile_context>

<pallas_src>
import functools

import jax
import jax.numpy as jnp
import numpy as np
from jax.experimental import pallas as pl
from jax.experimental.pallas import tpu as pltpu

_LANE = 128
_COMPUTE_DTYPE = jnp.bfloat16  # MXU input / intermediate storage dtype (acc is f32)
# TODO(synk): pytorch_toolbelt ABN assumed to use ReLU; set 0.01 for leaky_relu ABNs.
_ABN_SLOPE = 0.0

_VMEM_LIMIT_CACHE = None


def _vmem_limit():
    """Per-chip scoped-VMEM limit: leave headroom on v7x, use the room on v5e/v6e."""
    global _VMEM_LIMIT_CACHE
    if _VMEM_LIMIT_CACHE is None:
        try:
            cap = int(getattr(pltpu.get_tpu_info(), "vmem_capacity_bytes", 0))
        except Exception:
            cap = 0
        if cap <= 0:
            _VMEM_LIMIT_CACHE = 48 * 1024 * 1024
        else:
            _VMEM_LIMIT_CACHE = int(min(cap - 16 * 1024 * 1024, 100 * 1024 * 1024))
    return _VMEM_LIMIT_CACHE


def _round_up(x, m):
    return (x + m - 1) // m * m


def _pick_batch_tile(n, rows_per_image, target_rows=512):
    """Largest divisor of n whose output-row block hits the target MXU M size.

    The conv output block has (d * rows_per_image) rows; that dim must be a
    multiple of 8 (sublane) unless the block spans the whole batch.
    """
    divisors = [d for d in range(1, n + 1) if n % d == 0]
    valid = [d for d in divisors if d == n or (d * rows_per_image) % 8 == 0]
    small = [d for d in valid if d * rows_per_image <= max(target_rows, rows_per_image)]
    pool = small if small else valid
    return max(pool)


def _pick_row_tile(total, target=1024):
    """Largest divisor of `total` <= target that is sublane aligned (else full)."""
    if total <= target:
        return total
    for d in range(target, 0, -1):
        if total % d == 0 and d % 8 == 0:
            return d
    return total


# ----------------------------------------------------------------------------
# Host-side layout glue (no FLOPs, no data expansion)
# ----------------------------------------------------------------------------
def _phase_split(x_nhwc, stride, pad, ksize):
    """(N,H,W,C) -> (N, stride^2*Hs, Ws, C) phase-split zero-padded activation.

    out[n, (a*s + b)*Hs + i, j, c] == x_pad[n, s*i + a, s*j + b, c], so tap
    (kh, kw) of a ksize/stride conv is the contiguous slice
      rows [((kh%s)*s + kw%s)*Hs + kh//s : +Ho], cols [kw//s : +Wo].
    For stride=1 this degenerates to a plain zero pad.
    """
    n, h, w, c = x_nhwc.shape
    ho = (h + 2 * pad - ksize) // stride + 1
    wo = (w + 2 * pad - ksize) // stride + 1
    hs = (ksize - 1) // stride + ho
    ws = (ksize - 1) // stride + wo
    xp = jnp.pad(
        x_nhwc,
        ((0, 0), (pad, stride * hs - h - pad), (pad, stride * ws - w - pad), (0, 0)),
    )
    xs = xp.reshape(n, hs, stride, ws, stride, c)
    xs = xs.transpose(0, 2, 4, 1, 3, 5)               # (N, a, b, Hs, Ws, C)
    xs = xs.reshape(n, stride * stride * hs, ws, c)   # fold phases into rows
    return xs, ho, wo, hs, ws


def _stack_weight(w_hwio, cin_pad, cout_pad):
    """(3,3,Cin,Cout) -> (9, cin_pad, cout_pad), zero padded, tap-major."""
    kh, kw, cin, cout = w_hwio.shape
    wp = jnp.pad(w_hwio, ((0, 0), (0, 0), (0, cin_pad - cin), (0, cout_pad - cout)))
    return wp.reshape(kh * kw, cin_pad, cout_pad)


# ----------------------------------------------------------------------------
# Kernel 1: conv (9 accumulating per-tap MXU matmuls) + per-tile batch stats
# ----------------------------------------------------------------------------
def _conv_stats_kernel(x_ref, w_ref, y_ref, stats_ref, *, stride, ksize, ho, wo, hs):
    # x_ref    : (B_tile, s*s*Hs, Ws, Cin)  phase-split padded activation (bf16)
    # w_ref    : (ksize*ksize, Cin, Tco)    conv weights, tap-major (bf16)
    # y_ref    : (B_tile*Ho*Wo, Tco)        conv output (bf16)
    # stats_ref: (1, 2, Tco)                this batch-tile's [mean ; M2] (f32)
    b_tile = x_ref.shape[0]
    cin = x_ref.shape[-1]
    tco = y_ref.shape[-1]
    m = b_tile * ho * wo

    acc = jnp.zeros((m, tco), jnp.float32)
    tap_idx = 0
    for kh in range(ksize):                           # static 3x3 unroll
        for kw in range(ksize):
            row0 = ((kh % stride) * stride + (kw % stride)) * hs + kh // stride
            col0 = kw // stride
            tap = x_ref[:, pl.ds(row0, ho), pl.ds(col0, wo), :]   # (Bt,Ho,Wo,Cin)
            tap = tap.reshape(m, cin)                             # fold batch into M
            acc = acc + jnp.dot(tap, w_ref[tap_idx],
                                preferred_element_type=jnp.float32)
            tap_idx += 1

    y_ref[...] = acc.astype(y_ref.dtype)              # bf16 intermediate to HBM

    # Per-tile statistics (f32, from the accumulator): mean and M2 about it.
    inv_m = 1.0 / float(m)
    mean = jnp.sum(acc, axis=0, keepdims=True) * inv_m                  # (1, Tco)
    m2 = jnp.sum(jnp.square(acc - mean), axis=0, keepdims=True)         # (1, Tco)
    stats_ref[...] = jnp.concatenate([mean, m2], axis=0).reshape(stats_ref.shape)


# ----------------------------------------------------------------------------
# Kernel 2: BatchNorm apply (precomputed scale/shift) + ReLU, row-tiled
# ----------------------------------------------------------------------------
def _bn_act_kernel(y_ref, scale_ref, shift_ref, o_ref, *, slope):
    z = y_ref[...].astype(jnp.float32) * scale_ref[...] + shift_ref[...]
    o_ref[...] = jnp.where(z > 0, z, slope * z).astype(o_ref.dtype)


# ----------------------------------------------------------------------------
# Wrappers
# ----------------------------------------------------------------------------
def _conv_stats(x_nhwc, w_hwio, *, stride, cout_pad, tco):
    n, _, _, cin = x_nhwc.shape
    ksize = w_hwio.shape[0]
    xs, ho, wo, hs, ws = _phase_split(x_nhwc.astype(_COMPUTE_DTYPE), stride, 1, ksize)
    w_stk = _stack_weight(w_hwio, cin, cout_pad).astype(_COMPUTE_DTYPE)

    b_tile = _pick_batch_tile(n, ho * wo)
    n_bt = n // b_tile
    n_co = cout_pad // tco
    m_tile = b_tile * ho * wo

    kernel = functools.partial(_conv_stats_kernel, stride=stride, ksize=ksize,
                               ho=ho, wo=wo, hs=hs)
    y, stats = pl.pallas_call(
        kernel,
        grid=(n_bt, n_co),            # co innermost -> activation block DMA'd once per bt
        in_specs=[
            pl.BlockSpec((b_tile, stride * stride * hs, ws, cin),
                         lambda bt, co: (bt, 0, 0, 0)),
            pl.BlockSpec((ksize * ksize, cin, tco), lambda bt, co: (0, 0, co)),
        ],
        out_specs=[
            pl.BlockSpec((m_tile, tco), lambda bt, co: (bt, co)),
            pl.BlockSpec((1, 2, tco), lambda bt, co: (bt, 0, co)),
        ],
        out_shape=[
            jax.ShapeDtypeStruct((n * ho * wo, cout_pad), _COMPUTE_DTYPE),
            jax.ShapeDtypeStruct((n_bt, 2, cout_pad), jnp.float32),
        ],
        compiler_params=pltpu.CompilerParams(
            dimension_semantics=("parallel", "parallel"),
            vmem_limit_bytes=_vmem_limit(),
        ),
    )(xs, w_stk)
    return y, stats, ho, wo, b_tile


def _bn_act(y, scale, shift, *, out_dtype, slope):
    m_total, cp = y.shape
    tm = _pick_row_tile(m_total)
    kernel = functools.partial(_bn_act_kernel, slope=slope)
    return pl.pallas_call(
        kernel,
        grid=(m_total // tm,),
        in_specs=[
            pl.BlockSpec((tm, cp), lambda i: (i, 0)),
            pl.BlockSpec((1, cp), lambda i: (0, 0)),
            pl.BlockSpec((1, cp), lambda i: (0, 0)),
        ],
        out_specs=pl.BlockSpec((tm, cp), lambda i: (i, 0)),
        out_shape=jax.ShapeDtypeStruct((m_total, cp), out_dtype),
        compiler_params=pltpu.CompilerParams(
            dimension_semantics=("parallel",),
            vmem_limit_bytes=_vmem_limit(),
        ),
    )(y, scale, shift)


def _conv_bn_act_block(x_nhwc, w_hwio, gamma, beta, *, stride, out_dtype, eps, slope):
    n = x_nhwc.shape[0]
    cout = w_hwio.shape[3]
    cp = _round_up(cout, _LANE)                        # lane-dense channel padding
    tco = 2 * _LANE if cp % (2 * _LANE) == 0 else _LANE

    y, stats, ho, wo, b_tile = _conv_stats(x_nhwc, w_hwio, stride=stride,
                                           cout_pad=cp, tco=tco)

    # Chan combine of per-batch-tile (mean, M2) partials (tiny, plain JAX, f32).
    cnt_tile = float(b_tile * ho * wo)
    means = stats[:, 0, :]                             # (n_bt, cp)
    m2s = stats[:, 1, :]
    mean = jnp.mean(means, axis=0, keepdims=True)      # equal counts per tile
    m2 = (jnp.sum(m2s, axis=0, keepdims=True)
          + cnt_tile * jnp.sum(jnp.square(means - mean), axis=0, keepdims=True))
    var = m2 / float(n * ho * wo)                      # biased variance (train mode)

    gamma_p = jnp.pad(gamma.astype(jnp.float32), (0, cp - cout)).reshape(1, cp)
    beta_p = jnp.pad(beta.astype(jnp.float32), (0, cp - cout)).reshape(1, cp)
    scale = gamma_p * jax.lax.rsqrt(var + eps)
    shift = beta_p - mean * scale

    act = _bn_act(y, scale, shift, out_dtype=out_dtype, slope=slope)
    return act.reshape(n, ho, wo, cp), cout


def unet_central_block(x_nchw, params, *, eps=1e-5):
    """Full UnetCentralBlock forward. Input/output are NCHW like PyTorch."""
    x = jnp.transpose(x_nchw, (0, 2, 3, 1))            # NCHW -> NHWC
    a1, _ = _conv_bn_act_block(x, params["w1"], params["g1"], params["b1"],
                               stride=2, out_dtype=_COMPUTE_DTYPE, eps=eps,
                               slope=_ABN_SLOPE)
    a2, cout = _conv_bn_act_block(a1, params["w2"], params["g2"], params["b2"],
                                  stride=1, out_dtype=jnp.float32, eps=eps,
                                  slope=_ABN_SLOPE)
    a2 = a2[..., :cout]                                # drop channel padding
    return jnp.transpose(a2, (0, 3, 1, 2))             # NHWC -> NCHW


# ----------------------------------------------------------------------------
# Pure-JAX reference (lax.conv, mirrored bf16-input / f32-acc / bf16-store numerics)
# ----------------------------------------------------------------------------
def _ref_block(x_nhwc, w_hwio, gamma, beta, stride, eps=1e-5, slope=_ABN_SLOPE):
    y = jax.lax.conv_general_dilated(
        x_nhwc.astype(_COMPUTE_DTYPE), w_hwio.astype(_COMPUTE_DTYPE),
        window_strides=(stride, stride),
        padding=((1, 1), (1, 1)),
        dimension_numbers=("NHWC", "HWIO", "NHWC"),
        preferred_element_type=jnp.float32,
    )
    mean = jnp.mean(y, axis=(0, 1, 2), keepdims=True)
    var = jnp.mean(jnp.square(y - mean), axis=(0, 1, 2), keepdims=True)
    scale = gamma.reshape(1, 1, 1, -1) * jax.lax.rsqrt(var + eps)
    shift = beta.reshape(1, 1, 1, -1) - mean * scale
    yq = y.astype(_COMPUTE_DTYPE).astype(jnp.float32)  # mirror bf16 intermediate store
    z = yq * scale + shift
    return jnp.where(z > 0, z, slope * z)


def _ref_forward(x_nchw, params):
    x = jnp.transpose(x_nchw, (0, 2, 3, 1))
    a1 = _ref_block(x, params["w1"], params["g1"], params["b1"], stride=2)
    a1 = a1.astype(_COMPUTE_DTYPE).astype(jnp.float32)  # mirror bf16 activation store
    a2 = _ref_block(a1, params["w2"], params["g2"], params["b2"], stride=1)
    return jnp.transpose(a2, (0, 3, 1, 2))


if __name__ == "__main__":
    # Module config: in_dec_filters=4, out_filters=8 ; input NCHW (2, 4, 16, 16)
    in_dec_filters, out_filters = 4, 8
    key = jax.random.PRNGKey(0)
    k_x, k_w1, k_w2, k_g1, k_b1, k_g2, k_b2 = jax.random.split(key, 7)

    x = jax.random.normal(k_x, (2, in_dec_filters, 16, 16), dtype=jnp.float32)

    # Deterministic synthetic parameters (HWIO layout for conv weights).
    params = {
        "w1": 0.1 * jax.random.normal(k_w1, (3, 3, in_dec_filters, out_filters),
                                      dtype=jnp.float32),
        "g1": 1.0 + 0.1 * jax.random.normal(k_g1, (out_filters,), dtype=jnp.float32),
        "b1": 0.1 * jax.random.normal(k_b1, (out_filters,), dtype=jnp.float32),
        "w2": 0.1 * jax.random.normal(k_w2, (3, 3, out_filters, out_filters),
                                      dtype=jnp.float32),
        "g2": 1.0 + 0.1 * jax.random.normal(k_g2, (out_filters,), dtype=jnp.float32),
        "b2": 0.1 * jax.random.normal(k_b2, (out_filters,), dtype=jnp.float32),
    }

    fwd = jax.jit(unet_central_block)
    out = jax.block_until_ready(fwd(x, params))
    assert out.shape == (2, out_filters, 8, 8), out.shape

    ref = jax.block_until_ready(_ref_forward(x, params))
    np.testing.assert_allclose(np.asarray(out), np.asarray(ref),
                               rtol=1e-2, atol=1e-2)

    print("KERNEL_OK")
</pallas_src>

<mosaic_0001>
module attributes {stable_mosaic.version = 11 : i64} {
  func.func @_bn_act_kernel(%arg0: i32, %arg1: memref<128x128xbf16, #tpu.memory_space<vmem>>, %arg2: memref<1x128xf32, #tpu.memory_space<vmem>>, %arg3: memref<1x128xf32, #tpu.memory_space<vmem>>, %arg4: memref<128x128xbf16, #tpu.memory_space<vmem>>) attributes {dimension_semantics = [#tpu.dimension_semantics<parallel>], iteration_bounds = array<i64: 1>, scalar_prefetch = 0 : i64, scratch_operands = 0 : i64, tpu.core_type = #tpu.core_type<tc>, window_params = [{transform_indices = @transform_0, window_bounds = array<i64: 128, 128>}, {pipeline_mode = #tpu.pipeline_mode<synchronous>, transform_indices = @transform_1, window_bounds = array<i64: 1, 128>}, {pipeline_mode = #tpu.pipeline_mode<synchronous>, transform_indices = @transform_2, window_bounds = array<i64: 1, 128>}, {transform_indices = @transform_3, window_bounds = array<i64: 128, 128>}]} {
    %c0 = arith.constant 0 : index
    %c0_0 = arith.constant 0 : index
    %0 = vector.load %arg1[%c0, %c0_0] : memref<128x128xbf16, #tpu.memory_space<vmem>>, vector<128x128xbf16>
    %1 = arith.extf %0 : vector<128x128xbf16> to vector<128x128xf32>
    %c0_1 = arith.constant 0 : index
    %c0_2 = arith.constant 0 : index
    %2 = vector.load %arg2[%c0_1, %c0_2] : memref<1x128xf32, #tpu.memory_space<vmem>>, vector<1x128xf32>
    %3 = vector.broadcast %2 : vector<1x128xf32> to vector<128x128xf32>
    %4 = arith.mulf %1, %3 : vector<128x128xf32>
    %c0_3 = arith.constant 0 : index
    %c0_4 = arith.constant 0 : index
    %5 = vector.load %arg3[%c0_3, %c0_4] : memref<1x128xf32, #tpu.memory_space<vmem>>, vector<1x128xf32>
    %6 = vector.broadcast %5 : vector<1x128xf32> to vector<128x128xf32>
    %7 = arith.addf %4, %6 : vector<128x128xf32>
    %cst = arith.constant 0.000000e+00 : f32
    %8 = vector.broadcast %cst : f32 to vector<128x128xf32>
    %9 = arith.cmpf ogt, %7, %8 : vector<128x128xf32>
    %cst_5 = arith.constant 0.000000e+00 : f32
    %10 = vector.broadcast %cst_5 : f32 to vector<128x128xf32>
    %11 = arith.mulf %10, %7 : vector<128x128xf32>
    %12 = arith.select %9, %7, %11 : vector<128x128xi1>, vector<128x128xf32>
    %13 = arith.truncf %12 : vector<128x128xf32> to vector<128x128xbf16>
    %c0_6 = arith.constant 0 : index
    %c0_7 = arith.constant 0 : index
    %14 = vector.load %arg4[%c0_6, %c0_7] : memref<128x128xbf16, #tpu.memory_space<vmem>>, vector<128x128xbf16>
    tpu.vector_store %arg4[%c0_6, %c0_7], %13 {strides = array<i32>} : memref<128x128xbf16, #tpu.memory_space<vmem>>, vector<128x128xbf16>,
    return
  }
  func.func @transform_0(%arg0: i32) -> (i32, i32) {
    %c0_i32 = arith.constant 0 : i32
    %c0_i32_0 = arith.constant 0 : i32
    return %arg0, %c0_i32 : i32, i32
  }
  func.func @transform_1(%arg0: i32) -> (i32, i32) {
    %c0_i32 = arith.constant 0 : i32
    %c0_i32_0 = arith.constant 0 : i32
    %c0_i32_1 = arith.constant 0 : i32
    return %c0_i32, %c0_i32_0 : i32, i32
  }
  func.func @transform_2(%arg0: i32) -> (i32, i32) {
    %c0_i32 = arith.constant 0 : i32
    %c0_i32_0 = arith.constant 0 : i32
    %c0_i32_1 = arith.constant 0 : i32
    return %c0_i32, %c0_i32_0 : i32, i32
  }
  func.func @transform_3(%arg0: i32) -> (i32, i32) {
    %c0_i32 = arith.constant 0 : i32
    %c0_i32_0 = arith.constant 0 : i32
    return %arg0, %c0_i32 : i32, i32
  }
}

module attributes {stable_mosaic.version = 11 : i64} {
  func.func @_conv_stats_kernel(%arg0: i32, %arg1: i32, %arg2: memref<2x36x9x4xbf16, #tpu.memory_space<vmem>>, %arg3: memref<9x4x128xbf16, #tpu.memory_space<vmem>>, %arg4: memref<128x128xbf16, #tpu.memory_space<vmem>>, %arg5: memref<1x2x128xf32, #tpu.memory_space<vmem>>) attributes {dimension_semantics = [#tpu.dimension_semantics<parallel>, #tpu.dimension_semantics<parallel>], iteration_bounds = array<i64: 1, 1>, scalar_prefetch = 0 : i64, scratch_operands = 0 : i64, tpu.core_type = #tpu.core_type<tc>, window_params = [{transform_indices = @transform_0, window_bounds = array<i64: 2, 36, 9, 4>}, {transform_indices = @transform_1, window_bounds = array<i64: 9, 4, 128>}, {transform_indices = @transform_2, window_bounds = array<i64: 128, 128>}, {transform_indices = @transform_3, window_bounds = array<i64: 1, 2, 128>}]} {
    %cst = arith.constant 0.000000e+00 : f32
    %0 = vector.broadcast %cst : f32 to vector<128x128xf32>
    %c0 = arith.constant 0 : index
    %c0_0 = arith.constant 0 : index
    %c0_1 = arith.constant 0 : index
    %c0_2 = arith.constant 0 : index
    %1 = vector.load %arg2[%c0, %c0_0, %c0_1, %c0_2] : memref<2x36x9x4xbf16, #tpu.memory_space<vmem>>, vector<2x8x8x4xbf16>
    %2 = vector.shape_cast %1 : vector<2x8x8x4xbf16> to vector<128x4xbf16>
    %c0_3 = arith.constant 0 : index
    %c0_4 = arith.constant 0 : index
    %c0_5 = arith.constant 0 : index
    %3 = vector.load %arg3[%c0_3, %c0_4, %c0_5] : memref<9x4x128xbf16, #tpu.memory_space<vmem>>, vector<1x4x128xbf16>
    %4 = vector.shape_cast %3 : vector<1x4x128xbf16> to vector<4x128xbf16>
    %cst_6 = arith.constant dense<0.000000e+00> : vector<128x128xf32>
    %5 = tpu.matmul %2, %4, %cst_6 {dimension_numbers = #tpu.dot_dimension_numbers<[1], [0], [0], [1], [0, 0, 1, 1], [], []>} : vector<128x4xbf16>, vector<4x128xbf16>, vector<128x128xf32> -> vector<128x128xf32>
    %6 = arith.addf %0, %5 : vector<128x128xf32>
    %c0_7 = arith.constant 0 : index
    %c9 = arith.constant 9 : index
    %c0_8 = arith.constant 0 : index
    %c0_9 = arith.constant 0 : index
    %7 = vector.load %arg2[%c0_7, %c9, %c0_8, %c0_9] : memref<2x36x9x4xbf16, #tpu.memory_space<vmem>>, vector<2x8x8x4xbf16>
    %8 = vector.shape_cast %7 : vector<2x8x8x4xbf16> to vector<128x4xbf16>
    %c1 = arith.constant 1 : index
    %c0_10 = arith.constant 0 : index
    %c0_11 = arith.constant 0 : index
    %9 = vector.load %arg3[%c1, %c0_10, %c0_11] : memref<9x4x128xbf16, #tpu.memory_space<vmem>>, vector<1x4x128xbf16>
    %10 = vector.shape_cast %9 : vector<1x4x128xbf16> to vector<4x128xbf16>
    %cst_12 = arith.constant dense<0.000000e+00> : vector<128x128xf32>
    %11 = tpu.matmul %8, %10, %cst_12 {dimension_numbers = #tpu.dot_dimension_numbers<[1], [0], [0], [1], [0, 0, 1, 1], [], []>} : vector<128x4xbf16>, vector<4x128xbf16>, vector<128x128xf32> -> vector<128x128xf32>
    %12 = arith.addf %6, %11 : vector<128x128xf32>
    %c0_13 = arith.constant 0 : index
    %c0_14 = arith.constant 0 : index
    %c1_15 = arith.constant 1 : index
    %c0_16 = arith.constant 0 : index
    %13 = vector.load %arg2[%c0_13, %c0_14, %c1_15, %c0_16] : memref<2x36x9x4xbf16, #tpu.memory_space<vmem>>, vector<2x8x8x4xbf16>
    %14 = vector.shape_cast %13 : vector<2x8x8x4xbf16> to vector<128x4xbf16>
    %c2 = arith.constant 2 : index
    %c0_17 = arith.constant 0 : index
    %c0_18 = arith.constant 0 : index
    %15 = vector.load %arg3[%c2, %c0_17, %c0_18] : memref<9x4x128xbf16, #tpu.memory_space<vmem>>, vector<1x4x128xbf16>
    %16 = vector.shape_cast %15 : vector<1x4x128xbf16> to vector<4x128xbf16>
    %cst_19 = arith.constant dense<0.000000e+00> : vector<128x128xf32>
    %17 = tpu.matmul %14, %16, %cst_19 {dimension_numbers = #tpu.dot_dimension_numbers<[1], [0], [0], [1], [0, 0, 1, 1], [], []>} : vector<128x4xbf16>, vector<4x128xbf16>, vector<128x128xf32> -> vector<128x128xf32>
    %18 = arith.addf %12, %17 : vector<128x128xf32>
    %c0_20 = arith.constant 0 : index
    %c18 = arith.constant 18 : index
    %c0_21 = arith.constant 0 : index
    %c0_22 = arith.constant 0 : index
    %19 = vector.load %arg2[%c0_20, %c18, %c0_21, %c0_22] : memref<2x36x9x4xbf16, #tpu.memory_space<vmem>>, vector<2x8x8x4xbf16>
    %20 = vector.shape_cast %19 : vector<2x8x8x4xbf16> to vector<128x4xbf16>
    %c3 = arith.constant 3 : index
    %c0_23 = arith.constant 0 : index
    %c0_24 = arith.constant 0 : index
    %21 = vector.load %arg3[%c3, %c0_23, %c0_24] : memref<9x4x128xbf16, #tpu.memory_space<vmem>>, vector<1x4x128xbf16>
    %22 = vector.shape_cast %21 : vector<1x4x128xbf16> to vector<4x128xbf16>
    %cst_25 = arith.constant dense<0.000000e+00> : vector<128x128xf32>
    %23 = tpu.matmul %20, %22, %cst_25 {dimension_numbers = #tpu.dot_dimension_numbers<[1], [0], [0], [1], [0, 0, 1, 1], [], []>} : vector<128x4xbf16>, vector<4x128xbf16>, vector<128x128xf32> -> vector<128x128xf32>
    %24 = arith.addf %18, %23 : vector<128x128xf32>
    %c0_26 = arith.constant 0 : index
    %c27 = arith.constant 27 : index
    %c0_27 = arith.constant 0 : index
    %c0_28 = arith.constant 0 : index
    %25 = vector.load %arg2[%c0_26, %c27, %c0_27, %c0_28] : memref<2x36x9x4xbf16, #tpu.memory_space<vmem>>, vector<2x8x8x4xbf16>
    %26 = vector.shape_cast %25 : vector<2x8x8x4xbf16> to vector<128x4xbf16>
    %c4 = arith.constant 4 : index
    %c0_29 = arith.constant 0 : index
    %c0_30 = arith.constant 0 : index
    %27 = vector.load %arg3[%c4, %c0_29, %c0_30] : memref<9x4x128xbf16, #tpu.memory_space<vmem>>, vector<1x4x128xbf16>
    %28 = vector.shape_cast %27 : vector<1x4x128xbf16> to vector<4x128xbf16>
    %cst_31 = arith.constant dense<0.000000e+00> : vector<128x128xf32>
    %29 = tpu.matmul %26, %28, %cst_31 {dimension_numbers = #tpu.dot_dimension_numbers<[1], [0], [0], [1], [0, 0, 1, 1], [], []>} : vector<128x4xbf16>, vector<4x128xbf16>, vector<128x128xf32> -> vector<128x128xf32>
    %30 = arith.addf %24, %29 : vector<128x128xf32>
    %c0_32 = arith.constant 0 : index
    %c18_33 = arith.constant 18 : index
    %c1_34 = arith.constant 1 : index
    %c0_35 = arith.constant 0 : index
    %31 = vector.load %arg2[%c0_32, %c18_33, %c1_34, %c0_35] : memref<2x36x9x4xbf16, #tpu.memory_space<vmem>>, vector<2x8x8x4xbf16>
    %32 = vector.shape_cast %31 : vector<2x8x8x4xbf16> to vector<128x4xbf16>
    %c5 = arith.constant 5 : index
    %c0_36 = arith.constant 0 : index
    %c0_37 = arith.constant 0 : index
    %33 = vector.load %arg3[%c5, %c0_36, %c0_37] : memref<9x4x128xbf16, #tpu.memory_space<vmem>>, vector<1x4x128xbf16>
    %34 = vector.shape_cast %33 : vector<1x4x128xbf16> to vector<4x128xbf16>
    %cst_38 = arith.constant dense<0.000000e+00> : vector<128x128xf32>
    %35 = tpu.matmul %32, %34, %cst_38 {dimension_numbers = #tpu.dot_dimension_numbers<[1], [0], [0], [1], [0, 0, 1, 1], [], []>} : vector<128x4xbf16>, vector<4x128xbf16>, vector<128x128xf32> -> vector<128x128xf32>
    %36 = arith.addf %30, %35 : vector<128x128xf32>
    %c0_39 = arith.constant 0 : index
    %c1_40 = arith.constant 1 : index
    %c0_41 = arith.constant 0 : index
    %c0_42 = arith.constant 0 : index
    %37 = vector.load %arg2[%c0_39, %c1_40, %c0_41, %c0_42] : memref<2x36x9x4xbf16, #tpu.memory_space<vmem>>, vector<2x8x8x4xbf16>
    %38 = vector.shape_cast %37 : vector<2x8x8x4xbf16> to vector<128x4xbf16>
    %c6 = arith.constant 6 : index
    %c0_43 = arith.constant 0 : index
    %c0_44 = arith.constant 0 : index
    %39 = vector.load %arg3[%c6, %c0_43, %c0_44] : memref<9x4x128xbf16, #tpu.memory_space<vmem>>, vector<1x4x128xbf16>
    %40 = vector.shape_cast %39 : vector<1x4x128xbf16> to vector<4x128xbf16>
    %cst_45 = arith.constant dense<0.000000e+00> : vector<128x128xf32>
    %41 = tpu.matmul %38, %40, %cst_45 {dimension_numbers = #tpu.dot_dimension_numbers<[1], [0], [0], [1], [0, 0, 1, 1], [], []>} : vector<128x4xbf16>, vector<4x128xbf16>, vector<128x128xf32> -> vector<128x128xf32>
    %42 = arith.addf %36, %41 : vector<128x128xf32>
    %c0_46 = arith.constant 0 : index
    %c10 = arith.constant 10 : index
    %c0_47 = arith.constant 0 : index
    %c0_48 = arith.constant 0 : index
    %43 = vector.load %arg2[%c0_46, %c10, %c0_47, %c0_48] : memref<2x36x9x4xbf16, #tpu.memory_space<vmem>>, vector<2x8x8x4xbf16>
    %44 = vector.shape_cast %43 : vector<2x8x8x4xbf16> to vector<128x4xbf16>
    %c7 = arith.constant 7 : index
    %c0_49 = arith.constant 0 : index
    %c0_50 = arith.constant 0 : index
    %45 = vector.load %arg3[%c7, %c0_49, %c0_50] : memref<9x4x128xbf16, #tpu.memory_space<vmem>>, vector<1x4x128xbf16>
    %46 = vector.shape_cast %45 : vector<1x4x128xbf16> to vector<4x128xbf16>
    %cst_51 = arith.constant dense<0.000000e+00> : vector<128x128xf32>
    %47 = tpu.matmul %44, %46, %cst_51 {dimension_numbers = #tpu.dot_dimension_numbers<[1], [0], [0], [1], [0, 0, 1, 1], [], []>} : vector<128x4xbf16>, vector<4x128xbf16>, vector<128x128xf32> -> vector<128x128xf32>
    %48 = arith.addf %42, %47 : vector<128x128xf32>
    %c0_52 = arith.constant 0 : index
    %c1_53 = arith.constant 1 : index
    %c1_54 = arith.constant 1 : index
    %c0_55 = arith.constant 0 : index
    %49 = vector.load %arg2[%c0_52, %c1_53, %c1_54, %c0_55] : memref<2x36x9x4xbf16, #tpu.memory_space<vmem>>, vector<2x8x8x4xbf16>
    %50 = vector.shape_cast %49 : vector<2x8x8x4xbf16> to vector<128x4xbf16>
    %c8 = arith.constant 8 : index
    %c0_56 = arith.constant 0 : index
    %c0_57 = arith.constant 0 : index
    %51 = vector.load %arg3[%c8, %c0_56, %c0_57] : memref<9x4x128xbf16, #tpu.memory_space<vmem>>, vector<1x4x128xbf16>
    %52 = vector.shape_cast %51 : vector<1x4x128xbf16> to vector<4x128xbf16>
    %cst_58 = arith.constant dense<0.000000e+00> : vector<128x128xf32>
    %53 = tpu.matmul %50, %52, %cst_58 {dimension_numbers = #tpu.dot_dimension_numbers<[1], [0], [0], [1], [0, 0, 1, 1], [], []>} : vector<128x4xbf16>, vector<4x128xbf16>, vector<128x128xf32> -> vector<128x128xf32>
    %54 = arith.addf %48, %53 : vector<128x128xf32>
    %55 = arith.truncf %54 : vector<128x128xf32> to vector<128x128xbf16>
    %c0_59 = arith.constant 0 : index
    %c0_60 = arith.constant 0 : index
    %56 = vector.load %arg4[%c0_59, %c0_60] : memref<128x128xbf16, #tpu.memory_space<vmem>>, vector<128x128xbf16>
    tpu.vector_store %arg4[%c0_59, %c0_60], %55 {strides = array<i32>} : memref<128x128xbf16, #tpu.memory_space<vmem>>, vector<128x128xbf16>,
    %cst_61 = arith.constant dense<0.000000e+00> : vector<128xf32>
    %57 = vector.multi_reduction <add>, %54, %cst_61 [0] : vector<128x128xf32> to vector<128xf32>
    %58 = vector.shape_cast %57 : vector<128xf32> to vector<1x128xf32>
    %cst_62 = arith.constant 7.812500e-03 : f32
    %59 = vector.broadcast %cst_62 : f32 to vector<1x128xf32>
    %60 = arith.mulf %58, %59 : vector<1x128xf32>
    %61 = vector.broadcast %60 : vector<1x128xf32> to vector<128x128xf32>
    %62 = arith.subf %54, %61 : vector<128x128xf32>
    %63 = arith.mulf %62, %62 : vector<128x128xf32>
    %cst_63 = arith.constant dense<0.000000e+00> : vector<128xf32>
    %64 = vector.multi_reduction <add>, %63, %cst_63 [0] : vector<128x128xf32> to vector<128xf32>
    %65 = vector.shape_cast %64 : vector<128xf32> to vector<1x128xf32>
    %66 = tpu.concatenate %60, %65 in 0 : vector<1x128xf32>, vector<1x128xf32> -> vector<2x128xf32>
    %67 = vector.shape_cast %66 : vector<2x128xf32> to vector<1x2x128xf32>
    %c0_64 = arith.constant 0 : index
    %c0_65 = arith.constant 0 : index
    %c0_66 = arith.constant 0 : index
    %68 = vector.load %arg5[%c0_64, %c0_65, %c0_66] : memref<1x2x128xf32, #tpu.memory_space<vmem>>, vector<1x2x128xf32>
    tpu.vector_store %arg5[%c0_64, %c0_65, %c0_66], %67 {strides = array<i32>} : memref<1x2x128xf32, #tpu.memory_space<vmem>>, vector<1x2x128xf32>,
    return
  }
  func.func @transform_0(%arg0: i32, %arg1: i32) -> (i32, i32, i32, i32) {
    %c0_i32 = arith.constant 0 : i32
    %c0_i32_0 = arith.constant 0 : i32
    %c0_i32_1 = arith.constant 0 : i32
    %c0_i32_2 = arith.constant 0 : i32
    return %arg0, %c0_i32, %c0_i32_0, %c0_i32_1 : i32, i32, i32, i32
  }
  func.func @transform_1(%arg0: i32, %arg1: i32) -> (i32, i32, i32) {
    %c0_i32 = arith.constant 0 : i32
    %c0_i32_0 = arith.constant 0 : i32
    %c0_i32_1 = arith.constant 0 : i32
    return %c0_i32, %c0_i32_0, %arg1 : i32, i32, i32
  }
  func.func @transform_2(%arg0: i32, %arg1: i32) -> (i32, i32) {
    %c0_i32 = arith.constant 0 : i32
    return %arg0, %arg1 : i32, i32
  }
  func.func @transform_3(%arg0: i32, %arg1: i32) -> (i32, i32, i32) {
    %c0_i32 = arith.constant 0 : i32
    %c0_i32_0 = arith.constant 0 : i32
    return %arg0, %c0_i32, %arg1 : i32, i32, i32
  }
}

module attributes {stable_mosaic.version = 11 : i64} {
  func.func @_conv_stats_kernel(%arg0: i32, %arg1: i32, %arg2: memref<2x10x10x128xbf16, #tpu.memory_space<vmem>>, %arg3: memref<9x128x128xbf16, #tpu.memory_space<vmem>>, %arg4: memref<128x128xbf16, #tpu.memory_space<vmem>>, %arg5: memref<1x2x128xf32, #tpu.memory_space<vmem>>) attributes {dimension_semantics = [#tpu.dimension_semantics<parallel>, #tpu.dimension_semantics<parallel>], iteration_bounds = array<i64: 1, 1>, scalar_prefetch = 0 : i64, scratch_operands = 0 : i64, tpu.core_type = #tpu.core_type<tc>, window_params = [{transform_indices = @transform_0, window_bounds = array<i64: 2, 10, 10, 128>}, {transform_indices = @transform_1, window_bounds = array<i64: 9, 128, 128>}, {transform_indices = @transform_2, window_bounds = array<i64: 128, 128>}, {transform_indices = @transform_3, window_bounds = array<i64: 1, 2, 128>}]} {
    %cst = arith.constant 0.000000e+00 : f32
    %0 = vector.broadcast %cst : f32 to vector<128x128xf32>
    %c0 = arith.constant 0 : index
    %c0_0 = arith.constant 0 : index
    %c0_1 = arith.constant 0 : index
    %c0_2 = arith.constant 0 : index
    %1 = vector.load %arg2[%c0, %c0_0, %c0_1, %c0_2] : memref<2x10x10x128xbf16, #tpu.memory_space<vmem>>, vector<2x8x8x128xbf16>
    %2 = vector.shape_cast %1 : vector<2x8x8x128xbf16> to vector<128x128xbf16>
    %c0_3 = arith.constant 0 : index
    %c0_4 = arith.constant 0 : index
    %c0_5 = arith.constant 0 : index
    %3 = vector.load %arg3[%c0_3, %c0_4, %c0_5] : memref<9x128x128xbf16, #tpu.memory_space<vmem>>, vector<1x128x128xbf16>
    %4 = vector.shape_cast %3 : vector<1x128x128xbf16> to vector<128x128xbf16>
    %cst_6 = arith.constant dense<0.000000e+00> : vector<128x128xf32>
    %5 = tpu.matmul %2, %4, %cst_6 {dimension_numbers = #tpu.dot_dimension_numbers<[1], [0], [0], [1], [0, 0, 1, 1], [], []>} : vector<128x128xbf16>, vector<128x128xbf16>, vector<128x128xf32> -> vector<128x128xf32>
    %6 = arith.addf %0, %5 : vector<128x128xf32>
    %c0_7 = arith.constant 0 : index
    %c0_8 = arith.constant 0 : index
    %c1 = arith.constant 1 : index
    %c0_9 = arith.constant 0 : index
    %7 = vector.load %arg2[%c0_7, %c0_8, %c1, %c0_9] : memref<2x10x10x128xbf16, #tpu.memory_space<vmem>>, vector<2x8x8x128xbf16>
    %8 = vector.shape_cast %7 : vector<2x8x8x128xbf16> to vector<128x128xbf16>
    %c1_10 = arith.constant 1 : index
    %c0_11 = arith.constant 0 : index
    %c0_12 = arith.constant 0 : index
    %9 = vector.load %arg3[%c1_10, %c0_11, %c0_12] : memref<9x128x128xbf16, #tpu.memory_space<vmem>>, vector<1x128x128xbf16>
    %10 = vector.shape_cast %9 : vector<1x128x128xbf16> to vector<128x128xbf16>
    %cst_13 = arith.constant dense<0.000000e+00> : vector<128x128xf32>
    %11 = tpu.matmul %8, %10, %cst_13 {dimension_numbers = #tpu.dot_dimension_numbers<[1], [0], [0], [1], [0, 0, 1, 1], [], []>} : vector<128x128xbf16>, vector<128x128xbf16>, vector<128x128xf32> -> vector<128x128xf32>
    %12 = arith.addf %6, %11 : vector<128x128xf32>
    %c0_14 = arith.constant 0 : index
    %c0_15 = arith.constant 0 : index
    %c2 = arith.constant 2 : index
    %c0_16 = arith.constant 0 : index
    %13 = vector.load %arg2[%c0_14, %c0_15, %c2, %c0_16] : memref<2x10x10x128xbf16, #tpu.memory_space<vmem>>, vector<2x8x8x128xbf16>
    %14 = vector.shape_cast %13 : vector<2x8x8x128xbf16> to vector<128x128xbf16>
    %c2_17 = arith.constant 2 : index
    %c0_18 = arith.constant 0 : index
    %c0_19 = arith.constant 0 : index
    %15 = vector.load %arg3[%c2_17, %c0_18, %c0_19] : memref<9x128x128xbf16, #tpu.memory_space<vmem>>, vector<1x128x128xbf16>
    %16 = vector.shape_cast %15 : vector<1x128x128xbf16> to vector<128x128xbf16>
    %cst_20 = arith.constant dense<0.000000e+00> : vector<128x128xf32>
    %17 = tpu.matmul %14, %16, %cst_20 {dimension_numbers = #tpu.dot_dimension_numbers<[1], [0], [0], [1], [0, 0, 1, 1], [], []>} : vector<128x128xbf16>, vector<128x128xbf16>, vector<128x128xf32> -> vector<128x128xf32>
    %18 = arith.addf %12, %17 : vector<128x128xf32>
    %c0_21 = arith.constant 0 : index
    %c1_22 = arith.constant 1 : index
    %c0_23 = arith.constant 0 : index
    %c0_24 = arith.constant 0 : index
    %19 = vector.load %arg2[%c0_21, %c1_22, %c0_23, %c0_24] : memref<2x10x10x128xbf16, #tpu.memory_space<vmem>>, vector<2x8x8x128xbf16>
    %20 = vector.shape_cast %19 : vector<2x8x8x128xbf16> to vector<128x128xbf16>
    %c3 = arith.constant 3 : index
    %c0_25 = arith.constant 0 : index
    %c0_26 = arith.constant 0 : index
    %21 = vector.load %arg3[%c3, %c0_25, %c0_26] : memref<9x128x128xbf16, #tpu.memory_space<vmem>>, vector<1x128x128xbf16>
    %22 = vector.shape_cast %21 : vector<1x128x128xbf16> to vector<128x128xbf16>
    %cst_27 = arith.constant dense<0.000000e+00> : vector<128x128xf32>
    %23 = tpu.matmul %20, %22, %cst_27 {dimension_numbers = #tpu.dot_dimension_numbers<[1], [0], [0], [1], [0, 0, 1, 1], [], []>} : vector<128x128xbf16>, vector<128x128xbf16>, vector<128x128xf32> -> vector<128x128xf32>
    %24 = arith.addf %18, %23 : vector<128x128xf32>
    %c0_28 = arith.constant 0 : index
    %c1_29 = arith.constant 1 : index
    %c1_30 = arith.constant 1 : index
    %c0_31 = arith.constant 0 : index
    %25 = vector.load %arg2[%c0_28, %c1_29, %c1_30, %c0_31] : memref<2x10x10x128xbf16, #tpu.memory_space<vmem>>, vector<2x8x8x128xbf16>
    %26 = vector.shape_cast %25 : vector<2x8x8x128xbf16> to vector<128x128xbf16>
    %c4 = arith.constant 4 : index
    %c0_32 = arith.constant 0 : index
    %c0_33 = arith.constant 0 : index
    %27 = vector.load %arg3[%c4, %c0_32, %c0_33] : memref<9x128x128xbf16, #tpu.memory_space<vmem>>, vector<1x128x128xbf16>
    %28 = vector.shape_cast %27 : vector<1x128x128xbf16> to vector<128x128xbf16>
    %cst_34 = arith.constant dense<0.000000e+00> : vector<128x128xf32>
    %29 = tpu.matmul %26, %28, %cst_34 {dimension_numbers = #tpu.dot_dimension_numbers<[1], [0], [0], [1], [0, 0, 1, 1], [], []>} : vector<128x128xbf16>, vector<128x128xbf16>, vector<128x128xf32> -> vector<128x128xf32>
    %30 = arith.addf %24, %29 : vector<128x128xf32>
    %c0_35 = arith.constant 0 : index
    %c1_36 = arith.constant 1 : index
    %c2_37 = arith.constant 2 : index
    %c0_38 = arith.constant 0 : index
    %31 = vector.load %arg2[%c0_35, %c1_36, %c2_37, %c0_38] : memref<2x10x10x128xbf16, #tpu.memory_space<vmem>>, vector<2x8x8x128xbf16>
    %32 = vector.shape_cast %31 : vector<2x8x8x128xbf16> to vector<128x128xbf16>
    %c5 = arith.constant 5 : index
    %c0_39 = arith.constant 0 : index
    %c0_40 = arith.constant 0 : index
    %33 = vector.load %arg3[%c5, %c0_39, %c0_40] : memref<9x128x128xbf16, #tpu.memory_space<vmem>>, vector<1x128x128xbf16>
    %34 = vector.shape_cast %33 : vector<1x128x128xbf16> to vector<128x128xbf16>
    %cst_41 = arith.constant dense<0.000000e+00> : vector<128x128xf32>
    %35 = tpu.matmul %32, %34, %cst_41 {dimension_numbers = #tpu.dot_dimension_numbers<[1], [0], [0], [1], [0, 0, 1, 1], [], []>} : vector<128x128xbf16>, vector<128x128xbf16>, vector<128x128xf32> -> vector<128x128xf32>
    %36 = arith.addf %30, %35 : vector<128x128xf32>
    %c0_42 = arith.constant 0 : index
    %c2_43 = arith.constant 2 : index
    %c0_44 = arith.constant 0 : index
    %c0_45 = arith.constant 0 : index
    %37 = vector.load %arg2[%c0_42, %c2_43, %c0_44, %c0_45] : memref<2x10x10x128xbf16, #tpu.memory_space<vmem>>, vector<2x8x8x128xbf16>
    %38 = vector.shape_cast %37 : vector<2x8x8x128xbf16> to vector<128x128xbf16>
    %c6 = arith.constant 6 : index
    %c0_46 = arith.constant 0 : index
    %c0_47 = arith.constant 0 : index
    %39 = vector.load %arg3[%c6, %c0_46, %c0_47] : memref<9x128x128xbf16, #tpu.memory_space<vmem>>, vector<1x128x128xbf16>
    %40 = vector.shape_cast %39 : vector<1x128x128xbf16> to vector<128x128xbf16>
    %cst_48 = arith.constant dense<0.000000e+00> : vector<128x128xf32>
    %41 = tpu.matmul %38, %40, %cst_48 {dimension_numbers = #tpu.dot_dimension_numbers<[1], [0], [0], [1], [0, 0, 1, 1], [], []>} : vector<128x128xbf16>, vector<128x128xbf16>, vector<128x128xf32> -> vector<128x128xf32>
    %42 = arith.addf %36, %41 : vector<128x128xf32>
    %c0_49 = arith.constant 0 : index
    %c2_50 = arith.constant 2 : index
    %c1_51 = arith.constant 1 : index
    %c0_52 = arith.constant 0 : index
    %43 = vector.load %arg2[%c0_49, %c2_50, %c1_51, %c0_52] : memref<2x10x10x128xbf16, #tpu.memory_space<vmem>>, vector<2x8x8x128xbf16>
    %44 = vector.shape_cast %43 : vector<2x8x8x128xbf16> to vector<128x128xbf16>
    %c7 = arith.constant 7 : index
    %c0_53 = arith.constant 0 : index
    %c0_54 = arith.constant 0 : index
    %45 = vector.load %arg3[%c7, %c0_53, %c0_54] : memref<9x128x128xbf16, #tpu.memory_space<vmem>>, vector<1x128x128xbf16>
    %46 = vector.shape_cast %45 : vector<1x128x128xbf16> to vector<128x128xbf16>
    %cst_55 = arith.constant dense<0.000000e+00> : vector<128x128xf32>
    %47 = tpu.matmul %44, %46, %cst_55 {dimension_numbers = #tpu.dot_dimension_numbers<[1], [0], [0], [1], [0, 0, 1, 1], [], []>} : vector<128x128xbf16>, vector<128x128xbf16>, vector<128x128xf32> -> vector<128x128xf32>
    %48 = arith.addf %42, %47 : vector<128x128xf32>
    %c0_56 = arith.constant 0 : index
    %c2_57 = arith.constant 2 : index
    %c2_58 = arith.constant 2 : index
    %c0_59 = arith.constant 0 : index
    %49 = vector.load %arg2[%c0_56, %c2_57, %c2_58, %c0_59] : memref<2x10x10x128xbf16, #tpu.memory_space<vmem>>, vector<2x8x8x128xbf16>
    %50 = vector.shape_cast %49 : vector<2x8x8x128xbf16> to vector<128x128xbf16>
    %c8 = arith.constant 8 : index
    %c0_60 = arith.constant 0 : index
    %c0_61 = arith.constant 0 : index
    %51 = vector.load %arg3[%c8, %c0_60, %c0_61] : memref<9x128x128xbf16, #tpu.memory_space<vmem>>, vector<1x128x128xbf16>
    %52 = vector.shape_cast %51 : vector<1x128x128xbf16> to vector<128x128xbf16>
    %cst_62 = arith.constant dense<0.000000e+00> : vector<128x128xf32>
    %53 = tpu.matmul %50, %52, %cst_62 {dimension_numbers = #tpu.dot_dimension_numbers<[1], [0], [0], [1], [0, 0, 1, 1], [], []>} : vector<128x128xbf16>, vector<128x128xbf16>, vector<128x128xf32> -> vector<128x128xf32>
    %54 = arith.addf %48, %53 : vector<128x128xf32>
    %55 = arith.truncf %54 : vector<128x128xf32> to vector<128x128xbf16>
    %c0_63 = arith.constant 0 : index
    %c0_64 = arith.constant 0 : index
    %56 = vector.load %arg4[%c0_63, %c0_64] : memref<128x128xbf16, #tpu.memory_space<vmem>>, vector<128x128xbf16>
    tpu.vector_store %arg4[%c0_63, %c0_64], %55 {strides = array<i32>} : memref<128x128xbf16, #tpu.memory_space<vmem>>, vector<128x128xbf16>,
    %cst_65 = arith.constant dense<0.000000e+00> : vector<128xf32>
    %57 = vector.multi_reduction <add>, %54, %cst_65 [0] : vector<128x128xf32> to vector<128xf32>
    %58 = vector.shape_cast %57 : vector<128xf32> to vector<1x128xf32>
    %cst_66 = arith.constant 7.812500e-03 : f32
    %59 = vector.broadcast %cst_66 : f32 to vector<1x128xf32>
    %60 = arith.mulf %58, %59 : vector<1x128xf32>
    %61 = vector.broadcast %60 : vector<1x128xf32> to vector<128x128xf32>
    %62 = arith.subf %54, %61 : vector<128x128xf32>
    %63 = arith.mulf %62, %62 : vector<128x128xf32>
    %cst_67 = arith.constant dense<0.000000e+00> : vector<128xf32>
    %64 = vector.multi_reduction <add>, %63, %cst_67 [0] : vector<128x128xf32> to vector<128xf32>
    %65 = vector.shape_cast %64 : vector<128xf32> to vector<1x128xf32>
    %66 = tpu.concatenate %60, %65 in 0 : vector<1x128xf32>, vector<1x128xf32> -> vector<2x128xf32>
    %67 = vector.shape_cast %66 : vector<2x128xf32> to vector<1x2x128xf32>
    %c0_68 = arith.constant 0 : index
    %c0_69 = arith.constant 0 : index
    %c0_70 = arith.constant 0 : index
    %68 = vector.load %arg5[%c0_68, %c0_69, %c0_70] : memref<1x2x128xf32, #tpu.memory_space<vmem>>, vector<1x2x128xf32>
    tpu.vector_store %arg5[%c0_68, %c0_69, %c0_70], %67 {strides = array<i32>} : memref<1x2x128xf32, #tpu.memory_space<vmem>>, vector<1x2x128xf32>,
    return
  }
  func.func @transform_0(%arg0: i32, %arg1: i32) -> (i32, i32, i32, i32) {
    %c0_i32 = arith.constant 0 : i32
    %c0_i32_0 = arith.constant 0 : i32
    %c0_i32_1 = arith.constant 0 : i32
    %c0_i32_2 = arith.constant 0 : i32
    return %arg0, %c0_i32, %c0_i32_0, %c0_i32_1 : i32, i32, i32, i32
  }
  func.func @transform_1(%arg0: i32, %arg1: i32) -> (i32, i32, i32) {
    %c0_i32 = arith.constant 0 : i32
    %c0_i32_0 = arith.constant 0 : i32
    %c0_i32_1 = arith.constant 0 : i32
    return %c0_i32, %c0_i32_0, %arg1 : i32, i32, i32
  }
  func.func @transform_2(%arg0: i32, %arg1: i32) -> (i32, i32) {
    %c0_i32 = arith.constant 0 : i32
    return %arg0, %arg1 : i32, i32
  }
  func.func @transform_3(%arg0: i32, %arg1: i32) -> (i32, i32, i32) {
    %c0_i32 = arith.constant 0 : i32
    %c0_i32_0 = arith.constant 0 : i32
    return %arg0, %c0_i32, %arg1 : i32, i32, i32
  }
}

module attributes {stable_mosaic.version = 11 : i64} {
  func.func @_bn_act_kernel(%arg0: i32, %arg1: memref<128x128xbf16, #tpu.memory_space<vmem>>, %arg2: memref<1x128xf32, #tpu.memory_space<vmem>>, %arg3: memref<1x128xf32, #tpu.memory_space<vmem>>, %arg4: memref<128x128xf32, #tpu.memory_space<vmem>>) attributes {dimension_semantics = [#tpu.dimension_semantics<parallel>], iteration_bounds = array<i64: 1>, scalar_prefetch = 0 : i64, scratch_operands = 0 : i64, tpu.core_type = #tpu.core_type<tc>, window_params = [{transform_indices = @transform_0, window_bounds = array<i64: 128, 128>}, {pipeline_mode = #tpu.pipeline_mode<synchronous>, transform_indices = @transform_1, window_bounds = array<i64: 1, 128>}, {pipeline_mode = #tpu.pipeline_mode<synchronous>, transform_indices = @transform_2, window_bounds = array<i64: 1, 128>}, {transform_indices = @transform_3, window_bounds = array<i64: 128, 128>}]} {
    %c0 = arith.constant 0 : index
    %c0_0 = arith.constant 0 : index
    %0 = vector.load %arg1[%c0, %c0_0] : memref<128x128xbf16, #tpu.memory_space<vmem>>, vector<128x128xbf16>
    %1 = arith.extf %0 : vector<128x128xbf16> to vector<128x128xf32>
    %c0_1 = arith.constant 0 : index
    %c0_2 = arith.constant 0 : index
    %2 = vector.load %arg2[%c0_1, %c0_2] : memref<1x128xf32, #tpu.memory_space<vmem>>, vector<1x128xf32>
    %3 = vector.broadcast %2 : vector<1x128xf32> to vector<128x128xf32>
    %4 = arith.mulf %1, %3 : vector<128x128xf32>
    %c0_3 = arith.constant 0 : index
    %c0_4 = arith.constant 0 : index
    %5 = vector.load %arg3[%c0_3, %c0_4] : memref<1x128xf32, #tpu.memory_space<vmem>>, vector<1x128xf32>
    %6 = vector.broadcast %5 : vector<1x128xf32> to vector<128x128xf32>
    %7 = arith.addf %4, %6 : vector<128x128xf32>
    %cst = arith.constant 0.000000e+00 : f32
    %8 = vector.broadcast %cst : f32 to vector<128x128xf32>
    %9 = arith.cmpf ogt, %7, %8 : vector<128x128xf32>
    %cst_5 = arith.constant 0.000000e+00 : f32
    %10 = vector.broadcast %cst_5 : f32 to vector<128x128xf32>
    %11 = arith.mulf %10, %7 : vector<128x128xf32>
    %12 = arith.select %9, %7, %11 : vector<128x128xi1>, vector<128x128xf32>
    %c0_6 = arith.constant 0 : index
    %c0_7 = arith.constant 0 : index
    %13 = vector.load %arg4[%c0_6, %c0_7] : memref<128x128xf32, #tpu.memory_space<vmem>>, vector<128x128xf32>
    tpu.vector_store %arg4[%c0_6, %c0_7], %12 {strides = array<i32>} : memref<128x128xf32, #tpu.memory_space<vmem>>, vector<128x128xf32>,
    return
  }
  func.func @transform_0(%arg0: i32) -> (i32, i32) {
    %c0_i32 = arith.constant 0 : i32
    %c0_i32_0 = arith.constant 0 : i32
    return %arg0, %c0_i32 : i32, i32
  }
  func.func @transform_1(%arg0: i32) -> (i32, i32) {
    %c0_i32 = arith.constant 0 : i32
    %c0_i32_0 = arith.constant 0 : i32
    %c0_i32_1 = arith.constant 0 : i32
    return %c0_i32, %c0_i32_0 : i32, i32
  }
  func.func @transform_2(%arg0: i32) -> (i32, i32) {
    %c0_i32 = arith.constant 0 : i32
    %c0_i32_0 = arith.constant 0 : i32
    %c0_i32_1 = arith.constant 0 : i32
    return %c0_i32, %c0_i32_0 : i32, i32
  }
  func.func @transform_3(%arg0: i32) -> (i32, i32) {
    %c0_i32 = arith.constant 0 : i32
    %c0_i32_0 = arith.constant 0 : i32
    return %arg0, %c0_i32 : i32, i32
  }
}

</mosaic_0001>

<llo_original>
// kernel: unet_central_block.5
$region0: #{unet_central_block.5}
  #allocation0 [shape = 'u32[]', space=smem, size = 0x4, offset = 0x4, fixed_abs, tag = 'smem constant byte address 0x4 - core index']
  #allocation1 [shape = 'u32[72,128]{1,0:T(1,128)}', space=vmem, size = 0x9000, scoped, tag = 'internal scratch']
  %s0 = inlined_call_operand.vmem [shape: bf16[128,128], index: 0, kind: input, shape index: {}]
  %s1 = inlined_call_operand.vmem [shape: f32[1,128], index: 1, kind: input, shape index: {}]
  %s2 = inlined_call_operand.vmem [shape: f32[1,128], index: 2, kind: input, shape index: {}]
  %s3 = inlined_call_operand.vmem [shape: bf16[128,128], index: 3, kind: output, shape index: {}]
  %s4 = sld [smem:[#allocation0]]
  $region22: #{unet_central_block.5} parent=0
    _
  %s6 = ssub.s32 1, %s4
  %s7 = scalar_select 0, %s6, %s4
  // Predicated region
  $region2: #{unet_central_block.5} parent=0 // pred_check
    _
  $region3: #{unet_central_block.5} parent=0 // pred_check_branch
    %9 = sbr.rel (0) target = $region5
  $region4: #{unet_central_block.5} parent=0 // pred_region
    _
  $region5: #{unet_central_block.5} parent=0 // pred_fallthru
    _
  // Predicated region
  $region6: #{unet_central_block.5} parent=0 // pred_check
    _
  $region7: #{unet_central_block.5} parent=0 // pred_check_branch
    %11 = sbr.rel (0) target = $region9
  $region8: #{unet_central_block.5} parent=0 // pred_region
    _
  $region9: #{unet_central_block.5} parent=0 // pred_fallthru
    _
  // Predicated region
  $region10: #{unet_central_block.5} parent=0 // pred_check
    _
  $region11: #{unet_central_block.5} parent=0 // pred_check_branch
    %13 = sbr.rel (0) target = $region13
  $region12: #{unet_central_block.5} parent=0 // pred_region
    _
  $region13: #{unet_central_block.5} parent=0 // pred_fallthru
    _
  %v14 = vld [vmem:[%s0] sm:$0xf]
  %v15 = vld [vmem:[%s0 + $0x4] sm:$0xf]
  %v16 = vld [vmem:[%s0 + $0x8] sm:$0xf]
  %v17 = vld [vmem:[%s0 + $0xc] sm:$0xf]
  %v18 = vld [vmem:[%s0 + $0x10] sm:$0xf]
  %v19 = vld [vmem:[%s0 + $0x14] sm:$0xf]
  %v20 = vld [vmem:[%s0 + $0x18] sm:$0xf]
  %v21 = vld [vmem:[%s0 + $0x1c] sm:$0xf]
  %v22 = vld [vmem:[%s0 + $0x20] sm:$0xf]
  %v23 = vld [vmem:[%s0 + $0x24] sm:$0xf]
  %v24 = vld [vmem:[%s0 + $0x28] sm:$0xf]
  %v25 = vld [vmem:[%s0 + $0x2c] sm:$0xf]
  %v26 = vld [vmem:[%s0 + $0x30] sm:$0xf]
  %v27 = vld [vmem:[%s0 + $0x34] sm:$0xf]
  %v28 = vld [vmem:[%s0 + $0x38] sm:$0xf]
  %v29 = vld [vmem:[%s0 + $0x3c] sm:$0xf]
  %v30 = vunpack.c.l.bf16 %v14
  %v31 = vunpack.c.l.bf16 %v15
  %v32 = vunpack.c.l.bf16 %v16
  %v33 = vunpack.c.l.bf16 %v17
  %v34 = vunpack.c.l.bf16 %v18
  %v35 = vunpack.c.l.bf16 %v19
  %v36 = vunpack.c.l.bf16 %v20
  %v37 = vunpack.c.l.bf16 %v21
  %v38 = vunpack.c.l.bf16 %v22
  %v39 = vunpack.c.l.bf16 %v23
  %v40 = vunpack.c.l.bf16 %v24
  %v41 = vunpack.c.l.bf16 %v25
  %v42 = vunpack.c.l.bf16 %v26
  %v43 = vunpack.c.l.bf16 %v27
  %v44 = vunpack.c.l.bf16 %v28
  %v45 = vunpack.c.l.bf16 %v29
  %v46 = vld [vmem:[%s1] sm:$0x1]
  %v48 = vperm.slane %v46, 0
  %v50 = vmul.f32 %v30, %v48
  %v51 = vmul.f32 %v31, %v48
  %v52 = vmul.f32 %v32, %v48
  %v53 = vmul.f32 %v33, %v48
  %v54 = vmul.f32 %v34, %v48
  %v55 = vmul.f32 %v35, %v48
  %v56 = vmul.f32 %v36, %v48
  %v57 = vmul.f32 %v37, %v48
  %v58 = vmul.f32 %v38, %v48
  %v59 = vmul.f32 %v39, %v48
  %v60 = vmul.f32 %v40, %v48
  %v61 = vmul.f32 %v41, %v48
  %v62 = vmul.f32 %v42, %v48
  %v63 = vmul.f32 %v43, %v48
  %v64 = vmul.f32 %v44, %v48
  %v65 = vmul.f32 %v45, %v48
  %v66 = vld [vmem:[%s2] sm:$0x1]
  %v68 = vperm.slane %v66, 0
  %v70 = vadd.f32 %v50, %v68
  %v71 = vadd.f32 %v51, %v68
  %v72 = vadd.f32 %v52, %v68
  %v73 = vadd.f32 %v53, %v68
  %v74 = vadd.f32 %v54, %v68
  %v75 = vadd.f32 %v55, %v68
  %v76 = vadd.f32 %v56, %v68
  %v77 = vadd.f32 %v57, %v68
  %v78 = vadd.f32 %v58, %v68
  %v79 = vadd.f32 %v59, %v68
  %v80 = vadd.f32 %v60, %v68
  %v81 = vadd.f32 %v61, %v68
  %v82 = vadd.f32 %v62, %v68
  %v83 = vadd.f32 %v63, %v68
  %v84 = vadd.f32 %v64, %v68
  %v85 = vadd.f32 %v65, %v68
  %vm86 = vcmp.gt.f32.partialorder %v70, 0.0
  %vm87 = vcmp.gt.f32.partialorder %v71, 0.0
  %vm88 = vcmp.gt.f32.partialorder %v72, 0.0
  %vm89 = vcmp.gt.f32.partialorder %v73, 0.0
  %vm90 = vcmp.gt.f32.partialorder %v74, 0.0
  %vm91 = vcmp.gt.f32.partialorder %v75, 0.0
  %vm92 = vcmp.gt.f32.partialorder %v76, 0.0
  %vm93 = vcmp.gt.f32.partialorder %v77, 0.0
  %vm94 = vcmp.gt.f32.partialorder %v78, 0.0
  %vm95 = vcmp.gt.f32.partialorder %v79, 0.0
  %vm96 = vcmp.gt.f32.partialorder %v80, 0.0
  %vm97 = vcmp.gt.f32.partialorder %v81, 0.0
  %vm98 = vcmp.gt.f32.partialorder %v82, 0.0
  %vm99 = vcmp.gt.f32.partialorder %v83, 0.0
  %vm100 = vcmp.gt.f32.partialorder %v84, 0.0
  %vm101 = vcmp.gt.f32.partialorder %v85, 0.0
  %v102 = vmul.f32 %v70, 0.0
  %v103 = vmul.f32 %v71, 0.0
  %v104 = vmul.f32 %v72, 0.0
  %v105 = vmul.f32 %v73, 0.0
  %v106 = vmul.f32 %v74, 0.0
  %v107 = vmul.f32 %v75, 0.0
  %v108 = vmul.f32 %v76, 0.0
  %v109 = vmul.f32 %v77, 0.0
  %v110 = vmul.f32 %v78, 0.0
  %v111 = vmul.f32 %v79, 0.0
  %v112 = vmul.f32 %v80, 0.0
  %v113 = vmul.f32 %v81, 0.0
  %v114 = vmul.f32 %v82, 0.0
  %v115 = vmul.f32 %v83, 0.0
  %v116 = vmul.f32 %v84, 0.0
  %v117 = vmul.f32 %v85, 0.0
  %v118 = vsel %vm86, %v70, %v102
  %v119 = vsel %vm87, %v71, %v103
  %v120 = vsel %vm88, %v72, %v104
  %v121 = vsel %vm89, %v73, %v105
  %v122 = vsel %vm90, %v74, %v106
  %v123 = vsel %vm91, %v75, %v107
  %v124 = vsel %vm92, %v76, %v108
  %v125 = vsel %vm93, %v77, %v109
  %v126 = vsel %vm94, %v78, %v110
  %v127 = vsel %vm95, %v79, %v111
  %v128 = vsel %vm96, %v80, %v112
  %v129 = vsel %vm97, %v81, %v113
  %v130 = vsel %vm98, %v82, %v114
  %v131 = vsel %vm99, %v83, %v115
  %v132 = vsel %vm100, %v84, %v116
  %v133 = vsel %vm101, %v85, %v117
  %v134 = vpack.c.bf16 %v118, %v118
  %v135 = vpack.c.bf16 %v119, %v119
  %v136 = vpack.c.bf16 %v120, %v120
  %v137 = vpack.c.bf16 %v121, %v121
  %v138 = vpack.c.bf16 %v122, %v122
  %v139 = vpack.c.bf16 %v123, %v123
  %v140 = vpack.c.bf16 %v124, %v124
  %v141 = vpack.c.bf16 %v125, %v125
  %v142 = vpack.c.bf16 %v126, %v126
  %v143 = vpack.c.bf16 %v127, %v127
  %v144 = vpack.c.bf16 %v128, %v128
  %v145 = vpack.c.bf16 %v129, %v129
  %v146 = vpack.c.bf16 %v130, %v130
  %v147 = vpack.c.bf16 %v131, %v131
  %v148 = vpack.c.bf16 %v132, %v132
  %v149 = vpack.c.bf16 %v133, %v133
  %150 = vst [vmem:[%s3] sm:$0xf] %v134
  %151 = vst [vmem:[%s3 + $0x4] sm:$0xf] %v135
  %152 = vst [vmem:[%s3 + $0x8] sm:$0xf] %v136
  %153 = vst [vmem:[%s3 + $0xc] sm:$0xf] %v137
  %154 = vst [vmem:[%s3 + $0x10] sm:$0xf] %v138
  %155 = vst [vmem:[%s3 + $0x14] sm:$0xf] %v139
  %156 = vst [vmem:[%s3 + $0x18] sm:$0xf] %v140
  %157 = vst [vmem:[%s3 + $0x1c] sm:$0xf] %v141
  %158 = vst [vmem:[%s3 + $0x20] sm:$0xf] %v142
  %159 = vst [vmem:[%s3 + $0x24] sm:$0xf] %v143
  %160 = vst [vmem:[%s3 + $0x28] sm:$0xf] %v144
  %161 = vst [vmem:[%s3 + $0x2c] sm:$0xf] %v145
  %162 = vst [vmem:[%s3 + $0x30] sm:$0xf] %v146
  %163 = vst [vmem:[%s3 + $0x34] sm:$0xf] %v147
  %164 = vst [vmem:[%s3 + $0x38] sm:$0xf] %v148
  %165 = vst [vmem:[%s3 + $0x3c] sm:$0xf] %v149
  // Predicated region
  $region14: #{unet_central_block.5} parent=0 // pred_check
    _
  $region15: #{unet_central_block.5} parent=0 // pred_check_branch
    %167 = sbr.rel (0) target = $region17
  $region16: #{unet_central_block.5} parent=0 // pred_region
    _
  $region17: #{unet_central_block.5} parent=0 // pred_fallthru
    _
  // Predicated region
  $region18: #{unet_central_block.5} parent=0 // pred_check
    _
  $region19: #{unet_central_block.5} parent=0 // pred_check_branch
    %169 = sbr.rel (0) target = $region21
  $region20: #{unet_central_block.5} parent=0 // pred_region
    _
  $region21: #{unet_central_block.5} parent=0 // pred_fallthru
    _

// kernel: unet_central_block.7
$region0: #{unet_central_block.7}
  #allocation0 [shape = 'u32[]', space=smem, size = 0x4, offset = 0x4, fixed_abs, tag = 'smem constant byte address 0x4 - core index']
  #allocation1 [shape = 'u32[72,128]{1,0:T(1,128)}', space=vmem, size = 0x9000, scoped, tag = 'internal scratch']
  %s0 = inlined_call_operand.vmem [shape: bf16[128,128], index: 0, kind: input, shape index: {}]
  %s1 = inlined_call_operand.vmem [shape: f32[1,128], index: 1, kind: input, shape index: {}]
  %s2 = inlined_call_operand.vmem [shape: f32[1,128], index: 2, kind: input, shape index: {}]
  %s3 = inlined_call_operand.vmem [shape: f32[128,128], index: 3, kind: output, shape index: {}]
  %s4 = sld [smem:[#allocation0]]
  $region22: #{unet_central_block.7} parent=0
    _
  %s6 = ssub.s32 1, %s4
  %s7 = scalar_select 0, %s6, %s4
  // Predicated region
  $region2: #{unet_central_block.7} parent=0 // pred_check
    _
  $region3: #{unet_central_block.7} parent=0 // pred_check_branch
    %9 = sbr.rel (0) target = $region5
  $region4: #{unet_central_block.7} parent=0 // pred_region
    _
  $region5: #{unet_central_block.7} parent=0 // pred_fallthru
    _
  // Predicated region
  $region6: #{unet_central_block.7} parent=0 // pred_check
    _
  $region7: #{unet_central_block.7} parent=0 // pred_check_branch
    %11 = sbr.rel (0) target = $region9
  $region8: #{unet_central_block.7} parent=0 // pred_region
    _
  $region9: #{unet_central_block.7} parent=0 // pred_fallthru
    _
  // Predicated region
  $region10: #{unet_central_block.7} parent=0 // pred_check
    _
  $region11: #{unet_central_block.7} parent=0 // pred_check_branch
    %13 = sbr.rel (0) target = $region13
  $region12: #{unet_central_block.7} parent=0 // pred_region
    _
  $region13: #{unet_central_block.7} parent=0 // pred_fallthru
    _
  %v14 = vld [vmem:[%s0] sm:$0xf]
  %v15 = vld [vmem:[%s0 + $0x4] sm:$0xf]
  %v16 = vld [vmem:[%s0 + $0x8] sm:$0xf]
  %v17 = vld [vmem:[%s0 + $0xc] sm:$0xf]
  %v18 = vld [vmem:[%s0 + $0x10] sm:$0xf]
  %v19 = vld [vmem:[%s0 + $0x14] sm:$0xf]
  %v20 = vld [vmem:[%s0 + $0x18] sm:$0xf]
  %v21 = vld [vmem:[%s0 + $0x1c] sm:$0xf]
  %v22 = vld [vmem:[%s0 + $0x20] sm:$0xf]
  %v23 = vld [vmem:[%s0 + $0x24] sm:$0xf]
  %v24 = vld [vmem:[%s0 + $0x28] sm:$0xf]
  %v25 = vld [vmem:[%s0 + $0x2c] sm:$0xf]
  %v26 = vld [vmem:[%s0 + $0x30] sm:$0xf]
  %v27 = vld [vmem:[%s0 + $0x34] sm:$0xf]
  %v28 = vld [vmem:[%s0 + $0x38] sm:$0xf]
  %v29 = vld [vmem:[%s0 + $0x3c] sm:$0xf]
  %v30 = vunpack.c.l.bf16 %v14
  %v31 = vunpack.c.l.bf16 %v15
  %v32 = vunpack.c.l.bf16 %v16
  %v33 = vunpack.c.l.bf16 %v17
  %v34 = vunpack.c.l.bf16 %v18
  %v35 = vunpack.c.l.bf16 %v19
  %v36 = vunpack.c.l.bf16 %v20
  %v37 = vunpack.c.l.bf16 %v21
  %v38 = vunpack.c.l.bf16 %v22
  %v39 = vunpack.c.l.bf16 %v23
  %v40 = vunpack.c.l.bf16 %v24
  %v41 = vunpack.c.l.bf16 %v25
  %v42 = vunpack.c.l.bf16 %v26
  %v43 = vunpack.c.l.bf16 %v27
  %v44 = vunpack.c.l.bf16 %v28
  %v45 = vunpack.c.l.bf16 %v29
  %v46 = vld [vmem:[%s1] sm:$0x1]
  %v48 = vperm.slane %v46, 0
  %v50 = vmul.f32 %v30, %v48
  %v51 = vmul.f32 %v31, %v48
  %v52 = vmul.f32 %v32, %v48
  %v53 = vmul.f32 %v33, %v48
  %v54 = vmul.f32 %v34, %v48
  %v55 = vmul.f32 %v35, %v48
  %v56 = vmul.f32 %v36, %v48
  %v57 = vmul.f32 %v37, %v48
  %v58 = vmul.f32 %v38, %v48
  %v59 = vmul.f32 %v39, %v48
  %v60 = vmul.f32 %v40, %v48
  %v61 = vmul.f32 %v41, %v48
  %v62 = vmul.f32 %v42, %v48
  %v63 = vmul.f32 %v43, %v48
  %v64 = vmul.f32 %v44, %v48
  %v65 = vmul.f32 %v45, %v48
  %v66 = vld [vmem:[%s2] sm:$0x1]
  %v68 = vperm.slane %v66, 0
  %v70 = vadd.f32 %v50, %v68
  %v71 = vadd.f32 %v51, %v68
  %v72 = vadd.f32 %v52, %v68
  %v73 = vadd.f32 %v53, %v68
  %v74 = vadd.f32 %v54, %v68
  %v75 = vadd.f32 %v55, %v68
  %v76 = vadd.f32 %v56, %v68
  %v77 = vadd.f32 %v57, %v68
  %v78 = vadd.f32 %v58, %v68
  %v79 = vadd.f32 %v59, %v68
  %v80 = vadd.f32 %v60, %v68
  %v81 = vadd.f32 %v61, %v68
  %v82 = vadd.f32 %v62, %v68
  %v83 = vadd.f32 %v63, %v68
  %v84 = vadd.f32 %v64, %v68
  %v85 = vadd.f32 %v65, %v68
  %vm86 = vcmp.gt.f32.partialorder %v70, 0.0
  %vm87 = vcmp.gt.f32.partialorder %v71, 0.0
  %vm88 = vcmp.gt.f32.partialorder %v72, 0.0
  %vm89 = vcmp.gt.f32.partialorder %v73, 0.0
  %vm90 = vcmp.gt.f32.partialorder %v74, 0.0
  %vm91 = vcmp.gt.f32.partialorder %v75, 0.0
  %vm92 = vcmp.gt.f32.partialorder %v76, 0.0
  %vm93 = vcmp.gt.f32.partialorder %v77, 0.0
  %vm94 = vcmp.gt.f32.partialorder %v78, 0.0
  %vm95 = vcmp.gt.f32.partialorder %v79, 0.0
  %vm96 = vcmp.gt.f32.partialorder %v80, 0.0
  %vm97 = vcmp.gt.f32.partialorder %v81, 0.0
  %vm98 = vcmp.gt.f32.partialorder %v82, 0.0
  %vm99 = vcmp.gt.f32.partialorder %v83, 0.0
  %vm100 = vcmp.gt.f32.partialorder %v84, 0.0
  %vm101 = vcmp.gt.f32.partialorder %v85, 0.0
  %v102 = vmul.f32 %v70, 0.0
  %v103 = vmul.f32 %v71, 0.0
  %v104 = vmul.f32 %v72, 0.0
  %v105 = vmul.f32 %v73, 0.0
  %v106 = vmul.f32 %v74, 0.0
  %v107 = vmul.f32 %v75, 0.0
  %v108 = vmul.f32 %v76, 0.0
  %v109 = vmul.f32 %v77, 0.0
  %v110 = vmul.f32 %v78, 0.0
  %v111 = vmul.f32 %v79, 0.0
  %v112 = vmul.f32 %v80, 0.0
  %v113 = vmul.f32 %v81, 0.0
  %v114 = vmul.f32 %v82, 0.0
  %v115 = vmul.f32 %v83, 0.0
  %v116 = vmul.f32 %v84, 0.0
  %v117 = vmul.f32 %v85, 0.0
  %v118 = vsel %vm86, %v70, %v102
  %v119 = vsel %vm87, %v71, %v103
  %v120 = vsel %vm88, %v72, %v104
  %v121 = vsel %vm89, %v73, %v105
  %v122 = vsel %vm90, %v74, %v106
  %v123 = vsel %vm91, %v75, %v107
  %v124 = vsel %vm92, %v76, %v108
  %v125 = vsel %vm93, %v77, %v109
  %v126 = vsel %vm94, %v78, %v110
  %v127 = vsel %vm95, %v79, %v111
  %v128 = vsel %vm96, %v80, %v112
  %v129 = vsel %vm97, %v81, %v113
  %v130 = vsel %vm98, %v82, %v114
  %v131 = vsel %vm99, %v83, %v115
  %v132 = vsel %vm100, %v84, %v116
  %v133 = vsel %vm101, %v85, %v117
  %134 = vst [vmem:[%s3] sm:$0xff] %v118
  %135 = vst [vmem:[%s3 + $0x8] sm:$0xff] %v119
  %136 = vst [vmem:[%s3 + $0x10] sm:$0xff] %v120
  %137 = vst [vmem:[%s3 + $0x18] sm:$0xff] %v121
  %138 = vst [vmem:[%s3 + $0x20] sm:$0xff] %v122
  %139 = vst [vmem:[%s3 + $0x28] sm:$0xff] %v123
  %140 = vst [vmem:[%s3 + $0x30] sm:$0xff] %v124
  %141 = vst [vmem:[%s3 + $0x38] sm:$0xff] %v125
  %142 = vst [vmem:[%s3 + $0x40] sm:$0xff] %v126
  %143 = vst [vmem:[%s3 + $0x48] sm:$0xff] %v127
  %144 = vst [vmem:[%s3 + $0x50] sm:$0xff] %v128
  %145 = vst [vmem:[%s3 + $0x58] sm:$0xff] %v129
  %146 = vst [vmem:[%s3 + $0x60] sm:$0xff] %v130
  %147 = vst [vmem:[%s3 + $0x68] sm:$0xff] %v131
  %148 = vst [vmem:[%s3 + $0x70] sm:$0xff] %v132
  %149 = vst [vmem:[%s3 + $0x78] sm:$0xff] %v133
  // Predicated region
  $region14: #{unet_central_block.7} parent=0 // pred_check
    _
  $region15: #{unet_central_block.7} parent=0 // pred_check_branch
    %151 = sbr.rel (0) target = $region17
  $region16: #{unet_central_block.7} parent=0 // pred_region
    _
  $region17: #{unet_central_block.7} parent=0 // pred_fallthru
    _
  // Predicated region
  $region18: #{unet_central_block.7} parent=0 // pred_check
    _
  $region19: #{unet_central_block.7} parent=0 // pred_check_branch
    %153 = sbr.rel (0) target = $region21
  $region20: #{unet_central_block.7} parent=0 // pred_region
    _
  $region21: #{unet_central_block.7} parent=0 // pred_fallthru
    _

// kernel: unet_central_block.4
$region0: #{unet_central_block.4}
  #allocation0 [shape = 'u32[]', space=smem, size = 0x4, offset = 0x4, fixed_abs, tag = 'smem constant byte address 0x4 - core index']
  #allocation1 [shape = 'u32[72,128]{1,0:T(1,128)}', space=vmem, size = 0x9000, scoped, tag = 'internal scratch']
  %s0 = inlined_call_operand.vmem [shape: bf16[2,36,9,4], index: 0, kind: input, shape index: {}]
  %s1 = inlined_call_operand.vmem [shape: bf16[9,4,128], index: 1, kind: input, shape index: {}]
  %s2 = inlined_call_operand.vmem [shape: bf16[128,128], index: 2, kind: output, shape index: {0}]
  %s3 = inlined_call_operand.vmem [shape: f32[1,2,128], index: 3, kind: output, shape index: {1}]
  %4 = xla_tuple %s2, %s3
  %s5 = sld [smem:[#allocation0]]
  $region26: #{unet_central_block.4} parent=0
    _
  %s7 = ssub.s32 1, %s5
  %s8 = scalar_select 0, %s7, %s5
  // Predicated region
  $region2: #{unet_central_block.4} parent=0 // pred_check
    _
  $region3: #{unet_central_block.4} parent=0 // pred_check_branch
    %10 = sbr.rel (0) target = $region5
  $region4: #{unet_central_block.4} parent=0 // pred_region
    _
  $region5: #{unet_central_block.4} parent=0 // pred_fallthru
    _
  // Predicated region
  $region6: #{unet_central_block.4} parent=0 // pred_check
    _
  $region7: #{unet_central_block.4} parent=0 // pred_check_branch
    %12 = sbr.rel (0) target = $region9
  $region8: #{unet_central_block.4} parent=0 // pred_region
    _
  $region9: #{unet_central_block.4} parent=0 // pred_fallthru
    _
  %v14 = vld [vmem:[%s0] sm:$0xf]
  %v15 = vld [vmem:[%s0 + $0x8] sm:$0xf]
  %v16 = vld [vmem:[%s0 + $0x10] sm:$0xf]
  %v17 = vld [vmem:[%s0 + $0x18] sm:$0xf]
  %v18 = vld [vmem:[%s0 + $0x20] sm:$0xf]
  %v19 = vld [vmem:[%s0 + $0x28] sm:$0xf]
  %v20 = vld [vmem:[%s0 + $0x30] sm:$0xf]
  %v21 = vld [vmem:[%s0 + $0x38] sm:$0xf]
  %v22 = vld [vmem:[%s0 + $0x120] sm:$0xf]
  %v23 = vld [vmem:[%s0 + $0x128] sm:$0xf]
  %v24 = vld [vmem:[%s0 + $0x130] sm:$0xf]
  %v25 = vld [vmem:[%s0 + $0x138] sm:$0xf]
  %v26 = vld [vmem:[%s0 + $0x140] sm:$0xf]
  %v27 = vld [vmem:[%s0 + $0x148] sm:$0xf]
  %v28 = vld [vmem:[%s0 + $0x150] sm:$0xf]
  %v29 = vld [vmem:[%s0 + $0x158] sm:$0xf]
  %v30 = vld [vmem:[%s1] sm:$0x3]
  %s31 = scalar_lea.vmem %s0, 72
  %v32 = vld [vmem:[%s31] sm:$0xf]
  %v33 = vld [vmem:[%s31 + $0x8] sm:$0xf]
  %v34 = vld [vmem:[%s31 + $0x10] sm:$0xf]
  %v35 = vld [vmem:[%s31 + $0x18] sm:$0xf]
  %v36 = vld [vmem:[%s31 + $0x20] sm:$0xf]
  %v37 = vld [vmem:[%s31 + $0x28] sm:$0xf]
  %v38 = vld [vmem:[%s31 + $0x30] sm:$0xf]
  %v39 = vld [vmem:[%s31 + $0x38] sm:$0xf]
  %v40 = vld [vmem:[%s31 + $0x120] sm:$0xf]
  %v41 = vld [vmem:[%s31 + $0x128] sm:$0xf]
  %v42 = vld [vmem:[%s31 + $0x130] sm:$0xf]
  %v43 = vld [vmem:[%s31 + $0x138] sm:$0xf]
  %v44 = vld [vmem:[%s31 + $0x140] sm:$0xf]
  %v45 = vld [vmem:[%s31 + $0x148] sm:$0xf]
  %v46 = vld [vmem:[%s31 + $0x150] sm:$0xf]
  %v47 = vld [vmem:[%s31 + $0x158] sm:$0xf]
  %s48 = scalar_lea.vmem %s1, 2
  %v49 = vld [vmem:[%s48] sm:$0x3]
  %v66 = vunpack.c.l.b16 %v32
  %v67 = vunpack.c.l.b16 %v33
  %v68 = vunpack.c.l.b16 %v34
  %v69 = vunpack.c.l.b16 %v35
  %v70 = vunpack.c.l.b16 %v36
  %v71 = vunpack.c.l.b16 %v37
  %v72 = vunpack.c.l.b16 %v38
  %v73 = vunpack.c.l.b16 %v39
  %v74 = vunpack.c.l.b16 %v40
  %v75 = vunpack.c.l.b16 %v41
  %v76 = vunpack.c.l.b16 %v42
  %v77 = vunpack.c.l.b16 %v43
  %v78 = vunpack.c.l.b16 %v44
  %v79 = vunpack.c.l.b16 %v45
  %v80 = vunpack.c.l.b16 %v46
  %v81 = vunpack.c.l.b16 %v47
  %v82 = vpack.c.b16 %v67, %v66
  %v83 = vpack.c.b16 %v69, %v68
  %v84 = vpack.c.b16 %v71, %v70
  %v85 = vpack.c.b16 %v73, %v72
  %v86 = vpack.c.b16 %v75, %v74
  %v87 = vpack.c.b16 %v77, %v76
  %v88 = vpack.c.b16 %v79, %v78
  %v89 = vpack.c.b16 %v81, %v80
  %vm90 = vcmask 31744
  %v92 = vsel %vm90, %v82, 0
  %v95 = vsel %vm90, %v83, 0
  %v98 = vsel %vm90, %v84, 0
  %v101 = vsel %vm90, %v85, 0
  %v104 = vsel %vm90, %v86, 0
  %v107 = vsel %vm90, %v87, 0
  %v110 = vsel %vm90, %v88, 0
  %v113 = vsel %vm90, %v89, 0
  %vm115 = vcmask 1041408
  %v117 = vsel %vm115, %v49, 0
  %119 = vmatpush.bf16.msra.mxu0 0
  %120 = vmatpush.bf16.msra.mxu0 0
  %121 = vmatpush.bf16.msra.mxu0 0
  %122 = vmatpush.bf16.msra.mxu0 0
  %123 = vmatpush.bf16.msra.mxu0 0
  %124 = vmatpush.bf16.msra.mxu0 0
  %125 = vmatpush.bf16.msra.mxu0 0
  %126 = vmatpush.bf16.msra.mxu0 %v117
  %127 = vmatmul.bf16.gmra.mxu0 %v92
  %v128 = vpop.f32.mrf.mxu0
  %v129 = vadd.f32 0.0, %v128
  %v130 = vpop.f32.mrf.mxu0
  %v131 = vadd.f32 0.0, %v130
  %132 = vmatmul.bf16.gmra.mxu0 %v95
  %v133 = vpop.f32.mrf.mxu0
  %v134 = vadd.f32 0.0, %v133
  %v135 = vpop.f32.mrf.mxu0
  %v136 = vadd.f32 0.0, %v135
  %137 = vmatmul.bf16.gmra.mxu0 %v98
  %v138 = vpop.f32.mrf.mxu0
  %v139 = vadd.f32 0.0, %v138
  %v140 = vpop.f32.mrf.mxu0
  %v141 = vadd.f32 0.0, %v140
  %142 = vmatmul.bf16.gmra.mxu0 %v101
  %v143 = vpop.f32.mrf.mxu0
  %v144 = vadd.f32 0.0, %v143
  %v145 = vpop.f32.mrf.mxu0
  %v146 = vadd.f32 0.0, %v145
  %147 = vmatmul.bf16.gmra.mxu0 %v104
  %v148 = vpop.f32.mrf.mxu0
  %v149 = vadd.f32 0.0, %v148
  %v150 = vpop.f32.mrf.mxu0
  %v151 = vadd.f32 0.0, %v150
  %152 = vmatmul.bf16.gmra.mxu0 %v107
  %v153 = vpop.f32.mrf.mxu0
  %v154 = vadd.f32 0.0, %v153
  %v155 = vpop.f32.mrf.mxu0
  %v156 = vadd.f32 0.0, %v155
  %157 = vmatmul.bf16.gmra.mxu0 %v110
  %v158 = vpop.f32.mrf.mxu0
  %v159 = vadd.f32 0.0, %v158
  %v160 = vpop.f32.mrf.mxu0
  %v161 = vadd.f32 0.0, %v160
  %162 = vmatmul.bf16.gmra.mxu0 %v113
  %v163 = vpop.f32.mrf.mxu0
  %v164 = vadd.f32 0.0, %v163
  %v165 = vpop.f32.mrf.mxu0
  %v166 = vadd.f32 0.0, %v165
  %167 = vdwg.mxu0
  %v184 = vunpack.c.l.b16 %v14
  %v185 = vunpack.c.l.b16 %v15
  %v186 = vunpack.c.l.b16 %v16
  %v187 = vunpack.c.l.b16 %v17
  %v188 = vunpack.c.l.b16 %v18
  %v189 = vunpack.c.l.b16 %v19
  %v190 = vunpack.c.l.b16 %v20
  %v191 = vunpack.c.l.b16 %v21
  %v192 = vunpack.c.l.b16 %v22
  %v193 = vunpack.c.l.b16 %v23
  %v194 = vunpack.c.l.b16 %v24
  %v195 = vunpack.c.l.b16 %v25
  %v196 = vunpack.c.l.b16 %v26
  %v197 = vunpack.c.l.b16 %v27
  %v198 = vunpack.c.l.b16 %v28
  %v199 = vunpack.c.l.b16 %v29
  %v200 = vpack.c.b16 %v185, %v184
  %v201 = vpack.c.b16 %v187, %v186
  %v202 = vpack.c.b16 %v189, %v188
  %v203 = vpack.c.b16 %v191, %v190
  %v204 = vpack.c.b16 %v193, %v192
  %v205 = vpack.c.b16 %v195, %v194
  %v206 = vpack.c.b16 %v197, %v196
  %v207 = vpack.c.b16 %v199, %v198
  %v209 = vsel %vm90, %v200, 0
  %v212 = vsel %vm90, %v201, 0
  %v215 = vsel %vm90, %v202, 0
  %v218 = vsel %vm90, %v203, 0
  %v221 = vsel %vm90, %v204, 0
  %v224 = vsel %vm90, %v205, 0
  %v227 = vsel %vm90, %v206, 0
  %v230 = vsel %vm90, %v207, 0
  %v233 = vsel %vm115, %v30, 0
  %235 = vmatpush.bf16.msra.mxu0 0
  %236 = vmatpush.bf16.msra.mxu0 0
  %237 = vmatpush.bf16.msra.mxu0 0
  %238 = vmatpush.bf16.msra.mxu0 0
  %239 = vmatpush.bf16.msra.mxu0 0
  %240 = vmatpush.bf16.msra.mxu0 0
  %241 = vmatpush.bf16.msra.mxu0 0
  %242 = vmatpush.bf16.msra.mxu0 %v233
  %243 = vmatmul.bf16.gmra.mxu0 %v209
  %v244 = vpop.f32.mrf.mxu0
  %v245 = vadd.f32 %v129, %v244
  %v246 = vpop.f32.mrf.mxu0
  %v247 = vadd.f32 %v131, %v246
  %248 = vmatmul.bf16.gmra.mxu0 %v212
  %v249 = vpop.f32.mrf.mxu0
  %v250 = vadd.f32 %v134, %v249
  %v251 = vpop.f32.mrf.mxu0
  %v252 = vadd.f32 %v136, %v251
  %253 = vmatmul.bf16.gmra.mxu0 %v215
  %v254 = vpop.f32.mrf.mxu0
  %v255 = vadd.f32 %v139, %v254
  %v256 = vpop.f32.mrf.mxu0
  %v257 = vadd.f32 %v141, %v256
  %258 = vmatmul.bf16.gmra.mxu0 %v218
  %v259 = vpop.f32.mrf.mxu0
  %v260 = vadd.f32 %v144, %v259
  %v261 = vpop.f32.mrf.mxu0
  %v262 = vadd.f32 %v146, %v261
  %263 = vmatmul.bf16.gmra.mxu0 %v221
  %v264 = vpop.f32.mrf.mxu0
  %v265 = vadd.f32 %v149, %v264
  %v266 = vpop.f32.mrf.mxu0
  %v267 = vadd.f32 %v151, %v266
  %268 = vmatmul.bf16.gmra.mxu0 %v224
  %v269 = vpop.f32.mrf.mxu0
  %v270 = vadd.f32 %v154, %v269
  %v271 = vpop.f32.mrf.mxu0
  %v272 = vadd.f32 %v156, %v271
  %273 = vmatmul.bf16.gmra.mxu0 %v227
  %v274 = vpop.f32.mrf.mxu0
  %v275 = vadd.f32 %v159, %v274
  %v276 = vpop.f32.mrf.mxu0
  %v277 = vadd.f32 %v161, %v276
  %278 = vmatmul.bf16.gmra.mxu0 %v230
  %v279 = vpop.f32.mrf.mxu0
  %v280 = vadd.f32 %v164, %v279
  %v281 = vpop.f32.mrf.mxu0
  %v282 = vadd.f32 %v166, %v281
  %283 = vdwg.mxu0
  %v284 = vld [vmem:[%s0] sm:$0xf]
  %v285 = vld [vmem:[%s0 + $0x4] sm:$0x1]
  %v286 = vld [vmem:[%s0 + $0x8] sm:$0xf]
  %v287 = vld [vmem:[%s0 + $0xc] sm:$0x1]
  %v288 = vld [vmem:[%s0 + $0x10] sm:$0xf]
  %v289 = vld [vmem:[%s0 + $0x14] sm:$0x1]
  %v290 = vld [vmem:[%s0 + $0x18] sm:$0xf]
  %v291 = vld [vmem:[%s0 + $0x1c] sm:$0x1]
  %v292 = vld [vmem:[%s0 + $0x20] sm:$0xf]
  %v293 = vld [vmem:[%s0 + $0x24] sm:$0x1]
  %v294 = vld [vmem:[%s0 + $0x28] sm:$0xf]
  %v295 = vld [vmem:[%s0 + $0x2c] sm:$0x1]
  %v296 = vld [vmem:[%s0 + $0x30] sm:$0xf]
  %v297 = vld [vmem:[%s0 + $0x34] sm:$0x1]
  %v298 = vld [vmem:[%s0 + $0x38] sm:$0xf]
  %v299 = vld [vmem:[%s0 + $0x3c] sm:$0x1]
  %v300 = vld [vmem:[%s0 + $0x120] sm:$0xf]
  %v301 = vld [vmem:[%s0 + $0x124] sm:$0x1]
  %v302 = vld [vmem:[%s0 + $0x128] sm:$0xf]
  %v303 = vld [vmem:[%s0 + $0x12c] sm:$0x1]
  %v304 = vld [vmem:[%s0 + $0x130] sm:$0xf]
  %v305 = vld [vmem:[%s0 + $0x134] sm:$0x1]
  %v306 = vld [vmem:[%s0 + $0x138] sm:$0xf]
  %v307 = vld [vmem:[%s0 + $0x13c] sm:$0x1]
  %v308 = vld [vmem:[%s0 + $0x140] sm:$0xf]
  %v309 = vld [vmem:[%s0 + $0x144] sm:$0x1]
  %v310 = vld [vmem:[%s0 + $0x148] sm:$0xf]
  %v311 = vld [vmem:[%s0 + $0x14c] sm:$0x1]
  %v312 = vld [vmem:[%s0 + $0x150] sm:$0xf]
  %v313 = vld [vmem:[%s0 + $0x154] sm:$0x1]
  %v314 = vld [vmem:[%s0 + $0x158] sm:$0xf]
  %v315 = vld [vmem:[%s0 + $0x15c] sm:$0x1]
  %vm316 = vsmask.f32 3328
  %vm317 = vsmask.f32 7440
  %vm318 = vmor %vm316, %vm317
  %v320 = vshrl.u32 %v284, 16
  %v322 = vrot.slane %v320, 4
  %v323 = vshll.u32 %v284, 16
  %v325 = vrot.slane %v323, 5
  %v326 = vor.u32 %v322, %v325
  %v327 = vrot.slane %v326, 4
  %v329 = vshll.u32 %v285, 16
  %v331 = vrot.slane %v329, 5
  %v332 = vsel %vm318, %v327, %v331
  %v334 = vshrl.u32 %v286, 16
  %v336 = vrot.slane %v334, 4
  %v337 = vshll.u32 %v286, 16
  %v339 = vrot.slane %v337, 5
  %v340 = vor.u32 %v336, %v339
  %v341 = vrot.slane %v340, 4
  %v343 = vshll.u32 %v287, 16
  %v345 = vrot.slane %v343, 5
  %v346 = vsel %vm318, %v341, %v345
  %v348 = vshrl.u32 %v288, 16
  %v350 = vrot.slane %v348, 4
  %v351 = vshll.u32 %v288, 16
  %v353 = vrot.slane %v351, 5
  %v354 = vor.u32 %v350, %v353
  %v355 = vrot.slane %v354, 4
  %v357 = vshll.u32 %v289, 16
  %v359 = vrot.slane %v357, 5
  %v360 = vsel %vm318, %v355, %v359
  %v362 = vshrl.u32 %v290, 16
  %v364 = vrot.slane %v362, 4
  %v365 = vshll.u32 %v290, 16
  %v367 = vrot.slane %v365, 5
  %v368 = vor.u32 %v364, %v367
  %v369 = vrot.slane %v368, 4
  %v371 = vshll.u32 %v291, 16
  %v373 = vrot.slane %v371, 5
  %v374 = vsel %vm318, %v369, %v373
  %v376 = vshrl.u32 %v292, 16
  %v378 = vrot.slane %v376, 4
  %v379 = vshll.u32 %v292, 16
  %v381 = vrot.slane %v379, 5
  %v382 = vor.u32 %v378, %v381
  %v383 = vrot.slane %v382, 4
  %v385 = vshll.u32 %v293, 16
  %v387 = vrot.slane %v385, 5
  %v388 = vsel %vm318, %v383, %v387
  %v390 = vshrl.u32 %v294, 16
  %v392 = vrot.slane %v390, 4
  %v393 = vshll.u32 %v294, 16
  %v395 = vrot.slane %v393, 5
  %v396 = vor.u32 %v392, %v395
  %v397 = vrot.slane %v396, 4
  %v399 = vshll.u32 %v295, 16
  %v401 = vrot.slane %v399, 5
  %v402 = vsel %vm318, %v397, %v401
  %v404 = vshrl.u32 %v296, 16
  %v406 = vrot.slane %v404, 4
  %v407 = vshll.u32 %v296, 16
  %v409 = vrot.slane %v407, 5
  %v410 = vor.u32 %v406, %v409
  %v411 = vrot.slane %v410, 4
  %v413 = vshll.u32 %v297, 16
  %v415 = vrot.slane %v413, 5
  %v416 = vsel %vm318, %v411, %v415
  %v418 = vshrl.u32 %v298, 16
  %v420 = vrot.slane %v418, 4
  %v421 = vshll.u32 %v298, 16
  %v423 = vrot.slane %v421, 5
  %v424 = vor.u32 %v420, %v423
  %v425 = vrot.slane %v424, 4
  %v427 = vshll.u32 %v299, 16
  %v429 = vrot.slane %v427, 5
  %v430 = vsel %vm318, %v425, %v429
  %v432 = vshrl.u32 %v300, 16
  %v434 = vrot.slane %v432, 4
  %v435 = vshll.u32 %v300, 16
  %v437 = vrot.slane %v435, 5
  %v438 = vor.u32 %v434, %v437
  %v439 = vrot.slane %v438, 4
  %v441 = vshll.u32 %v301, 16
  %v443 = vrot.slane %v441, 5
  %v444 = vsel %vm318, %v439, %v443
  %v446 = vshrl.u32 %v302, 16
  %v448 = vrot.slane %v446, 4
  %v449 = vshll.u32 %v302, 16
  %v451 = vrot.slane %v449, 5
  %v452 = vor.u32 %v448, %v451
  %v453 = vrot.slane %v452, 4
  %v455 = vshll.u32 %v303, 16
  %v457 = vrot.slane %v455, 5
  %v458 = vsel %vm318, %v453, %v457
  %v460 = vshrl.u32 %v304, 16
  %v462 = vrot.slane %v460, 4
  %v463 = vshll.u32 %v304, 16
  %v465 = vrot.slane %v463, 5
  %v466 = vor.u32 %v462, %v465
  %v467 = vrot.slane %v466, 4
  %v469 = vshll.u32 %v305, 16
  %v471 = vrot.slane %v469, 5
  %v472 = vsel %vm318, %v467, %v471
  %v474 = vshrl.u32 %v306, 16
  %v476 = vrot.slane %v474, 4
  %v477 = vshll.u32 %v306, 16
  %v479 = vrot.slane %v477, 5
  %v480 = vor.u32 %v476, %v479
  %v481 = vrot.slane %v480, 4
  %v483 = vshll.u32 %v307, 16
  %v485 = vrot.slane %v483, 5
  %v486 = vsel %vm318, %v481, %v485
  %v488 = vshrl.u32 %v308, 16
  %v490 = vrot.slane %v488, 4
  %v491 = vshll.u32 %v308, 16
  %v493 = vrot.slane %v491, 5
  %v494 = vor.u32 %v490, %v493
  %v495 = vrot.slane %v494, 4
  %v497 = vshll.u32 %v309, 16
  %v499 = vrot.slane %v497, 5
  %v500 = vsel %vm318, %v495, %v499
  %v502 = vshrl.u32 %v310, 16
  %v504 = vrot.slane %v502, 4
  %v505 = vshll.u32 %v310, 16
  %v507 = vrot.slane %v505, 5
  %v508 = vor.u32 %v504, %v507
  %v509 = vrot.slane %v508, 4
  %v511 = vshll.u32 %v311, 16
  %v513 = vrot.slane %v511, 5
  %v514 = vsel %vm318, %v509, %v513
  %v516 = vshrl.u32 %v312, 16
  %v518 = vrot.slane %v516, 4
  %v519 = vshll.u32 %v312, 16
  %v521 = vrot.slane %v519, 5
  %v522 = vor.u32 %v518, %v521
  %v523 = vrot.slane %v522, 4
  %v525 = vshll.u32 %v313, 16
  %v527 = vrot.slane %v525, 5
  %v528 = vsel %vm318, %v523, %v527
  %v530 = vshrl.u32 %v314, 16
  %v532 = vrot.slane %v530, 4
  %v533 = vshll.u32 %v314, 16
  %v535 = vrot.slane %v533, 5
  %v536 = vor.u32 %v532, %v535
  %v537 = vrot.slane %v536, 4
  %v539 = vshll.u32 %v315, 16
  %v541 = vrot.slane %v539, 5
  %v542 = vsel %vm318, %v537, %v541
  %s543 = scalar_lea.vmem %s1, 4
  %v544 = vld [vmem:[%s543] sm:$0x3]
  %v545 = vunpack.c.l.b16 %v332
  %v546 = vunpack.c.l.b16 %v346
  %v547 = vunpack.c.l.b16 %v360
  %v548 = vunpack.c.l.b16 %v374
  %v549 = vunpack.c.l.b16 %v388
  %v550 = vunpack.c.l.b16 %v402
  %v551 = vunpack.c.l.b16 %v416
  %v552 = vunpack.c.l.b16 %v430
  %v553 = vunpack.c.l.b16 %v444
  %v554 = vunpack.c.l.b16 %v458
  %v555 = vunpack.c.l.b16 %v472
  %v556 = vunpack.c.l.b16 %v486
  %v557 = vunpack.c.l.b16 %v500
  %v558 = vunpack.c.l.b16 %v514
  %v559 = vunpack.c.l.b16 %v528
  %v560 = vunpack.c.l.b16 %v542
  %v561 = vpack.c.b16 %v546, %v545
  %v562 = vpack.c.b16 %v548, %v547
  %v563 = vpack.c.b16 %v550, %v549
  %v564 = vpack.c.b16 %v552, %v551
  %v565 = vpack.c.b16 %v554, %v553
  %v566 = vpack.c.b16 %v556, %v555
  %v567 = vpack.c.b16 %v558, %v557
  %v568 = vpack.c.b16 %v560, %v559
  %v570 = vsel %vm90, %v561, 0
  %v573 = vsel %vm90, %v562, 0
  %v576 = vsel %vm90, %v563, 0
  %v579 = vsel %vm90, %v564, 0
  %v582 = vsel %vm90, %v565, 0
  %v585 = vsel %vm90, %v566, 0
  %v588 = vsel %vm90, %v567, 0
  %v591 = vsel %vm90, %v568, 0
  %v594 = vsel %vm115, %v544, 0
  %596 = vmatpush.bf16.msra.mxu0 0
  %597 = vmatpush.bf16.msra.mxu0 0
  %598 = vmatpush.bf16.msra.mxu0 0
  %599 = vmatpush.bf16.msra.mxu0 0
  %600 = vmatpush.bf16.msra.mxu0 0
  %601 = vmatpush.bf16.msra.mxu0 0
  %602 = vmatpush.bf16.msra.mxu0 0
  %603 = vmatpush.bf16.msra.mxu0 %v594
  %604 = vmatmul.bf16.gmra.mxu0 %v570
  %v605 = vpop.f32.mrf.mxu0
  %v606 = vadd.f32 0.0, %v605
  %v607 = vpop.f32.mrf.mxu0
  %v608 = vadd.f32 0.0, %v607
  %609 = vmatmul.bf16.gmra.mxu0 %v573
  %v610 = vpop.f32.mrf.mxu0
  %v611 = vadd.f32 0.0, %v610
  %v612 = vpop.f32.mrf.mxu0
  %v613 = vadd.f32 0.0, %v612
  %614 = vmatmul.bf16.gmra.mxu0 %v576
  %v615 = vpop.f32.mrf.mxu0
  %v616 = vadd.f32 0.0, %v615
  %v617 = vpop.f32.mrf.mxu0
  %v618 = vadd.f32 0.0, %v617
  %619 = vmatmul.bf16.gmra.mxu0 %v579
  %v620 = vpop.f32.mrf.mxu0
  %v621 = vadd.f32 0.0, %v620
  %v622 = vpop.f32.mrf.mxu0
  %v623 = vadd.f32 0.0, %v622
  %624 = vmatmul.bf16.gmra.mxu0 %v582
  %v625 = vpop.f32.mrf.mxu0
  %v626 = vadd.f32 0.0, %v625
  %v627 = vpop.f32.mrf.mxu0
  %v628 = vadd.f32 0.0, %v627
  %629 = vmatmul.bf16.gmra.mxu0 %v585
  %v630 = vpop.f32.mrf.mxu0
  %v631 = vadd.f32 0.0, %v630
  %v632 = vpop.f32.mrf.mxu0
  %v633 = vadd.f32 0.0, %v632
  %634 = vmatmul.bf16.gmra.mxu0 %v588
  %v635 = vpop.f32.mrf.mxu0
  %v636 = vadd.f32 0.0, %v635
  %v637 = vpop.f32.mrf.mxu0
  %v638 = vadd.f32 0.0, %v637
  %639 = vmatmul.bf16.gmra.mxu0 %v591
  %v640 = vpop.f32.mrf.mxu0
  %v641 = vadd.f32 0.0, %v640
  %v642 = vpop.f32.mrf.mxu0
  %v643 = vadd.f32 0.0, %v642
  %644 = vdwg.mxu0
  %v645 = vadd.f32 %v245, %v606
  %v646 = vadd.f32 %v247, %v608
  %v647 = vadd.f32 %v250, %v611
  %v648 = vadd.f32 %v252, %v613
  %v649 = vadd.f32 %v255, %v616
  %v650 = vadd.f32 %v257, %v618
  %v651 = vadd.f32 %v260, %v621
  %v652 = vadd.f32 %v262, %v623
  %v653 = vadd.f32 %v265, %v626
  %v654 = vadd.f32 %v267, %v628
  %v655 = vadd.f32 %v270, %v631
  %v656 = vadd.f32 %v272, %v633
  %v657 = vadd.f32 %v275, %v636
  %v658 = vadd.f32 %v277, %v638
  %v659 = vadd.f32 %v280, %v641
  %v660 = vadd.f32 %v282, %v643
  %s661 = scalar_lea.vmem %s0, 144
  %v662 = vld [vmem:[%s661] sm:$0xf]
  %v663 = vld [vmem:[%s661 + $0x8] sm:$0xf]
  %v664 = vld [vmem:[%s661 + $0x10] sm:$0xf]
  %v665 = vld [vmem:[%s661 + $0x18] sm:$0xf]
  %v666 = vld [vmem:[%s661 + $0x20] sm:$0xf]
  %v667 = vld [vmem:[%s661 + $0x28] sm:$0xf]
  %v668 = vld [vmem:[%s661 + $0x30] sm:$0xf]
  %v669 = vld [vmem:[%s661 + $0x38] sm:$0xf]
  %v670 = vld [vmem:[%s661 + $0x120] sm:$0xf]
  %v671 = vld [vmem:[%s661 + $0x128] sm:$0xf]
  %v672 = vld [vmem:[%s661 + $0x130] sm:$0xf]
  %v673 = vld [vmem:[%s661 + $0x138] sm:$0xf]
  %v674 = vld [vmem:[%s661 + $0x140] sm:$0xf]
  %v675 = vld [vmem:[%s661 + $0x148] sm:$0xf]
  %v676 = vld [vmem:[%s661 + $0x150] sm:$0xf]
  %v677 = vld [vmem:[%s661 + $0x158] sm:$0xf]
  %s678 = scalar_lea.vmem %s1, 6
  %v679 = vld [vmem:[%s678] sm:$0x3]
  %v696 = vunpack.c.l.b16 %v662
  %v697 = vunpack.c.l.b16 %v663
  %v698 = vunpack.c.l.b16 %v664
  %v699 = vunpack.c.l.b16 %v665
  %v700 = vunpack.c.l.b16 %v666
  %v701 = vunpack.c.l.b16 %v667
  %v702 = vunpack.c.l.b16 %v668
  %v703 = vunpack.c.l.b16 %v669
  %v704 = vunpack.c.l.b16 %v670
  %v705 = vunpack.c.l.b16 %v671
  %v706 = vunpack.c.l.b16 %v672
  %v707 = vunpack.c.l.b16 %v673
  %v708 = vunpack.c.l.b16 %v674
  %v709 = vunpack.c.l.b16 %v675
  %v710 = vunpack.c.l.b16 %v676
  %v711 = vunpack.c.l.b16 %v677
  %v712 = vpack.c.b16 %v697, %v696
  %v713 = vpack.c.b16 %v699, %v698
  %v714 = vpack.c.b16 %v701, %v700
  %v715 = vpack.c.b16 %v703, %v702
  %v716 = vpack.c.b16 %v705, %v704
  %v717 = vpack.c.b16 %v707, %v706
  %v718 = vpack.c.b16 %v709, %v708
  %v719 = vpack.c.b16 %v711, %v710
  %v721 = vsel %vm90, %v712, 0
  %v724 = vsel %vm90, %v713, 0
  %v727 = vsel %vm90, %v714, 0
  %v730 = vsel %vm90, %v715, 0
  %v733 = vsel %vm90, %v716, 0
  %v736 = vsel %vm90, %v717, 0
  %v739 = vsel %vm90, %v718, 0
  %v742 = vsel %vm90, %v719, 0
  %v745 = vsel %vm115, %v679, 0
  %747 = vmatpush.bf16.msra.mxu0 0
  %748 = vmatpush.bf16.msra.mxu0 0
  %749 = vmatpush.bf16.msra.mxu0 0
  %750 = vmatpush.bf16.msra.mxu0 0
  %751 = vmatpush.bf16.msra.mxu0 0
  %752 = vmatpush.bf16.msra.mxu0 0
  %753 = vmatpush.bf16.msra.mxu0 0
  %754 = vmatpush.bf16.msra.mxu0 %v745
  %755 = vmatmul.bf16.gmra.mxu0 %v721
  %v756 = vpop.f32.mrf.mxu0
  %v757 = vadd.f32 0.0, %v756
  %v758 = vpop.f32.mrf.mxu0
  %v759 = vadd.f32 0.0, %v758
  %760 = vmatmul.bf16.gmra.mxu0 %v724
  %v761 = vpop.f32.mrf.mxu0
  %v762 = vadd.f32 0.0, %v761
  %v763 = vpop.f32.mrf.mxu0
  %v764 = vadd.f32 0.0, %v763
  %765 = vmatmul.bf16.gmra.mxu0 %v727
  %v766 = vpop.f32.mrf.mxu0
  %v767 = vadd.f32 0.0, %v766
  %v768 = vpop.f32.mrf.mxu0
  %v769 = vadd.f32 0.0, %v768
  %770 = vmatmul.bf16.gmra.mxu0 %v730
  %v771 = vpop.f32.mrf.mxu0
  %v772 = vadd.f32 0.0, %v771
  %v773 = vpop.f32.mrf.mxu0
  %v774 = vadd.f32 0.0, %v773
  %775 = vmatmul.bf16.gmra.mxu0 %v733
  %v776 = vpop.f32.mrf.mxu0
  %v777 = vadd.f32 0.0, %v776
  %v778 = vpop.f32.mrf.mxu0
  %v779 = vadd.f32 0.0, %v778
  %780 = vmatmul.bf16.gmra.mxu0 %v736
  %v781 = vpop.f32.mrf.mxu0
  %v782 = vadd.f32 0.0, %v781
  %v783 = vpop.f32.mrf.mxu0
  %v784 = vadd.f32 0.0, %v783
  %785 = vmatmul.bf16.gmra.mxu0 %v739
  %v786 = vpop.f32.mrf.mxu0
  %v787 = vadd.f32 0.0, %v786
  %v788 = vpop.f32.mrf.mxu0
  %v789 = vadd.f32 0.0, %v788
  %790 = vmatmul.bf16.gmra.mxu0 %v742
  %v791 = vpop.f32.mrf.mxu0
  %v792 = vadd.f32 0.0, %v791
  %v793 = vpop.f32.mrf.mxu0
  %v794 = vadd.f32 0.0, %v793
  %795 = vdwg.mxu0
  %v796 = vadd.f32 %v645, %v757
  %v797 = vadd.f32 %v646, %v759
  %v798 = vadd.f32 %v647, %v762
  %v799 = vadd.f32 %v648, %v764
  %v800 = vadd.f32 %v649, %v767
  %v801 = vadd.f32 %v650, %v769
  %v802 = vadd.f32 %v651, %v772
  %v803 = vadd.f32 %v652, %v774
  %v804 = vadd.f32 %v653, %v777
  %v805 = vadd.f32 %v654, %v779
  %v806 = vadd.f32 %v655, %v782
  %v807 = vadd.f32 %v656, %v784
  %v808 = vadd.f32 %v657, %v787
  %v809 = vadd.f32 %v658, %v789
  %v810 = vadd.f32 %v659, %v792
  %v811 = vadd.f32 %v660, %v794
  %s812 = scalar_lea.vmem %s0, 216
  %v813 = vld [vmem:[%s812] sm:$0xf]
  %v814 = vld [vmem:[%s812 + $0x8] sm:$0xf]
  %v815 = vld [vmem:[%s812 + $0x10] sm:$0xf]
  %v816 = vld [vmem:[%s812 + $0x18] sm:$0xf]
  %v817 = vld [vmem:[%s812 + $0x20] sm:$0xf]
  %v818 = vld [vmem:[%s812 + $0x28] sm:$0xf]
  %v819 = vld [vmem:[%s812 + $0x30] sm:$0xf]
  %v820 = vld [vmem:[%s812 + $0x38] sm:$0xf]
  %v821 = vld [vmem:[%s812 + $0x120] sm:$0xf]
  %v822 = vld [vmem:[%s812 + $0x128] sm:$0xf]
  %v823 = vld [vmem:[%s812 + $0x130] sm:$0xf]
  %v824 = vld [vmem:[%s812 + $0x138] sm:$0xf]
  %v825 = vld [vmem:[%s812 + $0x140] sm:$0xf]
  %v826 = vld [vmem:[%s812 + $0x148] sm:$0xf]
  %v827 = vld [vmem:[%s812 + $0x150] sm:$0xf]
  %v828 = vld [vmem:[%s812 + $0x158] sm:$0xf]
  %s829 = scalar_lea.vmem %s1, 8
  %v830 = vld [vmem:[%s829] sm:$0x3]
  %v847 = vunpack.c.l.b16 %v813
  %v848 = vunpack.c.l.b16 %v814
  %v849 = vunpack.c.l.b16 %v815
  %v850 = vunpack.c.l.b16 %v816
  %v851 = vunpack.c.l.b16 %v817
  %v852 = vunpack.c.l.b16 %v818
  %v853 = vunpack.c.l.b16 %v819
  %v854 = vunpack.c.l.b16 %v820
  %v855 = vunpack.c.l.b16 %v821
  %v856 = vunpack.c.l.b16 %v822
  %v857 = vunpack.c.l.b16 %v823
  %v858 = vunpack.c.l.b16 %v824
  %v859 = vunpack.c.l.b16 %v825
  %v860 = vunpack.c.l.b16 %v826
  %v861 = vunpack.c.l.b16 %v827
  %v862 = vunpack.c.l.b16 %v828
  %v863 = vpack.c.b16 %v848, %v847
  %v864 = vpack.c.b16 %v850, %v849
  %v865 = vpack.c.b16 %v852, %v851
  %v866 = vpack.c.b16 %v854, %v853
  %v867 = vpack.c.b16 %v856, %v855
  %v868 = vpack.c.b16 %v858, %v857
  %v869 = vpack.c.b16 %v860, %v859
  %v870 = vpack.c.b16 %v862, %v861
  %v872 = vsel %vm90, %v863, 0
  %v875 = vsel %vm90, %v864, 0
  %v878 = vsel %vm90, %v865, 0
  %v881 = vsel %vm90, %v866, 0
  %v884 = vsel %vm90, %v867, 0
  %v887 = vsel %vm90, %v868, 0
  %v890 = vsel %vm90, %v869, 0
  %v893 = vsel %vm90, %v870, 0
  %v896 = vsel %vm115, %v830, 0
  %898 = vmatpush.bf16.msra.mxu0 0
  %899 = vmatpush.bf16.msra.mxu0 0
  %900 = vmatpush.bf16.msra.mxu0 0
  %901 = vmatpush.bf16.msra.mxu0 0
  %902 = vmatpush.bf16.msra.mxu0 0
  %903 = vmatpush.bf16.msra.mxu0 0
  %904 = vmatpush.bf16.msra.mxu0 0
  %905 = vmatpush.bf16.msra.mxu0 %v896
  %906 = vmatmul.bf16.gmra.mxu0 %v872
  %v907 = vpop.f32.mrf.mxu0
  %v908 = vadd.f32 0.0, %v907
  %v909 = vpop.f32.mrf.mxu0
  %v910 = vadd.f32 0.0, %v909
  %911 = vmatmul.bf16.gmra.mxu0 %v875
  %v912 = vpop.f32.mrf.mxu0
  %v913 = vadd.f32 0.0, %v912
  %v914 = vpop.f32.mrf.mxu0
  %v915 = vadd.f32 0.0, %v914
  %916 = vmatmul.bf16.gmra.mxu0 %v878
  %v917 = vpop.f32.mrf.mxu0
  %v918 = vadd.f32 0.0, %v917
  %v919 = vpop.f32.mrf.mxu0
  %v920 = vadd.f32 0.0, %v919
  %921 = vmatmul.bf16.gmra.mxu0 %v881
  %v922 = vpop.f32.mrf.mxu0
  %v923 = vadd.f32 0.0, %v922
  %v924 = vpop.f32.mrf.mxu0
  %v925 = vadd.f32 0.0, %v924
  %926 = vmatmul.bf16.gmra.mxu0 %v884
  %v927 = vpop.f32.mrf.mxu0
  %v928 = vadd.f32 0.0, %v927
  %v929 = vpop.f32.mrf.mxu0
  %v930 = vadd.f32 0.0, %v929
  %931 = vmatmul.bf16.gmra.mxu0 %v887
  %v932 = vpop.f32.mrf.mxu0
  %v933 = vadd.f32 0.0, %v932
  %v934 = vpop.f32.mrf.mxu0
  %v935 = vadd.f32 0.0, %v934
  %936 = vmatmul.bf16.gmra.mxu0 %v890
  %v937 = vpop.f32.mrf.mxu0
  %v938 = vadd.f32 0.0, %v937
  %v939 = vpop.f32.mrf.mxu0
  %v940 = vadd.f32 0.0, %v939
  %941 = vmatmul.bf16.gmra.mxu0 %v893
  %v942 = vpop.f32.mrf.mxu0
  %v943 = vadd.f32 0.0, %v942
  %v944 = vpop.f32.mrf.mxu0
  %v945 = vadd.f32 0.0, %v944
  %946 = vdwg.mxu0
  %v947 = vadd.f32 %v796, %v908
  %v948 = vadd.f32 %v797, %v910
  %v949 = vadd.f32 %v798, %v913
  %v950 = vadd.f32 %v799, %v915
  %v951 = vadd.f32 %v800, %v918
  %v952 = vadd.f32 %v801, %v920
  %v953 = vadd.f32 %v802, %v923
  %v954 = vadd.f32 %v803, %v925
  %v955 = vadd.f32 %v804, %v928
  %v956 = vadd.f32 %v805, %v930
  %v957 = vadd.f32 %v806, %v933
  %v958 = vadd.f32 %v807, %v935
  %v959 = vadd.f32 %v808, %v938
  %v960 = vadd.f32 %v809, %v940
  %v961 = vadd.f32 %v810, %v943
  %v962 = vadd.f32 %v811, %v945
  %v963 = vld [vmem:[%s661] sm:$0xf]
  %v964 = vld [vmem:[%s661 + $0x4] sm:$0x1]
  %v965 = vld [vmem:[%s661 + $0x8] sm:$0xf]
  %v966 = vld [vmem:[%s661 + $0xc] sm:$0x1]
  %v967 = vld [vmem:[%s661 + $0x10] sm:$0xf]
  %v968 = vld [vmem:[%s661 + $0x14] sm:$0x1]
  %v969 = vld [vmem:[%s661 + $0x18] sm:$0xf]
  %v970 = vld [vmem:[%s661 + $0x1c] sm:$0x1]
  %v971 = vld [vmem:[%s661 + $0x20] sm:$0xf]
  %v972 = vld [vmem:[%s661 + $0x24] sm:$0x1]
  %v973 = vld [vmem:[%s661 + $0x28] sm:$0xf]
  %v974 = vld [vmem:[%s661 + $0x2c] sm:$0x1]
  %v975 = vld [vmem:[%s661 + $0x30] sm:$0xf]
  %v976 = vld [vmem:[%s661 + $0x34] sm:$0x1]
  %v977 = vld [vmem:[%s661 + $0x38] sm:$0xf]
  %v978 = vld [vmem:[%s661 + $0x3c] sm:$0x1]
  %v979 = vld [vmem:[%s661 + $0x120] sm:$0xf]
  %v980 = vld [vmem:[%s661 + $0x124] sm:$0x1]
  %v981 = vld [vmem:[%s661 + $0x128] sm:$0xf]
  %v982 = vld [vmem:[%s661 + $0x12c] sm:$0x1]
  %v983 = vld [vmem:[%s661 + $0x130] sm:$0xf]
  %v984 = vld [vmem:[%s661 + $0x134] sm:$0x1]
  %v985 = vld [vmem:[%s661 + $0x138] sm:$0xf]
  %v986 = vld [vmem:[%s661 + $0x13c] sm:$0x1]
  %v987 = vld [vmem:[%s661 + $0x140] sm:$0xf]
  %v988 = vld [vmem:[%s661 + $0x144] sm:$0x1]
  %v989 = vld [vmem:[%s661 + $0x148] sm:$0xf]
  %v990 = vld [vmem:[%s661 + $0x14c] sm:$0x1]
  %v991 = vld [vmem:[%s661 + $0x150] sm:$0xf]
  %v992 = vld [vmem:[%s661 + $0x154] sm:$0x1]
  %v993 = vld [vmem:[%s661 + $0x158] sm:$0xf]
  %v994 = vld [vmem:[%s661 + $0x15c] sm:$0x1]
  %v996 = vshrl.u32 %v963, 16
  %v998 = vrot.slane %v996, 4
  %v999 = vshll.u32 %v963, 16
  %v1001 = vrot.slane %v999, 5
  %v1002 = vor.u32 %v998, %v1001
  %v1003 = vrot.slane %v1002, 4
  %v1005 = vshll.u32 %v964, 16
  %v1007 = vrot.slane %v1005, 5
  %v1008 = vsel %vm318, %v1003, %v1007
  %v1010 = vshrl.u32 %v965, 16
  %v1012 = vrot.slane %v1010, 4
  %v1013 = vshll.u32 %v965, 16
  %v1015 = vrot.slane %v1013, 5
  %v1016 = vor.u32 %v1012, %v1015
  %v1017 = vrot.slane %v1016, 4
  %v1019 = vshll.u32 %v966, 16
  %v1021 = vrot.slane %v1019, 5
  %v1022 = vsel %vm318, %v1017, %v1021
  %v1024 = vshrl.u32 %v967, 16
  %v1026 = vrot.slane %v1024, 4
  %v1027 = vshll.u32 %v967, 16
  %v1029 = vrot.slane %v1027, 5
  %v1030 = vor.u32 %v1026, %v1029
  %v1031 = vrot.slane %v1030, 4
  %v1033 = vshll.u32 %v968, 16
  %v1035 = vrot.slane %v1033, 5
  %v1036 = vsel %vm318, %v1031, %v1035
  %v1038 = vshrl.u32 %v969, 16
  %v1040 = vrot.slane %v1038, 4
  %v1041 = vshll.u32 %v969, 16
  %v1043 = vrot.slane %v1041, 5
  %v1044 = vor.u32 %v1040, %v1043
  %v1045 = vrot.slane %v1044, 4
  %v1047 = vshll.u32 %v970, 16
  %v1049 = vrot.slane %v1047, 5
  %v1050 = vsel %vm318, %v1045, %v1049
  %v1052 = vshrl.u32 %v971, 16
  %v1054 = vrot.slane %v1052, 4
  %v1055 = vshll.u32 %v971, 16
  %v1057 = vrot.slane %v1055, 5
  %v1058 = vor.u32 %v1054, %v1057
  %v1059 = vrot.slane %v1058, 4
  %v1061 = vshll.u32 %v972, 16
  %v1063 = vrot.slane %v1061, 5
  %v1064 = vsel %vm318, %v1059, %v1063
  %v1066 = vshrl.u32 %v973, 16
  %v1068 = vrot.slane %v1066, 4
  %v1069 = vshll.u32 %v973, 16
  %v1071 = vrot.slane %v1069, 5
  %v1072 = vor.u32 %v1068, %v1071
  %v1073 = vrot.slane %v1072, 4
  %v1075 = vshll.u32 %v974, 16
  %v1077 = vrot.slane %v1075, 5
  %v1078 = vsel %vm318, %v1073, %v1077
  %v1080 = vshrl.u32 %v975, 16
  %v1082 = vrot.slane %v1080, 4
  %v1083 = vshll.u32 %v975, 16
  %v1085 = vrot.slane %v1083, 5
  %v1086 = vor.u32 %v1082, %v1085
  %v1087 = vrot.slane %v1086, 4
  %v1089 = vshll.u32 %v976, 16
  %v1091 = vrot.slane %v1089, 5
  %v1092 = vsel %vm318, %v1087, %v1091
  %v1094 = vshrl.u32 %v977, 16
  %v1096 = vrot.slane %v1094, 4
  %v1097 = vshll.u32 %v977, 16
  %v1099 = vrot.slane %v1097, 5
  %v1100 = vor.u32 %v1096, %v1099
  %v1101 = vrot.slane %v1100, 4
  %v1103 = vshll.u32 %v978, 16
  %v1105 = vrot.slane %v1103, 5
  %v1106 = vsel %vm318, %v1101, %v1105
  %v1108 = vshrl.u32 %v979, 16
  %v1110 = vrot.slane %v1108, 4
  %v1111 = vshll.u32 %v979, 16
  %v1113 = vrot.slane %v1111, 5
  %v1114 = vor.u32 %v1110, %v1113
  %v1115 = vrot.slane %v1114, 4
  %v1117 = vshll.u32 %v980, 16
  %v1119 = vrot.slane %v1117, 5
  %v1120 = vsel %vm318, %v1115, %v1119
  %v1122 = vshrl.u32 %v981, 16
  %v1124 = vrot.slane %v1122, 4
  %v1125 = vshll.u32 %v981, 16
  %v1127 = vrot.slane %v1125, 5
  %v1128 = vor.u32 %v1124, %v1127
  %v1129 = vrot.slane %v1128, 4
  %v1131 = vshll.u32 %v982, 16
  %v1133 = vrot.slane %v1131, 5
  %v1134 = vsel %vm318, %v1129, %v1133
  %v1136 = vshrl.u32 %v983, 16
  %v1138 = vrot.slane %v1136, 4
  %v1139 = vshll.u32 %v983, 16
  %v1141 = vrot.slane %v1139, 5
  %v1142 = vor.u32 %v1138, %v1141
  %v1143 = vrot.slane %v1142, 4
  %v1145 = vshll.u32 %v984, 16
  %v1147 = vrot.slane %v1145, 5
  %v1148 = vsel %vm318, %v1143, %v1147
  %v1150 = vshrl.u32 %v985, 16
  %v1152 = vrot.slane %v1150, 4
  %v1153 = vshll.u32 %v985, 16
  %v1155 = vrot.slane %v1153, 5
  %v1156 = vor.u32 %v1152, %v1155
  %v1157 = vrot.slane %v1156, 4
  %v1159 = vshll.u32 %v986, 16
  %v1161 = vrot.slane %v1159, 5
  %v1162 = vsel %vm318, %v1157, %v1161
  %v1164 = vshrl.u32 %v987, 16
  %v1166 = vrot.slane %v1164, 4
  %v1167 = vshll.u32 %v987, 16
  %v1169 = vrot.slane %v1167, 5
  %v1170 = vor.u32 %v1166, %v1169
  %v1171 = vrot.slane %v1170, 4
  %v1173 = vshll.u32 %v988, 16
  %v1175 = vrot.slane %v1173, 5
  %v1176 = vsel %vm318, %v1171, %v1175
  %v1178 = vshrl.u32 %v989, 16
  %v1180 = vrot.slane %v1178, 4
  %v1181 = vshll.u32 %v989, 16
  %v1183 = vrot.slane %v1181, 5
  %v1184 = vor.u32 %v1180, %v1183
  %v1185 = vrot.slane %v1184, 4
  %v1187 = vshll.u32 %v990, 16
  %v1189 = vrot.slane %v1187, 5
  %v1190 = vsel %vm318, %v1185, %v1189
  %v1192 = vshrl.u32 %v991, 16
  %v1194 = vrot.slane %v1192, 4
  %v1195 = vshll.u32 %v991, 16
  %v1197 = vrot.slane %v1195, 5
  %v1198 = vor.u32 %v1194, %v1197
  %v1199 = vrot.slane %v1198, 4
  %v1201 = vshll.u32 %v992, 16
  %v1203 = vrot.slane %v1201, 5
  %v1204 = vsel %vm318, %v1199, %v1203
  %v1206 = vshrl.u32 %v993, 16
  %v1208 = vrot.slane %v1206, 4
  %v1209 = vshll.u32 %v993, 16
  %v1211 = vrot.slane %v1209, 5
  %v1212 = vor.u32 %v1208, %v1211
  %v1213 = vrot.slane %v1212, 4
  %v1215 = vshll.u32 %v994, 16
  %v1217 = vrot.slane %v1215, 5
  %v1218 = vsel %vm318, %v1213, %v1217
  %s1219 = scalar_lea.vmem %s1, 10
  %v1220 = vld [vmem:[%s1219] sm:$0x3]
  %v1221 = vunpack.c.l.b16 %v1008
  %v1222 = vunpack.c.l.b16 %v1022
  %v1223 = vunpack.c.l.b16 %v1036
  %v1224 = vunpack.c.l.b16 %v1050
  %v1225 = vunpack.c.l.b16 %v1064
  %v1226 = vunpack.c.l.b16 %v1078
  %v1227 = vunpack.c.l.b16 %v1092
  %v1228 = vunpack.c.l.b16 %v1106
  %v1229 = vunpack.c.l.b16 %v1120
  %v1230 = vunpack.c.l.b16 %v1134
  %v1231 = vunpack.c.l.b16 %v1148
  %v1232 = vunpack.c.l.b16 %v1162
  %v1233 = vunpack.c.l.b16 %v1176
  %v1234 = vunpack.c.l.b16 %v1190
  %v1235 = vunpack.c.l.b16 %v1204
  %v1236 = vunpack.c.l.b16 %v1218
  %v1237 = vpack.c.b16 %v1222, %v1221
  %v1238 = vpack.c.b16 %v1224, %v1223
  %v1239 = vpack.c.b16 %v1226, %v1225
  %v1240 = vpack.c.b16 %v1228, %v1227
  %v1241 = vpack.c.b16 %v1230, %v1229
  %v1242 = vpack.c.b16 %v1232, %v1231
  %v1243 = vpack.c.b16 %v1234, %v1233
  %v1244 = vpack.c.b16 %v1236, %v1235
  %v1246 = vsel %vm90, %v1237, 0
  %v1249 = vsel %vm90, %v1238, 0
  %v1252 = vsel %vm90, %v1239, 0
  %v1255 = vsel %vm90, %v1240, 0
  %v1258 = vsel %vm90, %v1241, 0
  %v1261 = vsel %vm90, %v1242, 0
  %v1264 = vsel %vm90, %v1243, 0
  %v1267 = vsel %vm90, %v1244, 0
  %v1270 = vsel %vm115, %v1220, 0
  %1272 = vmatpush.bf16.msra.mxu0 0
  %1273 = vmatpush.bf16.msra.mxu0 0
  %1274 = vmatpush.bf16.msra.mxu0 0
  %1275 = vmatpush.bf16.msra.mxu0 0
  %1276 = vmatpush.bf16.msra.mxu0 0
  %1277 = vmatpush.bf16.msra.mxu0 0
  %1278 = vmatpush.bf16.msra.mxu0 0
  %1279 = vmatpush.bf16.msra.mxu0 %v1270
  %1280 = vmatmul.bf16.gmra.mxu0 %v1246
  %v1281 = vpop.f32.mrf.mxu0
  %v1282 = vadd.f32 0.0, %v1281
  %v1283 = vpop.f32.mrf.mxu0
  %v1284 = vadd.f32 0.0, %v1283
  %1285 = vmatmul.bf16.gmra.mxu0 %v1249
  %v1286 = vpop.f32.mrf.mxu0
  %v1287 = vadd.f32 0.0, %v1286
  %v1288 = vpop.f32.mrf.mxu0
  %v1289 = vadd.f32 0.0, %v1288
  %1290 = vmatmul.bf16.gmra.mxu0 %v1252
  %v1291 = vpop.f32.mrf.mxu0
  %v1292 = vadd.f32 0.0, %v1291
  %v1293 = vpop.f32.mrf.mxu0
  %v1294 = vadd.f32 0.0, %v1293
  %1295 = vmatmul.bf16.gmra.mxu0 %v1255
  %v1296 = vpop.f32.mrf.mxu0
  %v1297 = vadd.f32 0.0, %v1296
  %v1298 = vpop.f32.mrf.mxu0
  %v1299 = vadd.f32 0.0, %v1298
  %1300 = vmatmul.bf16.gmra.mxu0 %v1258
  %v1301 = vpop.f32.mrf.mxu0
  %v1302 = vadd.f32 0.0, %v1301
  %v1303 = vpop.f32.mrf.mxu0
  %v1304 = vadd.f32 0.0, %v1303
  %1305 = vmatmul.bf16.gmra.mxu0 %v1261
  %v1306 = vpop.f32.mrf.mxu0
  %v1307 = vadd.f32 0.0, %v1306
  %v1308 = vpop.f32.mrf.mxu0
  %v1309 = vadd.f32 0.0, %v1308
  %1310 = vmatmul.bf16.gmra.mxu0 %v1264
  %v1311 = vpop.f32.mrf.mxu0
  %v1312 = vadd.f32 0.0, %v1311
  %v1313 = vpop.f32.mrf.mxu0
  %v1314 = vadd.f32 0.0, %v1313
  %1315 = vmatmul.bf16.gmra.mxu0 %v1267
  %v1316 = vpop.f32.mrf.mxu0
  %v1317 = vadd.f32 0.0, %v1316
  %v1318 = vpop.f32.mrf.mxu0
  %v1319 = vadd.f32 0.0, %v1318
  %1320 = vdwg.mxu0
  %v1321 = vadd.f32 %v947, %v1282
  %v1322 = vadd.f32 %v948, %v1284
  %v1323 = vadd.f32 %v949, %v1287
  %v1324 = vadd.f32 %v950, %v1289
  %v1325 = vadd.f32 %v951, %v1292
  %v1326 = vadd.f32 %v952, %v1294
  %v1327 = vadd.f32 %v953, %v1297
  %v1328 = vadd.f32 %v954, %v1299
  %v1329 = vadd.f32 %v955, %v1302
  %v1330 = vadd.f32 %v956, %v1304
  %v1331 = vadd.f32 %v957, %v1307
  %v1332 = vadd.f32 %v958, %v1309
  %v1333 = vadd.f32 %v959, %v1312
  %v1334 = vadd.f32 %v960, %v1314
  %v1335 = vadd.f32 %v961, %v1317
  %v1336 = vadd.f32 %v962, %v1319
  %s1337 = scalar_lea.vmem %s0, 8
  %v1338 = vld [vmem:[%s1337] sm:$0xf]
  %v1339 = vld [vmem:[%s1337 + $0x8] sm:$0xf]
  %v1340 = vld [vmem:[%s1337 + $0x10] sm:$0xf]
  %v1341 = vld [vmem:[%s1337 + $0x18] sm:$0xf]
  %v1342 = vld [vmem:[%s1337 + $0x20] sm:$0xf]
  %v1343 = vld [vmem:[%s1337 + $0x28] sm:$0xf]
  %v1344 = vld [vmem:[%s1337 + $0x30] sm:$0xf]
  %v1345 = vld [vmem:[%s1337 + $0x38] sm:$0xf]
  %v1346 = vld [vmem:[%s1337 + $0x120] sm:$0xf]
  %v1347 = vld [vmem:[%s1337 + $0x128] sm:$0xf]
  %v1348 = vld [vmem:[%s1337 + $0x130] sm:$0xf]
  %v1349 = vld [vmem:[%s1337 + $0x138] sm:$0xf]
  %v1350 = vld [vmem:[%s1337 + $0x140] sm:$0xf]
  %v1351 = vld [vmem:[%s1337 + $0x148] sm:$0xf]
  %v1352 = vld [vmem:[%s1337 + $0x150] sm:$0xf]
  %v1353 = vld [vmem:[%s1337 + $0x158] sm:$0xf]
  %s1354 = scalar_lea.vmem %s1, 12
  %v1355 = vld [vmem:[%s1354] sm:$0x3]
  %v1372 = vunpack.c.l.b16 %v1338
  %v1373 = vunpack.c.l.b16 %v1339
  %v1374 = vunpack.c.l.b16 %v1340
  %v1375 = vunpack.c.l.b16 %v1341
  %v1376 = vunpack.c.l.b16 %v1342
  %v1377 = vunpack.c.l.b16 %v1343
  %v1378 = vunpack.c.l.b16 %v1344
  %v1379 = vunpack.c.l.b16 %v1345
  %v1380 = vunpack.c.l.b16 %v1346
  %v1381 = vunpack.c.l.b16 %v1347
  %v1382 = vunpack.c.l.b16 %v1348
  %v1383 = vunpack.c.l.b16 %v1349
  %v1384 = vunpack.c.l.b16 %v1350
  %v1385 = vunpack.c.l.b16 %v1351
  %v1386 = vunpack.c.l.b16 %v1352
  %v1387 = vunpack.c.l.b16 %v1353
  %v1388 = vpack.c.b16 %v1373, %v1372
  %v1389 = vpack.c.b16 %v1375, %v1374
  %v1390 = vpack.c.b16 %v1377, %v1376
  %v1391 = vpack.c.b16 %v1379, %v1378
  %v1392 = vpack.c.b16 %v1381, %v1380
  %v1393 = vpack.c.b16 %v1383, %v1382
  %v1394 = vpack.c.b16 %v1385, %v1384
  %v1395 = vpack.c.b16 %v1387, %v1386
  %v1397 = vsel %vm90, %v1388, 0
  %v1400 = vsel %vm90, %v1389, 0
  %v1403 = vsel %vm90, %v1390, 0
  %v1406 = vsel %vm90, %v1391, 0
  %v1409 = vsel %vm90, %v1392, 0
  %v1412 = vsel %vm90, %v1393, 0
  %v1415 = vsel %vm90, %v1394, 0
  %v1418 = vsel %vm90, %v1395, 0
  %v1421 = vsel %vm115, %v1355, 0
  %1423 = vmatpush.bf16.msra.mxu0 0
  %1424 = vmatpush.bf16.msra.mxu0 0
  %1425 = vmatpush.bf16.msra.mxu0 0
  %1426 = vmatpush.bf16.msra.mxu0 0
  %1427 = vmatpush.bf16.msra.mxu0 0
  %1428 = vmatpush.bf16.msra.mxu0 0
  %1429 = vmatpush.bf16.msra.mxu0 0
  %1430 = vmatpush.bf16.msra.mxu0 %v1421
  %1431 = vmatmul.bf16.gmra.mxu0 %v1397
  %v1432 = vpop.f32.mrf.mxu0
  %v1433 = vadd.f32 0.0, %v1432
  %v1434 = vpop.f32.mrf.mxu0
  %v1435 = vadd.f32 0.0, %v1434
  %1436 = vmatmul.bf16.gmra.mxu0 %v1400
  %v1437 = vpop.f32.mrf.mxu0
  %v1438 = vadd.f32 0.0, %v1437
  %v1439 = vpop.f32.mrf.mxu0
  %v1440 = vadd.f32 0.0, %v1439
  %1441 = vmatmul.bf16.gmra.mxu0 %v1403
  %v1442 = vpop.f32.mrf.mxu0
  %v1443 = vadd.f32 0.0, %v1442
  %v1444 = vpop.f32.mrf.mxu0
  %v1445 = vadd.f32 0.0, %v1444
  %1446 = vmatmul.bf16.gmra.mxu0 %v1406
  %v1447 = vpop.f32.mrf.mxu0
  %v1448 = vadd.f32 0.0, %v1447
  %v1449 = vpop.f32.mrf.mxu0
  %v1450 = vadd.f32 0.0, %v1449
  %1451 = vmatmul.bf16.gmra.mxu0 %v1409
  %v1452 = vpop.f32.mrf.mxu0
  %v1453 = vadd.f32 0.0, %v1452
  %v1454 = vpop.f32.mrf.mxu0
  %v1455 = vadd.f32 0.0, %v1454
  %1456 = vmatmul.bf16.gmra.mxu0 %v1412
  %v1457 = vpop.f32.mrf.mxu0
  %v1458 = vadd.f32 0.0, %v1457
  %v1459 = vpop.f32.mrf.mxu0
  %v1460 = vadd.f32 0.0, %v1459
  %1461 = vmatmul.bf16.gmra.mxu0 %v1415
  %v1462 = vpop.f32.mrf.mxu0
  %v1463 = vadd.f32 0.0, %v1462
  %v1464 = vpop.f32.mrf.mxu0
  %v1465 = vadd.f32 0.0, %v1464
  %1466 = vmatmul.bf16.gmra.mxu0 %v1418
  %v1467 = vpop.f32.mrf.mxu0
  %v1468 = vadd.f32 0.0, %v1467
  %v1469 = vpop.f32.mrf.mxu0
  %v1470 = vadd.f32 0.0, %v1469
  %1471 = vdwg.mxu0
  %v1472 = vadd.f32 %v1321, %v1433
  %v1473 = vadd.f32 %v1322, %v1435
  %v1474 = vadd.f32 %v1323, %v1438
  %v1475 = vadd.f32 %v1324, %v1440
  %v1476 = vadd.f32 %v1325, %v1443
  %v1477 = vadd.f32 %v1326, %v1445
  %v1478 = vadd.f32 %v1327, %v1448
  %v1479 = vadd.f32 %v1328, %v1450
  %v1480 = vadd.f32 %v1329, %v1453
  %v1481 = vadd.f32 %v1330, %v1455
  %v1482 = vadd.f32 %v1331, %v1458
  %v1483 = vadd.f32 %v1332, %v1460
  %v1484 = vadd.f32 %v1333, %v1463
  %v1485 = vadd.f32 %v1334, %v1465
  %v1486 = vadd.f32 %v1335, %v1468
  %v1487 = vadd.f32 %v1336, %v1470
  %s1488 = scalar_lea.vmem %s0, 80
  %v1489 = vld [vmem:[%s1488] sm:$0xf]
  %v1490 = vld [vmem:[%s1488 + $0x8] sm:$0xf]
  %v1491 = vld [vmem:[%s1488 + $0x10] sm:$0xf]
  %v1492 = vld [vmem:[%s1488 + $0x18] sm:$0xf]
  %v1493 = vld [vmem:[%s1488 + $0x20] sm:$0xf]
  %v1494 = vld [vmem:[%s1488 + $0x28] sm:$0xf]
  %v1495 = vld [vmem:[%s1488 + $0x30] sm:$0xf]
  %v1496 = vld [vmem:[%s1488 + $0x38] sm:$0xf]
  %v1497 = vld [vmem:[%s1488 + $0x120] sm:$0xf]
  %v1498 = vld [vmem:[%s1488 + $0x128] sm:$0xf]
  %v1499 = vld [vmem:[%s1488 + $0x130] sm:$0xf]
  %v1500 = vld [vmem:[%s1488 + $0x138] sm:$0xf]
  %v1501 = vld [vmem:[%s1488 + $0x140] sm:$0xf]
  %v1502 = vld [vmem:[%s1488 + $0x148] sm:$0xf]
  %v1503 = vld [vmem:[%s1488 + $0x150] sm:$0xf]
  %v1504 = vld [vmem:[%s1488 + $0x158] sm:$0xf]
  %s1505 = scalar_lea.vmem %s1, 14
  %v1506 = vld [vmem:[%s1505] sm:$0x3]
  %v1523 = vunpack.c.l.b16 %v1489
  %v1524 = vunpack.c.l.b16 %v1490
  %v1525 = vunpack.c.l.b16 %v1491
  %v1526 = vunpack.c.l.b16 %v1492
  %v1527 = vunpack.c.l.b16 %v1493
  %v1528 = vunpack.c.l.b16 %v1494
  %v1529 = vunpack.c.l.b16 %v1495
  %v1530 = vunpack.c.l.b16 %v1496
  %v1531 = vunpack.c.l.b16 %v1497
  %v1532 = vunpack.c.l.b16 %v1498
  %v1533 = vunpack.c.l.b16 %v1499
  %v1534 = vunpack.c.l.b16 %v1500
  %v1535 = vunpack.c.l.b16 %v1501
  %v1536 = vunpack.c.l.b16 %v1502
  %v1537 = vunpack.c.l.b16 %v1503
  %v1538 = vunpack.c.l.b16 %v1504
  %v1539 = vpack.c.b16 %v1524, %v1523
  %v1540 = vpack.c.b16 %v1526, %v1525
  %v1541 = vpack.c.b16 %v1528, %v1527
  %v1542 = vpack.c.b16 %v1530, %v1529
  %v1543 = vpack.c.b16 %v1532, %v1531
  %v1544 = vpack.c.b16 %v1534, %v1533
  %v1545 = vpack.c.b16 %v1536, %v1535
  %v1546 = vpack.c.b16 %v1538, %v1537
  %v1548 = vsel %vm90, %v1539, 0
  %v1551 = vsel %vm90, %v1540, 0
  %v1554 = vsel %vm90, %v1541, 0
  %v1557 = vsel %vm90, %v1542, 0
  %v1560 = vsel %vm90, %v1543, 0
  %v1563 = vsel %vm90, %v1544, 0
  %v1566 = vsel %vm90, %v1545, 0
  %v1569 = vsel %vm90, %v1546, 0
  %v1572 = vsel %vm115, %v1506, 0
  %1574 = vmatpush.bf16.msra.mxu0 0
  %1575 = vmatpush.bf16.msra.mxu0 0
  %1576 = vmatpush.bf16.msra.mxu0 0
  %1577 = vmatpush.bf16.msra.mxu0 0
  %1578 = vmatpush.bf16.msra.mxu0 0
  %1579 = vmatpush.bf16.msra.mxu0 0
  %1580 = vmatpush.bf16.msra.mxu0 0
  %1581 = vmatpush.bf16.msra.mxu0 %v1572
  %1582 = vmatmul.bf16.gmra.mxu0 %v1548
  %v1583 = vpop.f32.mrf.mxu0
  %v1584 = vadd.f32 0.0, %v1583
  %v1585 = vpop.f32.mrf.mxu0
  %v1586 = vadd.f32 0.0, %v1585
  %1587 = vmatmul.bf16.gmra.mxu0 %v1551
  %v1588 = vpop.f32.mrf.mxu0
  %v1589 = vadd.f32 0.0, %v1588
  %v1590 = vpop.f32.mrf.mxu0
  %v1591 = vadd.f32 0.0, %v1590
  %1592 = vmatmul.bf16.gmra.mxu0 %v1554
  %v1593 = vpop.f32.mrf.mxu0
  %v1594 = vadd.f32 0.0, %v1593
  %v1595 = vpop.f32.mrf.mxu0
  %v1596 = vadd.f32 0.0, %v1595
  %1597 = vmatmul.bf16.gmra.mxu0 %v1557
  %v1598 = vpop.f32.mrf.mxu0
  %v1599 = vadd.f32 0.0, %v1598
  %v1600 = vpop.f32.mrf.mxu0
  %v1601 = vadd.f32 0.0, %v1600
  %1602 = vmatmul.bf16.gmra.mxu0 %v1560
  %v1603 = vpop.f32.mrf.mxu0
  %v1604 = vadd.f32 0.0, %v1603
  %v1605 = vpop.f32.mrf.mxu0
  %v1606 = vadd.f32 0.0, %v1605
  %1607 = vmatmul.bf16.gmra.mxu0 %v1563
  %v1608 = vpop.f32.mrf.mxu0
  %v1609 = vadd.f32 0.0, %v1608
  %v1610 = vpop.f32.mrf.mxu0
  %v1611 = vadd.f32 0.0, %v1610
  %1612 = vmatmul.bf16.gmra.mxu0 %v1566
  %v1613 = vpop.f32.mrf.mxu0
  %v1614 = vadd.f32 0.0, %v1613
  %v1615 = vpop.f32.mrf.mxu0
  %v1616 = vadd.f32 0.0, %v1615
  %1617 = vmatmul.bf16.gmra.mxu0 %v1569
  %v1618 = vpop.f32.mrf.mxu0
  %v1619 = vadd.f32 0.0, %v1618
  %v1620 = vpop.f32.mrf.mxu0
  %v1621 = vadd.f32 0.0, %v1620
  %1622 = vdwg.mxu0
  %v1623 = vadd.f32 %v1472, %v1584
  %v1624 = vadd.f32 %v1473, %v1586
  %v1625 = vadd.f32 %v1474, %v1589
  %v1626 = vadd.f32 %v1475, %v1591
  %v1627 = vadd.f32 %v1476, %v1594
  %v1628 = vadd.f32 %v1477, %v1596
  %v1629 = vadd.f32 %v1478, %v1599
  %v1630 = vadd.f32 %v1479, %v1601
  %v1631 = vadd.f32 %v1480, %v1604
  %v1632 = vadd.f32 %v1481, %v1606
  %v1633 = vadd.f32 %v1482, %v1609
  %v1634 = vadd.f32 %v1483, %v1611
  %v1635 = vadd.f32 %v1484, %v1614
  %v1636 = vadd.f32 %v1485, %v1616
  %v1637 = vadd.f32 %v1486, %v1619
  %v1638 = vadd.f32 %v1487, %v1621
  %v1639 = vld [vmem:[%s1337] sm:$0xf]
  %v1640 = vld [vmem:[%s1337 + $0x4] sm:$0x1]
  %v1641 = vld [vmem:[%s1337 + $0x8] sm:$0xf]
  %v1642 = vld [vmem:[%s1337 + $0xc] sm:$0x1]
  %v1643 = vld [vmem:[%s1337 + $0x10] sm:$0xf]
  %v1644 = vld [vmem:[%s1337 + $0x14] sm:$0x1]
  %v1645 = vld [vmem:[%s1337 + $0x18] sm:$0xf]
  %v1646 = vld [vmem:[%s1337 + $0x1c] sm:$0x1]
  %v1647 = vld [vmem:[%s1337 + $0x20] sm:$0xf]
  %v1648 = vld [vmem:[%s1337 + $0x24] sm:$0x1]
  %v1649 = vld [vmem:[%s1337 + $0x28] sm:$0xf]
  %v1650 = vld [vmem:[%s1337 + $0x2c] sm:$0x1]
  %v1651 = vld [vmem:[%s1337 + $0x30] sm:$0xf]
  %v1652 = vld [vmem:[%s1337 + $0x34] sm:$0x1]
  %v1653 = vld [vmem:[%s1337 + $0x38] sm:$0xf]
  %v1654 = vld [vmem:[%s1337 + $0x3c] sm:$0x1]
  %v1655 = vld [vmem:[%s1337 + $0x120] sm:$0xf]
  %v1656 = vld [vmem:[%s1337 + $0x124] sm:$0x1]
  %v1657 = vld [vmem:[%s1337 + $0x128] sm:$0xf]
  %v1658 = vld [vmem:[%s1337 + $0x12c] sm:$0x1]
  %v1659 = vld [vmem:[%s1337 + $0x130] sm:$0xf]
  %v1660 = vld [vmem:[%s1337 + $0x134] sm:$0x1]
  %v1661 = vld [vmem:[%s1337 + $0x138] sm:$0xf]
  %v1662 = vld [vmem:[%s1337 + $0x13c] sm:$0x1]
  %v1663 = vld [vmem:[%s1337 + $0x140] sm:$0xf]
  %v1664 = vld [vmem:[%s1337 + $0x144] sm:$0x1]
  %v1665 = vld [vmem:[%s1337 + $0x148] sm:$0xf]
  %v1666 = vld [vmem:[%s1337 + $0x14c] sm:$0x1]
  %v1667 = vld [vmem:[%s1337 + $0x150] sm:$0xf]
  %v1668 = vld [vmem:[%s1337 + $0x154] sm:$0x1]
  %v1669 = vld [vmem:[%s1337 + $0x158] sm:$0xf]
  %v1670 = vld [vmem:[%s1337 + $0x15c] sm:$0x1]
  %v1672 = vshrl.u32 %v1639, 16
  %v1674 = vrot.slane %v1672, 4
  %v1675 = vshll.u32 %v1639, 16
  %v1677 = vrot.slane %v1675, 5
  %v1678 = vor.u32 %v1674, %v1677
  %v1679 = vrot.slane %v1678, 4
  %v1681 = vshll.u32 %v1640, 16
  %v1683 = vrot.slane %v1681, 5
  %v1684 = vsel %vm318, %v1679, %v1683
  %v1686 = vshrl.u32 %v1641, 16
  %v1688 = vrot.slane %v1686, 4
  %v1689 = vshll.u32 %v1641, 16
  %v1691 = vrot.slane %v1689, 5
  %v1692 = vor.u32 %v1688, %v1691
  %v1693 = vrot.slane %v1692, 4
  %v1695 = vshll.u32 %v1642, 16
  %v1697 = vrot.slane %v1695, 5
  %v1698 = vsel %vm318, %v1693, %v1697
  %v1700 = vshrl.u32 %v1643, 16
  %v1702 = vrot.slane %v1700, 4
  %v1703 = vshll.u32 %v1643, 16
  %v1705 = vrot.slane %v1703, 5
  %v1706 = vor.u32 %v1702, %v1705
  %v1707 = vrot.slane %v1706, 4
  %v1709 = vshll.u32 %v1644, 16
  %v1711 = vrot.slane %v1709, 5
  %v1712 = vsel %vm318, %v1707, %v1711
  %v1714 = vshrl.u32 %v1645, 16
  %v1716 = vrot.slane %v1714, 4
  %v1717 = vshll.u32 %v1645, 16
  %v1719 = vrot.slane %v1717, 5
  %v1720 = vor.u32 %v1716, %v1719
  %v1721 = vrot.slane %v1720, 4
  %v1723 = vshll.u32 %v1646, 16
  %v1725 = vrot.slane %v1723, 5
  %v1726 = vsel %vm318, %v1721, %v1725
  %v1728 = vshrl.u32 %v1647, 16
  %v1730 = vrot.slane %v1728, 4
  %v1731 = vshll.u32 %v1647, 16
  %v1733 = vrot.slane %v1731, 5
  %v1734 = vor.u32 %v1730, %v1733
  %v1735 = vrot.slane %v1734, 4
  %v1737 = vshll.u32 %v1648, 16
  %v1739 = vrot.slane %v1737, 5
  %v1740 = vsel %vm318, %v1735, %v1739
  %v1742 = vshrl.u32 %v1649, 16
  %v1744 = vrot.slane %v1742, 4
  %v1745 = vshll.u32 %v1649, 16
  %v1747 = vrot.slane %v1745, 5
  %v1748 = vor.u32 %v1744, %v1747
  %v1749 = vrot.slane %v1748, 4
  %v1751 = vshll.u32 %v1650, 16
  %v1753 = vrot.slane %v1751, 5
  %v1754 = vsel %vm318, %v1749, %v1753
  %v1756 = vshrl.u32 %v1651, 16
  %v1758 = vrot.slane %v1756, 4
  %v1759 = vshll.u32 %v1651, 16
  %v1761 = vrot.slane %v1759, 5
  %v1762 = vor.u32 %v1758, %v1761
  %v1763 = vrot.slane %v1762, 4
  %v1765 = vshll.u32 %v1652, 16
  %v1767 = vrot.slane %v1765, 5
  %v1768 = vsel %vm318, %v1763, %v1767
  %v1770 = vshrl.u32 %v1653, 16
  %v1772 = vrot.slane %v1770, 4
  %v1773 = vshll.u32 %v1653, 16
  %v1775 = vrot.slane %v1773, 5
  %v1776 = vor.u32 %v1772, %v1775
  %v1777 = vrot.slane %v1776, 4
  %v1779 = vshll.u32 %v1654, 16
  %v1781 = vrot.slane %v1779, 5
  %v1782 = vsel %vm318, %v1777, %v1781
  %v1784 = vshrl.u32 %v1655, 16
  %v1786 = vrot.slane %v1784, 4
  %v1787 = vshll.u32 %v1655, 16
  %v1789 = vrot.slane %v1787, 5
  %v1790 = vor.u32 %v1786, %v1789
  %v1791 = vrot.slane %v1790, 4
  %v1793 = vshll.u32 %v1656, 16
  %v1795 = vrot.slane %v1793, 5
  %v1796 = vsel %vm318, %v1791, %v1795
  %v1798 = vshrl.u32 %v1657, 16
  %v1800 = vrot.slane %v1798, 4
  %v1801 = vshll.u32 %v1657, 16
  %v1803 = vrot.slane %v1801, 5
  %v1804 = vor.u32 %v1800, %v1803
  %v1805 = vrot.slane %v1804, 4
  %v1807 = vshll.u32 %v1658, 16
  %v1809 = vrot.slane %v1807, 5
  %v1810 = vsel %vm318, %v1805, %v1809
  %v1812 = vshrl.u32 %v1659, 16
  %v1814 = vrot.slane %v1812, 4
  %v1815 = vshll.u32 %v1659, 16
  %v1817 = vrot.slane %v1815, 5
  %v1818 = vor.u32 %v1814, %v1817
  %v1819 = vrot.slane %v1818, 4
  %v1821 = vshll.u32 %v1660, 16
  %v1823 = vrot.slane %v1821, 5
  %v1824 = vsel %vm318, %v1819, %v1823
  %v1826 = vshrl.u32 %v1661, 16
  %v1828 = vrot.slane %v1826, 4
  %v1829 = vshll.u32 %v1661, 16
  %v1831 = vrot.slane %v1829, 5
  %v1832 = vor.u32 %v1828, %v1831
  %v1833 = vrot.slane %v1832, 4
  %v1835 = vshll.u32 %v1662, 16
  %v1837 = vrot.slane %v1835, 5
  %v1838 = vsel %vm318, %v1833, %v1837
  %v1840 = vshrl.u32 %v1663, 16
  %v1842 = vrot.slane %v1840, 4
  %v1843 = vshll.u32 %v1663, 16
  %v1845 = vrot.slane %v1843, 5
  %v1846 = vor.u32 %v1842, %v1845
  %v1847 = vrot.slane %v1846, 4
  %v1849 = vshll.u32 %v1664, 16
  %v1851 = vrot.slane %v1849, 5
  %v1852 = vsel %vm318, %v1847, %v1851
  %v1854 = vshrl.u32 %v1665, 16
  %v1856 = vrot.slane %v1854, 4
  %v1857 = vshll.u32 %v1665, 16
  %v1859 = vrot.slane %v1857, 5
  %v1860 = vor.u32 %v1856, %v1859
  %v1861 = vrot.slane %v1860, 4
  %v1863 = vshll.u32 %v1666, 16
  %v1865 = vrot.slane %v1863, 5
  %v1866 = vsel %vm318, %v1861, %v1865
  %v1868 = vshrl.u32 %v1667, 16
  %v1870 = vrot.slane %v1868, 4
  %v1871 = vshll.u32 %v1667, 16
  %v1873 = vrot.slane %v1871, 5
  %v1874 = vor.u32 %v1870, %v1873
  %v1875 = vrot.slane %v1874, 4
  %v1877 = vshll.u32 %v1668, 16
  %v1879 = vrot.slane %v1877, 5
  %v1880 = vsel %vm318, %v1875, %v1879
  %v1882 = vshrl.u32 %v1669, 16
  %v1884 = vrot.slane %v1882, 4
  %v1885 = vshll.u32 %v1669, 16
  %v1887 = vrot.slane %v1885, 5
  %v1888 = vor.u32 %v1884, %v1887
  %v1889 = vrot.slane %v1888, 4
  %v1891 = vshll.u32 %v1670, 16
  %v1893 = vrot.slane %v1891, 5
  %v1894 = vsel %vm318, %v1889, %v1893
  %s1895 = scalar_lea.vmem %s1, 16
  %v1896 = vld [vmem:[%s1895] sm:$0x3]
  %v1897 = vunpack.c.l.b16 %v1684
  %v1898 = vunpack.c.l.b16 %v1698
  %v1899 = vunpack.c.l.b16 %v1712
  %v1900 = vunpack.c.l.b16 %v1726
  %v1901 = vunpack.c.l.b16 %v1740
  %v1902 = vunpack.c.l.b16 %v1754
  %v1903 = vunpack.c.l.b16 %v1768
  %v1904 = vunpack.c.l.b16 %v1782
  %v1905 = vunpack.c.l.b16 %v1796
  %v1906 = vunpack.c.l.b16 %v1810
  %v1907 = vunpack.c.l.b16 %v1824
  %v1908 = vunpack.c.l.b16 %v1838
  %v1909 = vunpack.c.l.b16 %v1852
  %v1910 = vunpack.c.l.b16 %v1866
  %v1911 = vunpack.c.l.b16 %v1880
  %v1912 = vunpack.c.l.b16 %v1894
  %v1913 = vpack.c.b16 %v1898, %v1897
  %v1914 = vpack.c.b16 %v1900, %v1899
  %v1915 = vpack.c.b16 %v1902, %v1901
  %v1916 = vpack.c.b16 %v1904, %v1903
  %v1917 = vpack.c.b16 %v1906, %v1905
  %v1918 = vpack.c.b16 %v1908, %v1907
  %v1919 = vpack.c.b16 %v1910, %v1909
  %v1920 = vpack.c.b16 %v1912, %v1911
  %v1922 = vsel %vm90, %v1913, 0
  %v1925 = vsel %vm90, %v1914, 0
  %v1928 = vsel %vm90, %v1915, 0
  %v1931 = vsel %vm90, %v1916, 0
  %v1934 = vsel %vm90, %v1917, 0
  %v1937 = vsel %vm90, %v1918, 0
  %v1940 = vsel %vm90, %v1919, 0
  %v1943 = vsel %vm90, %v1920, 0
  %v1946 = vsel %vm115, %v1896, 0
  %1948 = vmatpush.bf16.msra.mxu0 0
  %1949 = vmatpush.bf16.msra.mxu0 0
  %1950 = vmatpush.bf16.msra.mxu0 0
  %1951 = vmatpush.bf16.msra.mxu0 0
  %1952 = vmatpush.bf16.msra.mxu0 0
  %1953 = vmatpush.bf16.msra.mxu0 0
  %1954 = vmatpush.bf16.msra.mxu0 0
  %1955 = vmatpush.bf16.msra.mxu0 %v1946
  %1956 = vmatmul.bf16.gmra.mxu0 %v1922
  %v1957 = vpop.f32.mrf.mxu0
  %v1958 = vadd.f32 0.0, %v1957
  %v1959 = vpop.f32.mrf.mxu0
  %v1960 = vadd.f32 0.0, %v1959
  %1961 = vmatmul.bf16.gmra.mxu0 %v1925
  %v1962 = vpop.f32.mrf.mxu0
  %v1963 = vadd.f32 0.0, %v1962
  %v1964 = vpop.f32.mrf.mxu0
  %v1965 = vadd.f32 0.0, %v1964
  %1966 = vmatmul.bf16.gmra.mxu0 %v1928
  %v1967 = vpop.f32.mrf.mxu0
  %v1968 = vadd.f32 0.0, %v1967
  %v1969 = vpop.f32.mrf.mxu0
  %v1970 = vadd.f32 0.0, %v1969
  %1971 = vmatmul.bf16.gmra.mxu0 %v1931
  %v1972 = vpop.f32.mrf.mxu0
  %v1973 = vadd.f32 0.0, %v1972
  %v1974 = vpop.f32.mrf.mxu0
  %v1975 = vadd.f32 0.0, %v1974
  %1976 = vmatmul.bf16.gmra.mxu0 %v1934
  %v1977 = vpop.f32.mrf.mxu0
  %v1978 = vadd.f32 0.0, %v1977
  %v1979 = vpop.f32.mrf.mxu0
  %v1980 = vadd.f32 0.0, %v1979
  %1981 = vmatmul.bf16.gmra.mxu0 %v1937
  %v1982 = vpop.f32.mrf.mxu0
  %v1983 = vadd.f32 0.0, %v1982
  %v1984 = vpop.f32.mrf.mxu0
  %v1985 = vadd.f32 0.0, %v1984
  %1986 = vmatmul.bf16.gmra.mxu0 %v1940
  %v1987 = vpop.f32.mrf.mxu0
  %v1988 = vadd.f32 0.0, %v1987
  %v1989 = vpop.f32.mrf.mxu0
  %v1990 = vadd.f32 0.0, %v1989
  %1991 = vmatmul.bf16.gmra.mxu0 %v1943
  %v1992 = vpop.f32.mrf.mxu0
  %v1993 = vadd.f32 0.0, %v1992
  %v1994 = vpop.f32.mrf.mxu0
  %v1995 = vadd.f32 0.0, %v1994
  %1996 = vdwg.mxu0
  %v1997 = vadd.f32 %v1623, %v1958
  %v1998 = vadd.f32 %v1624, %v1960
  %v1999 = vadd.f32 %v1625, %v1963
  %v2000 = vadd.f32 %v1626, %v1965
  %v2001 = vadd.f32 %v1627, %v1968
  %v2002 = vadd.f32 %v1628, %v1970
  %v2003 = vadd.f32 %v1629, %v1973
  %v2004 = vadd.f32 %v1630, %v1975
  %v2005 = vadd.f32 %v1631, %v1978
  %v2006 = vadd.f32 %v1632, %v1980
  %v2007 = vadd.f32 %v1633, %v1983
  %v2008 = vadd.f32 %v1634, %v1985
  %v2009 = vadd.f32 %v1635, %v1988
  %v2010 = vadd.f32 %v1636, %v1990
  %v2011 = vadd.f32 %v1637, %v1993
  %v2012 = vadd.f32 %v1638, %v1995
  %v2013 = vpack.c.bf16 %v1997, %v1997
  %v2014 = vpack.c.bf16 %v1998, %v1998
  %v2015 = vpack.c.bf16 %v1999, %v1999
  %v2016 = vpack.c.bf16 %v2000, %v2000
  %v2017 = vpack.c.bf16 %v2001, %v2001
  %v2018 = vpack.c.bf16 %v2002, %v2002
  %v2019 = vpack.c.bf16 %v2003, %v2003
  %v2020 = vpack.c.bf16 %v2004, %v2004
  %v2021 = vpack.c.bf16 %v2005, %v2005
  %v2022 = vpack.c.bf16 %v2006, %v2006
  %v2023 = vpack.c.bf16 %v2007, %v2007
  %v2024 = vpack.c.bf16 %v2008, %v2008
  %v2025 = vpack.c.bf16 %v2009, %v2009
  %v2026 = vpack.c.bf16 %v2010, %v2010
  %v2027 = vpack.c.bf16 %v2011, %v2011
  %v2028 = vpack.c.bf16 %v2012, %v2012
  %2029 = vst [vmem:[%s2] sm:$0xf] %v2013
  %2030 = vst [vmem:[%s2 + $0x4] sm:$0xf] %v2014
  %2031 = vst [vmem:[%s2 + $0x8] sm:$0xf] %v2015
  %2032 = vst [vmem:[%s2 + $0xc] sm:$0xf] %v2016
  %2033 = vst [vmem:[%s2 + $0x10] sm:$0xf] %v2017
  %2034 = vst [vmem:[%s2 + $0x14] sm:$0xf] %v2018
  %2035 = vst [vmem:[%s2 + $0x18] sm:$0xf] %v2019
  %2036 = vst [vmem:[%s2 + $0x1c] sm:$0xf] %v2020
  %2037 = vst [vmem:[%s2 + $0x20] sm:$0xf] %v2021
  %2038 = vst [vmem:[%s2 + $0x24] sm:$0xf] %v2022
  %2039 = vst [vmem:[%s2 + $0x28] sm:$0xf] %v2023
  %2040 = vst [vmem:[%s2 + $0x2c] sm:$0xf] %v2024
  %2041 = vst [vmem:[%s2 + $0x30] sm:$0xf] %v2025
  %2042 = vst [vmem:[%s2 + $0x34] sm:$0xf] %v2026
  %2043 = vst [vmem:[%s2 + $0x38] sm:$0xf] %v2027
  %2044 = vst [vmem:[%s2 + $0x3c] sm:$0xf] %v2028
  %v2045 = vadd.f32 %v1997, %v1998
  %v2046 = vadd.f32 %v2045, %v1999
  %v2047 = vadd.f32 %v2046, %v2000
  %v2048 = vadd.f32 %v2047, %v2001
  %v2049 = vadd.f32 %v2048, %v2002
  %v2050 = vadd.f32 %v2049, %v2003
  %v2051 = vadd.f32 %v2050, %v2004
  %v2052 = vadd.f32 %v2051, %v2005
  %v2053 = vadd.f32 %v2052, %v2006
  %v2054 = vadd.f32 %v2053, %v2007
  %v2055 = vadd.f32 %v2054, %v2008
  %v2056 = vadd.f32 %v2055, %v2009
  %v2057 = vadd.f32 %v2056, %v2010
  %v2058 = vadd.f32 %v2057, %v2011
  %v2059 = vadd.f32 %v2058, %v2012
  %v2060 = vrot.slane %v2059, 4
  %v2061 = vadd.f32 %v2059, %v2060
  %v2062 = vrot.slane %v2061, 2
  %v2063 = vadd.f32 %v2061, %v2062
  %v2064 = vrot.slane %v2063, 1
  %v2065 = vadd.f32 %v2063, %v2064
  %v2066 = vmul.f32 %v2065, 0.0078125
  %v2067 = vsub.f32 %v1997, %v2066
  %v2068 = vsub.f32 %v1998, %v2066
  %v2069 = vsub.f32 %v1999, %v2066
  %v2070 = vsub.f32 %v2000, %v2066
  %v2071 = vsub.f32 %v2001, %v2066
  %v2072 = vsub.f32 %v2002, %v2066
  %v2073 = vsub.f32 %v2003, %v2066
  %v2074 = vsub.f32 %v2004, %v2066
  %v2075 = vsub.f32 %v2005, %v2066
  %v2076 = vsub.f32 %v2006, %v2066
  %v2077 = vsub.f32 %v2007, %v2066
  %v2078 = vsub.f32 %v2008, %v2066
  %v2079 = vsub.f32 %v2009, %v2066
  %v2080 = vsub.f32 %v2010, %v2066
  %v2081 = vsub.f32 %v2011, %v2066
  %v2082 = vsub.f32 %v2012, %v2066
  %v2083 = vmul.f32 %v2067, %v2067
  %v2084 = vmul.f32 %v2068, %v2068
  %v2085 = vmul.f32 %v2069, %v2069
  %v2086 = vmul.f32 %v2070, %v2070
  %v2087 = vmul.f32 %v2071, %v2071
  %v2088 = vmul.f32 %v2072, %v2072
  %v2089 = vmul.f32 %v2073, %v2073
  %v2090 = vmul.f32 %v2074, %v2074
  %v2091 = vmul.f32 %v2075, %v2075
  %v2092 = vmul.f32 %v2076, %v2076
  %v2093 = vmul.f32 %v2077, %v2077
  %v2094 = vmul.f32 %v2078, %v2078
  %v2095 = vmul.f32 %v2079, %v2079
  %v2096 = vmul.f32 %v2080, %v2080
  %v2097 = vmul.f32 %v2081, %v2081
  %v2098 = vmul.f32 %v2082, %v2082
  %v2099 = vadd.f32 %v2083, %v2084
  %v2100 = vadd.f32 %v2099, %v2085
  %v2101 = vadd.f32 %v2100, %v2086
  %v2102 = vadd.f32 %v2101, %v2087
  %v2103 = vadd.f32 %v2102, %v2088
  %v2104 = vadd.f32 %v2103, %v2089
  %v2105 = vadd.f32 %v2104, %v2090
  %v2106 = vadd.f32 %v2105, %v2091
  %v2107 = vadd.f32 %v2106, %v2092
  %v2108 = vadd.f32 %v2107, %v2093
  %v2109 = vadd.f32 %v2108, %v2094
  %v2110 = vadd.f32 %v2109, %v2095
  %v2111 = vadd.f32 %v2110, %v2096
  %v2112 = vadd.f32 %v2111, %v2097
  %v2113 = vadd.f32 %v2112, %v2098
  %v2114 = vrot.slane %v2113, 4
  %v2115 = vadd.f32 %v2113, %v2114
  %v2116 = vrot.slane %v2115, 2
  %v2117 = vadd.f32 %v2115, %v2116
  %v2118 = vrot.slane %v2117, 1
  %v2119 = vadd.f32 %v2117, %v2118
  %vm2120 = vcmask 1040384
  %v2121 = vsel %vm2120, %v2066, %v2119
  %2122 = vst [vmem:[%s3] sm:$0x3] %v2121
  // Predicated region
  $region10: #{unet_central_block.4} parent=0 // pred_check
    _
  $region11: #{unet_central_block.4} parent=0 // pred_check_branch
    %2124 = sbr.rel (0) target = $region13
  $region12: #{unet_central_block.4} parent=0 // pred_region
    _
  $region13: #{unet_central_block.4} parent=0 // pred_fallthru
    _
  // Predicated region
  $region14: #{unet_central_block.4} parent=0 // pred_check
    _
  $region15: #{unet_central_block.4} parent=0 // pred_check_branch
    %2126 = sbr.rel (0) target = $region17
  $region16: #{unet_central_block.4} parent=0 // pred_region
    _
  $region17: #{unet_central_block.4} parent=0 // pred_fallthru
    _
  // Predicated region
  $region18: #{unet_central_block.4} parent=0 // pred_check
    _
  $region19: #{unet_central_block.4} parent=0 // pred_check_branch
    %2128 = sbr.rel (0) target = $region21
  $region20: #{unet_central_block.4} parent=0 // pred_region
    _
  $region21: #{unet_central_block.4} parent=0 // pred_fallthru
    _
  // Predicated region
  $region22: #{unet_central_block.4} parent=0 // pred_check
    _
  $region23: #{unet_central_block.4} parent=0 // pred_check_branch
    %2130 = sbr.rel (0) target = $region25
  $region24: #{unet_central_block.4} parent=0 // pred_region
    _
  $region25: #{unet_central_block.4} parent=0 // pred_fallthru
    _

// kernel: unet_central_block.6
$region0: #{unet_central_block.6}
  #allocation0 [shape = 'u32[]', space=smem, size = 0x4, offset = 0x4, fixed_abs, tag = 'smem constant byte address 0x4 - core index']
  #allocation1 [shape = 'u32[72,128]{1,0:T(1,128)}', space=vmem, size = 0x9000, scoped, tag = 'internal scratch']
  %s0 = inlined_call_operand.vmem [shape: bf16[2,10,10,128], index: 0, kind: input, shape index: {}]
  %s1 = inlined_call_operand.vmem [shape: bf16[9,128,128], index: 1, kind: input, shape index: {}]
  %s2 = inlined_call_operand.vmem [shape: bf16[128,128], index: 2, kind: output, shape index: {0}]
  %s3 = inlined_call_operand.vmem [shape: f32[1,2,128], index: 3, kind: output, shape index: {1}]
  %4 = xla_tuple %s2, %s3
  %s5 = sld [smem:[#allocation0]]
  $region26: #{unet_central_block.6} parent=0
    _
  %s7 = ssub.s32 1, %s5
  %s8 = scalar_select 0, %s7, %s5
  // Predicated region
  $region2: #{unet_central_block.6} parent=0 // pred_check
    _
  $region3: #{unet_central_block.6} parent=0 // pred_check_branch
    %10 = sbr.rel (0) target = $region5
  $region4: #{unet_central_block.6} parent=0 // pred_region
    _
  $region5: #{unet_central_block.6} parent=0 // pred_fallthru
    _
  // Predicated region
  $region6: #{unet_central_block.6} parent=0 // pred_check
    _
  $region7: #{unet_central_block.6} parent=0 // pred_check_branch
    %12 = sbr.rel (0) target = $region9
  $region8: #{unet_central_block.6} parent=0 // pred_region
    _
  $region9: #{unet_central_block.6} parent=0 // pred_fallthru
    _
  %v13 = vld [vmem:[%s0] sm:$0xf]
  %v14 = vld [vmem:[%s0 + $0x8] sm:$0xf]
  %v15 = vld [vmem:[%s0 + $0x10] sm:$0xf]
  %v16 = vld [vmem:[%s0 + $0x18] sm:$0xf]
  %v17 = vld [vmem:[%s0 + $0x20] sm:$0xf]
  %v18 = vld [vmem:[%s0 + $0x28] sm:$0xf]
  %v19 = vld [vmem:[%s0 + $0x30] sm:$0xf]
  %v20 = vld [vmem:[%s0 + $0x38] sm:$0xf]
  %v21 = vld [vmem:[%s0 + $0x50] sm:$0xf]
  %v22 = vld [vmem:[%s0 + $0x58] sm:$0xf]
  %v23 = vld [vmem:[%s0 + $0x60] sm:$0xf]
  %v24 = vld [vmem:[%s0 + $0x68] sm:$0xf]
  %v25 = vld [vmem:[%s0 + $0x70] sm:$0xf]
  %v26 = vld [vmem:[%s0 + $0x78] sm:$0xf]
  %v27 = vld [vmem:[%s0 + $0x80] sm:$0xf]
  %v28 = vld [vmem:[%s0 + $0x88] sm:$0xf]
  %v29 = vld [vmem:[%s1] sm:$0xf]
  %v30 = vld [vmem:[%s1 + $0x4] sm:$0xf]
  %v31 = vld [vmem:[%s1 + $0x8] sm:$0xf]
  %v32 = vld [vmem:[%s1 + $0xc] sm:$0xf]
  %v33 = vld [vmem:[%s1 + $0x10] sm:$0xf]
  %v34 = vld [vmem:[%s1 + $0x14] sm:$0xf]
  %v35 = vld [vmem:[%s1 + $0x18] sm:$0xf]
  %v36 = vld [vmem:[%s1 + $0x1c] sm:$0xf]
  %v37 = vld [vmem:[%s1 + $0x20] sm:$0xf]
  %v38 = vld [vmem:[%s1 + $0x24] sm:$0xf]
  %v39 = vld [vmem:[%s1 + $0x28] sm:$0xf]
  %v40 = vld [vmem:[%s1 + $0x2c] sm:$0xf]
  %v41 = vld [vmem:[%s1 + $0x30] sm:$0xf]
  %v42 = vld [vmem:[%s1 + $0x34] sm:$0xf]
  %v43 = vld [vmem:[%s1 + $0x38] sm:$0xf]
  %v44 = vld [vmem:[%s1 + $0x3c] sm:$0xf]
  %v45 = vld [vmem:[%s0 + $0x4] sm:$0x1]
  %v46 = vld [vmem:[%s0 + $0xc] sm:$0x1]
  %v47 = vld [vmem:[%s0 + $0x14] sm:$0x1]
  %v48 = vld [vmem:[%s0 + $0x1c] sm:$0x1]
  %v49 = vld [vmem:[%s0 + $0x24] sm:$0x1]
  %v50 = vld [vmem:[%s0 + $0x2c] sm:$0x1]
  %v51 = vld [vmem:[%s0 + $0x34] sm:$0x1]
  %v52 = vld [vmem:[%s0 + $0x3c] sm:$0x1]
  %v53 = vld [vmem:[%s0 + $0x54] sm:$0x1]
  %v54 = vld [vmem:[%s0 + $0x5c] sm:$0x1]
  %v55 = vld [vmem:[%s0 + $0x64] sm:$0x1]
  %v56 = vld [vmem:[%s0 + $0x6c] sm:$0x1]
  %v57 = vld [vmem:[%s0 + $0x74] sm:$0x1]
  %v58 = vld [vmem:[%s0 + $0x7c] sm:$0x1]
  %v59 = vld [vmem:[%s0 + $0x84] sm:$0x1]
  %v60 = vld [vmem:[%s0 + $0x8c] sm:$0x1]
  %vm61 = vsmask.f32 3328
  %vm62 = vsmask.f32 7440
  %vm63 = vmor %vm61, %vm62
  %v65 = vshrl.u32 %v13, 16
  %v67 = vrot.slane %v65, 4
  %v68 = vshll.u32 %v13, 16
  %v70 = vrot.slane %v68, 5
  %v71 = vor.u32 %v67, %v70
  %v72 = vrot.slane %v71, 4
  %v74 = vshll.u32 %v45, 16
  %v76 = vrot.slane %v74, 5
  %v77 = vsel %vm63, %v72, %v76
  %v79 = vshrl.u32 %v14, 16
  %v81 = vrot.slane %v79, 4
  %v82 = vshll.u32 %v14, 16
  %v84 = vrot.slane %v82, 5
  %v85 = vor.u32 %v81, %v84
  %v86 = vrot.slane %v85, 4
  %v88 = vshll.u32 %v46, 16
  %v90 = vrot.slane %v88, 5
  %v91 = vsel %vm63, %v86, %v90
  %v93 = vshrl.u32 %v15, 16
  %v95 = vrot.slane %v93, 4
  %v96 = vshll.u32 %v15, 16
  %v98 = vrot.slane %v96, 5
  %v99 = vor.u32 %v95, %v98
  %v100 = vrot.slane %v99, 4
  %v102 = vshll.u32 %v47, 16
  %v104 = vrot.slane %v102, 5
  %v105 = vsel %vm63, %v100, %v104
  %v107 = vshrl.u32 %v16, 16
  %v109 = vrot.slane %v107, 4
  %v110 = vshll.u32 %v16, 16
  %v112 = vrot.slane %v110, 5
  %v113 = vor.u32 %v109, %v112
  %v114 = vrot.slane %v113, 4
  %v116 = vshll.u32 %v48, 16
  %v118 = vrot.slane %v116, 5
  %v119 = vsel %vm63, %v114, %v118
  %v121 = vshrl.u32 %v17, 16
  %v123 = vrot.slane %v121, 4
  %v124 = vshll.u32 %v17, 16
  %v126 = vrot.slane %v124, 5
  %v127 = vor.u32 %v123, %v126
  %v128 = vrot.slane %v127, 4
  %v130 = vshll.u32 %v49, 16
  %v132 = vrot.slane %v130, 5
  %v133 = vsel %vm63, %v128, %v132
  %v135 = vshrl.u32 %v18, 16
  %v137 = vrot.slane %v135, 4
  %v138 = vshll.u32 %v18, 16
  %v140 = vrot.slane %v138, 5
  %v141 = vor.u32 %v137, %v140
  %v142 = vrot.slane %v141, 4
  %v144 = vshll.u32 %v50, 16
  %v146 = vrot.slane %v144, 5
  %v147 = vsel %vm63, %v142, %v146
  %v149 = vshrl.u32 %v19, 16
  %v151 = vrot.slane %v149, 4
  %v152 = vshll.u32 %v19, 16
  %v154 = vrot.slane %v152, 5
  %v155 = vor.u32 %v151, %v154
  %v156 = vrot.slane %v155, 4
  %v158 = vshll.u32 %v51, 16
  %v160 = vrot.slane %v158, 5
  %v161 = vsel %vm63, %v156, %v160
  %v163 = vshrl.u32 %v20, 16
  %v165 = vrot.slane %v163, 4
  %v166 = vshll.u32 %v20, 16
  %v168 = vrot.slane %v166, 5
  %v169 = vor.u32 %v165, %v168
  %v170 = vrot.slane %v169, 4
  %v172 = vshll.u32 %v52, 16
  %v174 = vrot.slane %v172, 5
  %v175 = vsel %vm63, %v170, %v174
  %v177 = vshrl.u32 %v21, 16
  %v179 = vrot.slane %v177, 4
  %v180 = vshll.u32 %v21, 16
  %v182 = vrot.slane %v180, 5
  %v183 = vor.u32 %v179, %v182
  %v184 = vrot.slane %v183, 4
  %v186 = vshll.u32 %v53, 16
  %v188 = vrot.slane %v186, 5
  %v189 = vsel %vm63, %v184, %v188
  %v191 = vshrl.u32 %v22, 16
  %v193 = vrot.slane %v191, 4
  %v194 = vshll.u32 %v22, 16
  %v196 = vrot.slane %v194, 5
  %v197 = vor.u32 %v193, %v196
  %v198 = vrot.slane %v197, 4
  %v200 = vshll.u32 %v54, 16
  %v202 = vrot.slane %v200, 5
  %v203 = vsel %vm63, %v198, %v202
  %v205 = vshrl.u32 %v23, 16
  %v207 = vrot.slane %v205, 4
  %v208 = vshll.u32 %v23, 16
  %v210 = vrot.slane %v208, 5
  %v211 = vor.u32 %v207, %v210
  %v212 = vrot.slane %v211, 4
  %v214 = vshll.u32 %v55, 16
  %v216 = vrot.slane %v214, 5
  %v217 = vsel %vm63, %v212, %v216
  %v219 = vshrl.u32 %v24, 16
  %v221 = vrot.slane %v219, 4
  %v222 = vshll.u32 %v24, 16
  %v224 = vrot.slane %v222, 5
  %v225 = vor.u32 %v221, %v224
  %v226 = vrot.slane %v225, 4
  %v228 = vshll.u32 %v56, 16
  %v230 = vrot.slane %v228, 5
  %v231 = vsel %vm63, %v226, %v230
  %v233 = vshrl.u32 %v25, 16
  %v235 = vrot.slane %v233, 4
  %v236 = vshll.u32 %v25, 16
  %v238 = vrot.slane %v236, 5
  %v239 = vor.u32 %v235, %v238
  %v240 = vrot.slane %v239, 4
  %v242 = vshll.u32 %v57, 16
  %v244 = vrot.slane %v242, 5
  %v245 = vsel %vm63, %v240, %v244
  %v247 = vshrl.u32 %v26, 16
  %v249 = vrot.slane %v247, 4
  %v250 = vshll.u32 %v26, 16
  %v252 = vrot.slane %v250, 5
  %v253 = vor.u32 %v249, %v252
  %v254 = vrot.slane %v253, 4
  %v256 = vshll.u32 %v58, 16
  %v258 = vrot.slane %v256, 5
  %v259 = vsel %vm63, %v254, %v258
  %v261 = vshrl.u32 %v27, 16
  %v263 = vrot.slane %v261, 4
  %v264 = vshll.u32 %v27, 16
  %v266 = vrot.slane %v264, 5
  %v267 = vor.u32 %v263, %v266
  %v268 = vrot.slane %v267, 4
  %v270 = vshll.u32 %v59, 16
  %v272 = vrot.slane %v270, 5
  %v273 = vsel %vm63, %v268, %v272
  %v275 = vshrl.u32 %v28, 16
  %v277 = vrot.slane %v275, 4
  %v278 = vshll.u32 %v28, 16
  %v280 = vrot.slane %v278, 5
  %v281 = vor.u32 %v277, %v280
  %v282 = vrot.slane %v281, 4
  %v284 = vshll.u32 %v60, 16
  %v286 = vrot.slane %v284, 5
  %v287 = vsel %vm63, %v282, %v286
  %s288 = scalar_lea.vmem %s1, 64
  %v289 = vld [vmem:[%s288] sm:$0xf]
  %v290 = vld [vmem:[%s288 + $0x4] sm:$0xf]
  %v291 = vld [vmem:[%s288 + $0x8] sm:$0xf]
  %v292 = vld [vmem:[%s288 + $0xc] sm:$0xf]
  %v293 = vld [vmem:[%s288 + $0x10] sm:$0xf]
  %v294 = vld [vmem:[%s288 + $0x14] sm:$0xf]
  %v295 = vld [vmem:[%s288 + $0x18] sm:$0xf]
  %v296 = vld [vmem:[%s288 + $0x1c] sm:$0xf]
  %v297 = vld [vmem:[%s288 + $0x20] sm:$0xf]
  %v298 = vld [vmem:[%s288 + $0x24] sm:$0xf]
  %v299 = vld [vmem:[%s288 + $0x28] sm:$0xf]
  %v300 = vld [vmem:[%s288 + $0x2c] sm:$0xf]
  %v301 = vld [vmem:[%s288 + $0x30] sm:$0xf]
  %v302 = vld [vmem:[%s288 + $0x34] sm:$0xf]
  %v303 = vld [vmem:[%s288 + $0x38] sm:$0xf]
  %v304 = vld [vmem:[%s288 + $0x3c] sm:$0xf]
  %v305 = vunpack.c.l.b16 %v77
  %v306 = vunpack.c.l.b16 %v91
  %v307 = vunpack.c.l.b16 %v105
  %v308 = vunpack.c.l.b16 %v119
  %v309 = vunpack.c.l.b16 %v133
  %v310 = vunpack.c.l.b16 %v147
  %v311 = vunpack.c.l.b16 %v161
  %v312 = vunpack.c.l.b16 %v175
  %v313 = vunpack.c.l.b16 %v189
  %v314 = vunpack.c.l.b16 %v203
  %v315 = vunpack.c.l.b16 %v217
  %v316 = vunpack.c.l.b16 %v231
  %v317 = vunpack.c.l.b16 %v245
  %v318 = vunpack.c.l.b16 %v259
  %v319 = vunpack.c.l.b16 %v273
  %v320 = vunpack.c.l.b16 %v287
  %v321 = vpack.c.b16 %v306, %v305
  %v322 = vpack.c.b16 %v308, %v307
  %v323 = vpack.c.b16 %v310, %v309
  %v324 = vpack.c.b16 %v312, %v311
  %v325 = vpack.c.b16 %v314, %v313
  %v326 = vpack.c.b16 %v316, %v315
  %v327 = vpack.c.b16 %v318, %v317
  %v328 = vpack.c.b16 %v320, %v319
  %v353 = vunpack.c.l.b16 %v289
  %v354 = vunpack.c.l.b16 %v290
  %v355 = vunpack.c.l.b16 %v291
  %v356 = vunpack.c.l.b16 %v292
  %v357 = vunpack.c.l.b16 %v293
  %v358 = vunpack.c.l.b16 %v294
  %v359 = vunpack.c.l.b16 %v295
  %v360 = vunpack.c.l.b16 %v296
  %v361 = vunpack.c.l.b16 %v297
  %v362 = vunpack.c.l.b16 %v298
  %v363 = vunpack.c.l.b16 %v299
  %v364 = vunpack.c.l.b16 %v300
  %v365 = vunpack.c.l.b16 %v301
  %v366 = vunpack.c.l.b16 %v302
  %v367 = vunpack.c.l.b16 %v303
  %v368 = vunpack.c.l.b16 %v304
  %v369 = vpack.c.b16 %v354, %v353
  %v370 = vpack.c.b16 %v356, %v355
  %v371 = vpack.c.b16 %v358, %v357
  %v372 = vpack.c.b16 %v360, %v359
  %v373 = vpack.c.b16 %v362, %v361
  %v374 = vpack.c.b16 %v364, %v363
  %v375 = vpack.c.b16 %v366, %v365
  %v376 = vpack.c.b16 %v368, %v367
  %385 = vmatpush.bf16.msra.mxu0 %v376
  %386 = vmatpush.bf16.msra.mxu0 %v375
  %387 = vmatpush.bf16.msra.mxu0 %v374
  %388 = vmatpush.bf16.msra.mxu0 %v373
  %389 = vmatpush.bf16.msra.mxu0 %v372
  %390 = vmatpush.bf16.msra.mxu0 %v371
  %391 = vmatpush.bf16.msra.mxu0 %v370
  %392 = vmatpush.bf16.msra.mxu0 %v369
  %393 = vmatmul.bf16.gmra.mxu0 %v321
  %v394 = vpop.f32.mrf.mxu0
  %v395 = vadd.f32 0.0, %v394
  %v396 = vpop.f32.mrf.mxu0
  %v397 = vadd.f32 0.0, %v396
  %398 = vmatmul.bf16.gmra.mxu0 %v322
  %v399 = vpop.f32.mrf.mxu0
  %v400 = vadd.f32 0.0, %v399
  %v401 = vpop.f32.mrf.mxu0
  %v402 = vadd.f32 0.0, %v401
  %403 = vmatmul.bf16.gmra.mxu0 %v323
  %v404 = vpop.f32.mrf.mxu0
  %v405 = vadd.f32 0.0, %v404
  %v406 = vpop.f32.mrf.mxu0
  %v407 = vadd.f32 0.0, %v406
  %408 = vmatmul.bf16.gmra.mxu0 %v324
  %v409 = vpop.f32.mrf.mxu0
  %v410 = vadd.f32 0.0, %v409
  %v411 = vpop.f32.mrf.mxu0
  %v412 = vadd.f32 0.0, %v411
  %413 = vmatmul.bf16.gmra.mxu0 %v325
  %v414 = vpop.f32.mrf.mxu0
  %v415 = vadd.f32 0.0, %v414
  %v416 = vpop.f32.mrf.mxu0
  %v417 = vadd.f32 0.0, %v416
  %418 = vmatmul.bf16.gmra.mxu0 %v326
  %v419 = vpop.f32.mrf.mxu0
  %v420 = vadd.f32 0.0, %v419
  %v421 = vpop.f32.mrf.mxu0
  %v422 = vadd.f32 0.0, %v421
  %423 = vmatmul.bf16.gmra.mxu0 %v327
  %v424 = vpop.f32.mrf.mxu0
  %v425 = vadd.f32 0.0, %v424
  %v426 = vpop.f32.mrf.mxu0
  %v427 = vadd.f32 0.0, %v426
  %428 = vmatmul.bf16.gmra.mxu0 %v328
  %v429 = vpop.f32.mrf.mxu0
  %v430 = vadd.f32 0.0, %v429
  %v431 = vpop.f32.mrf.mxu0
  %v432 = vadd.f32 0.0, %v431
  %433 = vdwg.mxu0
  %v450 = vunpack.c.l.b16 %v13
  %v451 = vunpack.c.l.b16 %v14
  %v452 = vunpack.c.l.b16 %v15
  %v453 = vunpack.c.l.b16 %v16
  %v454 = vunpack.c.l.b16 %v17
  %v455 = vunpack.c.l.b16 %v18
  %v456 = vunpack.c.l.b16 %v19
  %v457 = vunpack.c.l.b16 %v20
  %v458 = vunpack.c.l.b16 %v21
  %v459 = vunpack.c.l.b16 %v22
  %v460 = vunpack.c.l.b16 %v23
  %v461 = vunpack.c.l.b16 %v24
  %v462 = vunpack.c.l.b16 %v25
  %v463 = vunpack.c.l.b16 %v26
  %v464 = vunpack.c.l.b16 %v27
  %v465 = vunpack.c.l.b16 %v28
  %v466 = vpack.c.b16 %v451, %v450
  %v467 = vpack.c.b16 %v453, %v452
  %v468 = vpack.c.b16 %v455, %v454
  %v469 = vpack.c.b16 %v457, %v456
  %v470 = vpack.c.b16 %v459, %v458
  %v471 = vpack.c.b16 %v461, %v460
  %v472 = vpack.c.b16 %v463, %v462
  %v473 = vpack.c.b16 %v465, %v464
  %v498 = vunpack.c.l.b16 %v29
  %v499 = vunpack.c.l.b16 %v30
  %v500 = vunpack.c.l.b16 %v31
  %v501 = vunpack.c.l.b16 %v32
  %v502 = vunpack.c.l.b16 %v33
  %v503 = vunpack.c.l.b16 %v34
  %v504 = vunpack.c.l.b16 %v35
  %v505 = vunpack.c.l.b16 %v36
  %v506 = vunpack.c.l.b16 %v37
  %v507 = vunpack.c.l.b16 %v38
  %v508 = vunpack.c.l.b16 %v39
  %v509 = vunpack.c.l.b16 %v40
  %v510 = vunpack.c.l.b16 %v41
  %v511 = vunpack.c.l.b16 %v42
  %v512 = vunpack.c.l.b16 %v43
  %v513 = vunpack.c.l.b16 %v44
  %v514 = vpack.c.b16 %v499, %v498
  %v515 = vpack.c.b16 %v501, %v500
  %v516 = vpack.c.b16 %v503, %v502
  %v517 = vpack.c.b16 %v505, %v504
  %v518 = vpack.c.b16 %v507, %v506
  %v519 = vpack.c.b16 %v509, %v508
  %v520 = vpack.c.b16 %v511, %v510
  %v521 = vpack.c.b16 %v513, %v512
  %530 = vmatpush.bf16.msra.mxu0 %v521
  %531 = vmatpush.bf16.msra.mxu0 %v520
  %532 = vmatpush.bf16.msra.mxu0 %v519
  %533 = vmatpush.bf16.msra.mxu0 %v518
  %534 = vmatpush.bf16.msra.mxu0 %v517
  %535 = vmatpush.bf16.msra.mxu0 %v516
  %536 = vmatpush.bf16.msra.mxu0 %v515
  %537 = vmatpush.bf16.msra.mxu0 %v514
  %538 = vmatmul.bf16.gmra.mxu0 %v466
  %v539 = vpop.f32.mrf.mxu0
  %v540 = vadd.f32 %v395, %v539
  %v541 = vpop.f32.mrf.mxu0
  %v542 = vadd.f32 %v397, %v541
  %543 = vmatmul.bf16.gmra.mxu0 %v467
  %v544 = vpop.f32.mrf.mxu0
  %v545 = vadd.f32 %v400, %v544
  %v546 = vpop.f32.mrf.mxu0
  %v547 = vadd.f32 %v402, %v546
  %548 = vmatmul.bf16.gmra.mxu0 %v468
  %v549 = vpop.f32.mrf.mxu0
  %v550 = vadd.f32 %v405, %v549
  %v551 = vpop.f32.mrf.mxu0
  %v552 = vadd.f32 %v407, %v551
  %553 = vmatmul.bf16.gmra.mxu0 %v469
  %v554 = vpop.f32.mrf.mxu0
  %v555 = vadd.f32 %v410, %v554
  %v556 = vpop.f32.mrf.mxu0
  %v557 = vadd.f32 %v412, %v556
  %558 = vmatmul.bf16.gmra.mxu0 %v470
  %v559 = vpop.f32.mrf.mxu0
  %v560 = vadd.f32 %v415, %v559
  %v561 = vpop.f32.mrf.mxu0
  %v562 = vadd.f32 %v417, %v561
  %563 = vmatmul.bf16.gmra.mxu0 %v471
  %v564 = vpop.f32.mrf.mxu0
  %v565 = vadd.f32 %v420, %v564
  %v566 = vpop.f32.mrf.mxu0
  %v567 = vadd.f32 %v422, %v566
  %568 = vmatmul.bf16.gmra.mxu0 %v472
  %v569 = vpop.f32.mrf.mxu0
  %v570 = vadd.f32 %v425, %v569
  %v571 = vpop.f32.mrf.mxu0
  %v572 = vadd.f32 %v427, %v571
  %573 = vmatmul.bf16.gmra.mxu0 %v473
  %v574 = vpop.f32.mrf.mxu0
  %v575 = vadd.f32 %v430, %v574
  %v576 = vpop.f32.mrf.mxu0
  %v577 = vadd.f32 %v432, %v576
  %578 = vdwg.mxu0
  %v579 = vld [vmem:[%s0] sm:$0xe]
  %v580 = vld [vmem:[%s0 + $0x8] sm:$0xe]
  %v581 = vld [vmem:[%s0 + $0x10] sm:$0xe]
  %v582 = vld [vmem:[%s0 + $0x18] sm:$0xe]
  %v583 = vld [vmem:[%s0 + $0x20] sm:$0xe]
  %v584 = vld [vmem:[%s0 + $0x28] sm:$0xe]
  %v585 = vld [vmem:[%s0 + $0x30] sm:$0xe]
  %v586 = vld [vmem:[%s0 + $0x38] sm:$0xe]
  %v587 = vld [vmem:[%s0 + $0x50] sm:$0xe]
  %v588 = vld [vmem:[%s0 + $0x58] sm:$0xe]
  %v589 = vld [vmem:[%s0 + $0x60] sm:$0xe]
  %v590 = vld [vmem:[%s0 + $0x68] sm:$0xe]
  %v591 = vld [vmem:[%s0 + $0x70] sm:$0xe]
  %v592 = vld [vmem:[%s0 + $0x78] sm:$0xe]
  %v593 = vld [vmem:[%s0 + $0x80] sm:$0xe]
  %v594 = vld [vmem:[%s0 + $0x88] sm:$0xe]
  %vm627 = vcmask 1042432
  %vm628 = vcmask 1046532
  %vm629 = vmor %vm627, %vm628
  %v630 = vrot.slane %v579, 5
  %v631 = vrot.slane %v630, 4
  %v632 = vrot.slane %v45, 5
  %v633 = vsel %vm629, %v631, %v632
  %v634 = vrot.slane %v580, 5
  %v635 = vrot.slane %v634, 4
  %v636 = vrot.slane %v46, 5
  %v637 = vsel %vm629, %v635, %v636
  %v638 = vrot.slane %v581, 5
  %v639 = vrot.slane %v638, 4
  %v640 = vrot.slane %v47, 5
  %v641 = vsel %vm629, %v639, %v640
  %v642 = vrot.slane %v582, 5
  %v643 = vrot.slane %v642, 4
  %v644 = vrot.slane %v48, 5
  %v645 = vsel %vm629, %v643, %v644
  %v646 = vrot.slane %v583, 5
  %v647 = vrot.slane %v646, 4
  %v648 = vrot.slane %v49, 5
  %v649 = vsel %vm629, %v647, %v648
  %v650 = vrot.slane %v584, 5
  %v651 = vrot.slane %v650, 4
  %v652 = vrot.slane %v50, 5
  %v653 = vsel %vm629, %v651, %v652
  %v654 = vrot.slane %v585, 5
  %v655 = vrot.slane %v654, 4
  %v656 = vrot.slane %v51, 5
  %v657 = vsel %vm629, %v655, %v656
  %v658 = vrot.slane %v586, 5
  %v659 = vrot.slane %v658, 4
  %v660 = vrot.slane %v52, 5
  %v661 = vsel %vm629, %v659, %v660
  %v662 = vrot.slane %v587, 5
  %v663 = vrot.slane %v662, 4
  %v664 = vrot.slane %v53, 5
  %v665 = vsel %vm629, %v663, %v664
  %v666 = vrot.slane %v588, 5
  %v667 = vrot.slane %v666, 4
  %v668 = vrot.slane %v54, 5
  %v669 = vsel %vm629, %v667, %v668
  %v670 = vrot.slane %v589, 5
  %v671 = vrot.slane %v670, 4
  %v672 = vrot.slane %v55, 5
  %v673 = vsel %vm629, %v671, %v672
  %v674 = vrot.slane %v590, 5
  %v675 = vrot.slane %v674, 4
  %v676 = vrot.slane %v56, 5
  %v677 = vsel %vm629, %v675, %v676
  %v678 = vrot.slane %v591, 5
  %v679 = vrot.slane %v678, 4
  %v680 = vrot.slane %v57, 5
  %v681 = vsel %vm629, %v679, %v680
  %v682 = vrot.slane %v592, 5
  %v683 = vrot.slane %v682, 4
  %v684 = vrot.slane %v58, 5
  %v685 = vsel %vm629, %v683, %v684
  %v686 = vrot.slane %v593, 5
  %v687 = vrot.slane %v686, 4
  %v688 = vrot.slane %v59, 5
  %v689 = vsel %vm629, %v687, %v688
  %v690 = vrot.slane %v594, 5
  %v691 = vrot.slane %v690, 4
  %v692 = vrot.slane %v60, 5
  %v693 = vsel %vm629, %v691, %v692
  %s694 = scalar_lea.vmem %s1, 128
  %v695 = vld [vmem:[%s694] sm:$0xf]
  %v696 = vld [vmem:[%s694 + $0x4] sm:$0xf]
  %v697 = vld [vmem:[%s694 + $0x8] sm:$0xf]
  %v698 = vld [vmem:[%s694 + $0xc] sm:$0xf]
  %v699 = vld [vmem:[%s694 + $0x10] sm:$0xf]
  %v700 = vld [vmem:[%s694 + $0x14] sm:$0xf]
  %v701 = vld [vmem:[%s694 + $0x18] sm:$0xf]
  %v702 = vld [vmem:[%s694 + $0x1c] sm:$0xf]
  %v703 = vld [vmem:[%s694 + $0x20] sm:$0xf]
  %v704 = vld [vmem:[%s694 + $0x24] sm:$0xf]
  %v705 = vld [vmem:[%s694 + $0x28] sm:$0xf]
  %v706 = vld [vmem:[%s694 + $0x2c] sm:$0xf]
  %v707 = vld [vmem:[%s694 + $0x30] sm:$0xf]
  %v708 = vld [vmem:[%s694 + $0x34] sm:$0xf]
  %v709 = vld [vmem:[%s694 + $0x38] sm:$0xf]
  %v710 = vld [vmem:[%s694 + $0x3c] sm:$0xf]
  %v711 = vunpack.c.l.b16 %v633
  %v712 = vunpack.c.l.b16 %v637
  %v713 = vunpack.c.l.b16 %v641
  %v714 = vunpack.c.l.b16 %v645
  %v715 = vunpack.c.l.b16 %v649
  %v716 = vunpack.c.l.b16 %v653
  %v717 = vunpack.c.l.b16 %v657
  %v718 = vunpack.c.l.b16 %v661
  %v719 = vunpack.c.l.b16 %v665
  %v720 = vunpack.c.l.b16 %v669
  %v721 = vunpack.c.l.b16 %v673
  %v722 = vunpack.c.l.b16 %v677
  %v723 = vunpack.c.l.b16 %v681
  %v724 = vunpack.c.l.b16 %v685
  %v725 = vunpack.c.l.b16 %v689
  %v726 = vunpack.c.l.b16 %v693
  %v727 = vpack.c.b16 %v712, %v711
  %v728 = vpack.c.b16 %v714, %v713
  %v729 = vpack.c.b16 %v716, %v715
  %v730 = vpack.c.b16 %v718, %v717
  %v731 = vpack.c.b16 %v720, %v719
  %v732 = vpack.c.b16 %v722, %v721
  %v733 = vpack.c.b16 %v724, %v723
  %v734 = vpack.c.b16 %v726, %v725
  %v759 = vunpack.c.l.b16 %v695
  %v760 = vunpack.c.l.b16 %v696
  %v761 = vunpack.c.l.b16 %v697
  %v762 = vunpack.c.l.b16 %v698
  %v763 = vunpack.c.l.b16 %v699
  %v764 = vunpack.c.l.b16 %v700
  %v765 = vunpack.c.l.b16 %v701
  %v766 = vunpack.c.l.b16 %v702
  %v767 = vunpack.c.l.b16 %v703
  %v768 = vunpack.c.l.b16 %v704
  %v769 = vunpack.c.l.b16 %v705
  %v770 = vunpack.c.l.b16 %v706
  %v771 = vunpack.c.l.b16 %v707
  %v772 = vunpack.c.l.b16 %v708
  %v773 = vunpack.c.l.b16 %v709
  %v774 = vunpack.c.l.b16 %v710
  %v775 = vpack.c.b16 %v760, %v759
  %v776 = vpack.c.b16 %v762, %v761
  %v777 = vpack.c.b16 %v764, %v763
  %v778 = vpack.c.b16 %v766, %v765
  %v779 = vpack.c.b16 %v768, %v767
  %v780 = vpack.c.b16 %v770, %v769
  %v781 = vpack.c.b16 %v772, %v771
  %v782 = vpack.c.b16 %v774, %v773
  %791 = vmatpush.bf16.msra.mxu0 %v782
  %792 = vmatpush.bf16.msra.mxu0 %v781
  %793 = vmatpush.bf16.msra.mxu0 %v780
  %794 = vmatpush.bf16.msra.mxu0 %v779
  %795 = vmatpush.bf16.msra.mxu0 %v778
  %796 = vmatpush.bf16.msra.mxu0 %v777
  %797 = vmatpush.bf16.msra.mxu0 %v776
  %798 = vmatpush.bf16.msra.mxu0 %v775
  %799 = vmatmul.bf16.gmra.mxu0 %v727
  %v800 = vpop.f32.mrf.mxu0
  %v801 = vadd.f32 0.0, %v800
  %v802 = vpop.f32.mrf.mxu0
  %v803 = vadd.f32 0.0, %v802
  %804 = vmatmul.bf16.gmra.mxu0 %v728
  %v805 = vpop.f32.mrf.mxu0
  %v806 = vadd.f32 0.0, %v805
  %v807 = vpop.f32.mrf.mxu0
  %v808 = vadd.f32 0.0, %v807
  %809 = vmatmul.bf16.gmra.mxu0 %v729
  %v810 = vpop.f32.mrf.mxu0
  %v811 = vadd.f32 0.0, %v810
  %v812 = vpop.f32.mrf.mxu0
  %v813 = vadd.f32 0.0, %v812
  %814 = vmatmul.bf16.gmra.mxu0 %v730
  %v815 = vpop.f32.mrf.mxu0
  %v816 = vadd.f32 0.0, %v815
  %v817 = vpop.f32.mrf.mxu0
  %v818 = vadd.f32 0.0, %v817
  %819 = vmatmul.bf16.gmra.mxu0 %v731
  %v820 = vpop.f32.mrf.mxu0
  %v821 = vadd.f32 0.0, %v820
  %v822 = vpop.f32.mrf.mxu0
  %v823 = vadd.f32 0.0, %v822
  %824 = vmatmul.bf16.gmra.mxu0 %v732
  %v825 = vpop.f32.mrf.mxu0
  %v826 = vadd.f32 0.0, %v825
  %v827 = vpop.f32.mrf.mxu0
  %v828 = vadd.f32 0.0, %v827
  %829 = vmatmul.bf16.gmra.mxu0 %v733
  %v830 = vpop.f32.mrf.mxu0
  %v831 = vadd.f32 0.0, %v830
  %v832 = vpop.f32.mrf.mxu0
  %v833 = vadd.f32 0.0, %v832
  %834 = vmatmul.bf16.gmra.mxu0 %v734
  %v835 = vpop.f32.mrf.mxu0
  %v836 = vadd.f32 0.0, %v835
  %v837 = vpop.f32.mrf.mxu0
  %v838 = vadd.f32 0.0, %v837
  %839 = vdwg.mxu0
  %v840 = vadd.f32 %v540, %v801
  %v841 = vadd.f32 %v542, %v803
  %v842 = vadd.f32 %v545, %v806
  %v843 = vadd.f32 %v547, %v808
  %v844 = vadd.f32 %v550, %v811
  %v845 = vadd.f32 %v552, %v813
  %v846 = vadd.f32 %v555, %v816
  %v847 = vadd.f32 %v557, %v818
  %v848 = vadd.f32 %v560, %v821
  %v849 = vadd.f32 %v562, %v823
  %v850 = vadd.f32 %v565, %v826
  %v851 = vadd.f32 %v567, %v828
  %v852 = vadd.f32 %v570, %v831
  %v853 = vadd.f32 %v572, %v833
  %v854 = vadd.f32 %v575, %v836
  %v855 = vadd.f32 %v577, %v838
  %s856 = scalar_lea.vmem %s0, 8
  %v857 = vld [vmem:[%s856] sm:$0xf]
  %v858 = vld [vmem:[%s856 + $0x8] sm:$0xf]
  %v859 = vld [vmem:[%s856 + $0x10] sm:$0xf]
  %v860 = vld [vmem:[%s856 + $0x18] sm:$0xf]
  %v861 = vld [vmem:[%s856 + $0x20] sm:$0xf]
  %v862 = vld [vmem:[%s856 + $0x28] sm:$0xf]
  %v863 = vld [vmem:[%s856 + $0x30] sm:$0xf]
  %v864 = vld [vmem:[%s856 + $0x38] sm:$0xf]
  %v865 = vld [vmem:[%s856 + $0x50] sm:$0xf]
  %v866 = vld [vmem:[%s856 + $0x58] sm:$0xf]
  %v867 = vld [vmem:[%s856 + $0x60] sm:$0xf]
  %v868 = vld [vmem:[%s856 + $0x68] sm:$0xf]
  %v869 = vld [vmem:[%s856 + $0x70] sm:$0xf]
  %v870 = vld [vmem:[%s856 + $0x78] sm:$0xf]
  %v871 = vld [vmem:[%s856 + $0x80] sm:$0xf]
  %v872 = vld [vmem:[%s856 + $0x88] sm:$0xf]
  %s873 = scalar_lea.vmem %s1, 192
  %v874 = vld [vmem:[%s873] sm:$0xf]
  %v875 = vld [vmem:[%s873 + $0x4] sm:$0xf]
  %v876 = vld [vmem:[%s873 + $0x8] sm:$0xf]
  %v877 = vld [vmem:[%s873 + $0xc] sm:$0xf]
  %v878 = vld [vmem:[%s873 + $0x10] sm:$0xf]
  %v879 = vld [vmem:[%s873 + $0x14] sm:$0xf]
  %v880 = vld [vmem:[%s873 + $0x18] sm:$0xf]
  %v881 = vld [vmem:[%s873 + $0x1c] sm:$0xf]
  %v882 = vld [vmem:[%s873 + $0x20] sm:$0xf]
  %v883 = vld [vmem:[%s873 + $0x24] sm:$0xf]
  %v884 = vld [vmem:[%s873 + $0x28] sm:$0xf]
  %v885 = vld [vmem:[%s873 + $0x2c] sm:$0xf]
  %v886 = vld [vmem:[%s873 + $0x30] sm:$0xf]
  %v887 = vld [vmem:[%s873 + $0x34] sm:$0xf]
  %v888 = vld [vmem:[%s873 + $0x38] sm:$0xf]
  %v889 = vld [vmem:[%s873 + $0x3c] sm:$0xf]
  %v906 = vunpack.c.l.b16 %v857
  %v907 = vunpack.c.l.b16 %v858
  %v908 = vunpack.c.l.b16 %v859
  %v909 = vunpack.c.l.b16 %v860
  %v910 = vunpack.c.l.b16 %v861
  %v911 = vunpack.c.l.b16 %v862
  %v912 = vunpack.c.l.b16 %v863
  %v913 = vunpack.c.l.b16 %v864
  %v914 = vunpack.c.l.b16 %v865
  %v915 = vunpack.c.l.b16 %v866
  %v916 = vunpack.c.l.b16 %v867
  %v917 = vunpack.c.l.b16 %v868
  %v918 = vunpack.c.l.b16 %v869
  %v919 = vunpack.c.l.b16 %v870
  %v920 = vunpack.c.l.b16 %v871
  %v921 = vunpack.c.l.b16 %v872
  %v922 = vpack.c.b16 %v907, %v906
  %v923 = vpack.c.b16 %v909, %v908
  %v924 = vpack.c.b16 %v911, %v910
  %v925 = vpack.c.b16 %v913, %v912
  %v926 = vpack.c.b16 %v915, %v914
  %v927 = vpack.c.b16 %v917, %v916
  %v928 = vpack.c.b16 %v919, %v918
  %v929 = vpack.c.b16 %v921, %v920
  %v954 = vunpack.c.l.b16 %v874
  %v955 = vunpack.c.l.b16 %v875
  %v956 = vunpack.c.l.b16 %v876
  %v957 = vunpack.c.l.b16 %v877
  %v958 = vunpack.c.l.b16 %v878
  %v959 = vunpack.c.l.b16 %v879
  %v960 = vunpack.c.l.b16 %v880
  %v961 = vunpack.c.l.b16 %v881
  %v962 = vunpack.c.l.b16 %v882
  %v963 = vunpack.c.l.b16 %v883
  %v964 = vunpack.c.l.b16 %v884
  %v965 = vunpack.c.l.b16 %v885
  %v966 = vunpack.c.l.b16 %v886
  %v967 = vunpack.c.l.b16 %v887
  %v968 = vunpack.c.l.b16 %v888
  %v969 = vunpack.c.l.b16 %v889
  %v970 = vpack.c.b16 %v955, %v954
  %v971 = vpack.c.b16 %v957, %v956
  %v972 = vpack.c.b16 %v959, %v958
  %v973 = vpack.c.b16 %v961, %v960
  %v974 = vpack.c.b16 %v963, %v962
  %v975 = vpack.c.b16 %v965, %v964
  %v976 = vpack.c.b16 %v967, %v966
  %v977 = vpack.c.b16 %v969, %v968
  %986 = vmatpush.bf16.msra.mxu0 %v977
  %987 = vmatpush.bf16.msra.mxu0 %v976
  %988 = vmatpush.bf16.msra.mxu0 %v975
  %989 = vmatpush.bf16.msra.mxu0 %v974
  %990 = vmatpush.bf16.msra.mxu0 %v973
  %991 = vmatpush.bf16.msra.mxu0 %v972
  %992 = vmatpush.bf16.msra.mxu0 %v971
  %993 = vmatpush.bf16.msra.mxu0 %v970
  %994 = vmatmul.bf16.gmra.mxu0 %v922
  %v995 = vpop.f32.mrf.mxu0
  %v996 = vadd.f32 0.0, %v995
  %v997 = vpop.f32.mrf.mxu0
  %v998 = vadd.f32 0.0, %v997
  %999 = vmatmul.bf16.gmra.mxu0 %v923
  %v1000 = vpop.f32.mrf.mxu0
  %v1001 = vadd.f32 0.0, %v1000
  %v1002 = vpop.f32.mrf.mxu0
  %v1003 = vadd.f32 0.0, %v1002
  %1004 = vmatmul.bf16.gmra.mxu0 %v924
  %v1005 = vpop.f32.mrf.mxu0
  %v1006 = vadd.f32 0.0, %v1005
  %v1007 = vpop.f32.mrf.mxu0
  %v1008 = vadd.f32 0.0, %v1007
  %1009 = vmatmul.bf16.gmra.mxu0 %v925
  %v1010 = vpop.f32.mrf.mxu0
  %v1011 = vadd.f32 0.0, %v1010
  %v1012 = vpop.f32.mrf.mxu0
  %v1013 = vadd.f32 0.0, %v1012
  %1014 = vmatmul.bf16.gmra.mxu0 %v926
  %v1015 = vpop.f32.mrf.mxu0
  %v1016 = vadd.f32 0.0, %v1015
  %v1017 = vpop.f32.mrf.mxu0
  %v1018 = vadd.f32 0.0, %v1017
  %1019 = vmatmul.bf16.gmra.mxu0 %v927
  %v1020 = vpop.f32.mrf.mxu0
  %v1021 = vadd.f32 0.0, %v1020
  %v1022 = vpop.f32.mrf.mxu0
  %v1023 = vadd.f32 0.0, %v1022
  %1024 = vmatmul.bf16.gmra.mxu0 %v928
  %v1025 = vpop.f32.mrf.mxu0
  %v1026 = vadd.f32 0.0, %v1025
  %v1027 = vpop.f32.mrf.mxu0
  %v1028 = vadd.f32 0.0, %v1027
  %1029 = vmatmul.bf16.gmra.mxu0 %v929
  %v1030 = vpop.f32.mrf.mxu0
  %v1031 = vadd.f32 0.0, %v1030
  %v1032 = vpop.f32.mrf.mxu0
  %v1033 = vadd.f32 0.0, %v1032
  %1034 = vdwg.mxu0
  %v1035 = vadd.f32 %v840, %v996
  %v1036 = vadd.f32 %v841, %v998
  %v1037 = vadd.f32 %v842, %v1001
  %v1038 = vadd.f32 %v843, %v1003
  %v1039 = vadd.f32 %v844, %v1006
  %v1040 = vadd.f32 %v845, %v1008
  %v1041 = vadd.f32 %v846, %v1011
  %v1042 = vadd.f32 %v847, %v1013
  %v1043 = vadd.f32 %v848, %v1016
  %v1044 = vadd.f32 %v849, %v1018
  %v1045 = vadd.f32 %v850, %v1021
  %v1046 = vadd.f32 %v851, %v1023
  %v1047 = vadd.f32 %v852, %v1026
  %v1048 = vadd.f32 %v853, %v1028
  %v1049 = vadd.f32 %v854, %v1031
  %v1050 = vadd.f32 %v855, %v1033
  %v1051 = vld [vmem:[%s856] sm:$0xf]
  %v1052 = vld [vmem:[%s856 + $0x4] sm:$0x1]
  %v1053 = vld [vmem:[%s856 + $0x8] sm:$0xf]
  %v1054 = vld [vmem:[%s856 + $0xc] sm:$0x1]
  %v1055 = vld [vmem:[%s856 + $0x10] sm:$0xf]
  %v1056 = vld [vmem:[%s856 + $0x14] sm:$0x1]
  %v1057 = vld [vmem:[%s856 + $0x18] sm:$0xf]
  %v1058 = vld [vmem:[%s856 + $0x1c] sm:$0x1]
  %v1059 = vld [vmem:[%s856 + $0x20] sm:$0xf]
  %v1060 = vld [vmem:[%s856 + $0x24] sm:$0x1]
  %v1061 = vld [vmem:[%s856 + $0x28] sm:$0xf]
  %v1062 = vld [vmem:[%s856 + $0x2c] sm:$0x1]
  %v1063 = vld [vmem:[%s856 + $0x30] sm:$0xf]
  %v1064 = vld [vmem:[%s856 + $0x34] sm:$0x1]
  %v1065 = vld [vmem:[%s856 + $0x38] sm:$0xf]
  %v1066 = vld [vmem:[%s856 + $0x3c] sm:$0x1]
  %v1067 = vld [vmem:[%s856 + $0x50] sm:$0xf]
  %v1068 = vld [vmem:[%s856 + $0x54] sm:$0x1]
  %v1069 = vld [vmem:[%s856 + $0x58] sm:$0xf]
  %v1070 = vld [vmem:[%s856 + $0x5c] sm:$0x1]
  %v1071 = vld [vmem:[%s856 + $0x60] sm:$0xf]
  %v1072 = vld [vmem:[%s856 + $0x64] sm:$0x1]
  %v1073 = vld [vmem:[%s856 + $0x68] sm:$0xf]
  %v1074 = vld [vmem:[%s856 + $0x6c] sm:$0x1]
  %v1075 = vld [vmem:[%s856 + $0x70] sm:$0xf]
  %v1076 = vld [vmem:[%s856 + $0x74] sm:$0x1]
  %v1077 = vld [vmem:[%s856 + $0x78] sm:$0xf]
  %v1078 = vld [vmem:[%s856 + $0x7c] sm:$0x1]
  %v1079 = vld [vmem:[%s856 + $0x80] sm:$0xf]
  %v1080 = vld [vmem:[%s856 + $0x84] sm:$0x1]
  %v1081 = vld [vmem:[%s856 + $0x88] sm:$0xf]
  %v1082 = vld [vmem:[%s856 + $0x8c] sm:$0x1]
  %v1084 = vshrl.u32 %v1051, 16
  %v1086 = vrot.slane %v1084, 4
  %v1087 = vshll.u32 %v1051, 16
  %v1089 = vrot.slane %v1087, 5
  %v1090 = vor.u32 %v1086, %v1089
  %v1091 = vrot.slane %v1090, 4
  %v1093 = vshll.u32 %v1052, 16
  %v1095 = vrot.slane %v1093, 5
  %v1096 = vsel %vm63, %v1091, %v1095
  %v1098 = vshrl.u32 %v1053, 16
  %v1100 = vrot.slane %v1098, 4
  %v1101 = vshll.u32 %v1053, 16
  %v1103 = vrot.slane %v1101, 5
  %v1104 = vor.u32 %v1100, %v1103
  %v1105 = vrot.slane %v1104, 4
  %v1107 = vshll.u32 %v1054, 16
  %v1109 = vrot.slane %v1107, 5
  %v1110 = vsel %vm63, %v1105, %v1109
  %v1112 = vshrl.u32 %v1055, 16
  %v1114 = vrot.slane %v1112, 4
  %v1115 = vshll.u32 %v1055, 16
  %v1117 = vrot.slane %v1115, 5
  %v1118 = vor.u32 %v1114, %v1117
  %v1119 = vrot.slane %v1118, 4
  %v1121 = vshll.u32 %v1056, 16
  %v1123 = vrot.slane %v1121, 5
  %v1124 = vsel %vm63, %v1119, %v1123
  %v1126 = vshrl.u32 %v1057, 16
  %v1128 = vrot.slane %v1126, 4
  %v1129 = vshll.u32 %v1057, 16
  %v1131 = vrot.slane %v1129, 5
  %v1132 = vor.u32 %v1128, %v1131
  %v1133 = vrot.slane %v1132, 4
  %v1135 = vshll.u32 %v1058, 16
  %v1137 = vrot.slane %v1135, 5
  %v1138 = vsel %vm63, %v1133, %v1137
  %v1140 = vshrl.u32 %v1059, 16
  %v1142 = vrot.slane %v1140, 4
  %v1143 = vshll.u32 %v1059, 16
  %v1145 = vrot.slane %v1143, 5
  %v1146 = vor.u32 %v1142, %v1145
  %v1147 = vrot.slane %v1146, 4
  %v1149 = vshll.u32 %v1060, 16
  %v1151 = vrot.slane %v1149, 5
  %v1152 = vsel %vm63, %v1147, %v1151
  %v1154 = vshrl.u32 %v1061, 16
  %v1156 = vrot.slane %v1154, 4
  %v1157 = vshll.u32 %v1061, 16
  %v1159 = vrot.slane %v1157, 5
  %v1160 = vor.u32 %v1156, %v1159
  %v1161 = vrot.slane %v1160, 4
  %v1163 = vshll.u32 %v1062, 16
  %v1165 = vrot.slane %v1163, 5
  %v1166 = vsel %vm63, %v1161, %v1165
  %v1168 = vshrl.u32 %v1063, 16
  %v1170 = vrot.slane %v1168, 4
  %v1171 = vshll.u32 %v1063, 16
  %v1173 = vrot.slane %v1171, 5
  %v1174 = vor.u32 %v1170, %v1173
  %v1175 = vrot.slane %v1174, 4
  %v1177 = vshll.u32 %v1064, 16
  %v1179 = vrot.slane %v1177, 5
  %v1180 = vsel %vm63, %v1175, %v1179
  %v1182 = vshrl.u32 %v1065, 16
  %v1184 = vrot.slane %v1182, 4
  %v1185 = vshll.u32 %v1065, 16
  %v1187 = vrot.slane %v1185, 5
  %v1188 = vor.u32 %v1184, %v1187
  %v1189 = vrot.slane %v1188, 4
  %v1191 = vshll.u32 %v1066, 16
  %v1193 = vrot.slane %v1191, 5
  %v1194 = vsel %vm63, %v1189, %v1193
  %v1196 = vshrl.u32 %v1067, 16
  %v1198 = vrot.slane %v1196, 4
  %v1199 = vshll.u32 %v1067, 16
  %v1201 = vrot.slane %v1199, 5
  %v1202 = vor.u32 %v1198, %v1201
  %v1203 = vrot.slane %v1202, 4
  %v1205 = vshll.u32 %v1068, 16
  %v1207 = vrot.slane %v1205, 5
  %v1208 = vsel %vm63, %v1203, %v1207
  %v1210 = vshrl.u32 %v1069, 16
  %v1212 = vrot.slane %v1210, 4
  %v1213 = vshll.u32 %v1069, 16
  %v1215 = vrot.slane %v1213, 5
  %v1216 = vor.u32 %v1212, %v1215
  %v1217 = vrot.slane %v1216, 4
  %v1219 = vshll.u32 %v1070, 16
  %v1221 = vrot.slane %v1219, 5
  %v1222 = vsel %vm63, %v1217, %v1221
  %v1224 = vshrl.u32 %v1071, 16
  %v1226 = vrot.slane %v1224, 4
  %v1227 = vshll.u32 %v1071, 16
  %v1229 = vrot.slane %v1227, 5
  %v1230 = vor.u32 %v1226, %v1229
  %v1231 = vrot.slane %v1230, 4
  %v1233 = vshll.u32 %v1072, 16
  %v1235 = vrot.slane %v1233, 5
  %v1236 = vsel %vm63, %v1231, %v1235
  %v1238 = vshrl.u32 %v1073, 16
  %v1240 = vrot.slane %v1238, 4
  %v1241 = vshll.u32 %v1073, 16
  %v1243 = vrot.slane %v1241, 5
  %v1244 = vor.u32 %v1240, %v1243
  %v1245 = vrot.slane %v1244, 4
  %v1247 = vshll.u32 %v1074, 16
  %v1249 = vrot.slane %v1247, 5
  %v1250 = vsel %vm63, %v1245, %v1249
  %v1252 = vshrl.u32 %v1075, 16
  %v1254 = vrot.slane %v1252, 4
  %v1255 = vshll.u32 %v1075, 16
  %v1257 = vrot.slane %v1255, 5
  %v1258 = vor.u32 %v1254, %v1257
  %v1259 = vrot.slane %v1258, 4
  %v1261 = vshll.u32 %v1076, 16
  %v1263 = vrot.slane %v1261, 5
  %v1264 = vsel %vm63, %v1259, %v1263
  %v1266 = vshrl.u32 %v1077, 16
  %v1268 = vrot.slane %v1266, 4
  %v1269 = vshll.u32 %v1077, 16
  %v1271 = vrot.slane %v1269, 5
  %v1272 = vor.u32 %v1268, %v1271
  %v1273 = vrot.slane %v1272, 4
  %v1275 = vshll.u32 %v1078, 16
  %v1277 = vrot.slane %v1275, 5
  %v1278 = vsel %vm63, %v1273, %v1277
  %v1280 = vshrl.u32 %v1079, 16
  %v1282 = vrot.slane %v1280, 4
  %v1283 = vshll.u32 %v1079, 16
  %v1285 = vrot.slane %v1283, 5
  %v1286 = vor.u32 %v1282, %v1285
  %v1287 = vrot.slane %v1286, 4
  %v1289 = vshll.u32 %v1080, 16
  %v1291 = vrot.slane %v1289, 5
  %v1292 = vsel %vm63, %v1287, %v1291
  %v1294 = vshrl.u32 %v1081, 16
  %v1296 = vrot.slane %v1294, 4
  %v1297 = vshll.u32 %v1081, 16
  %v1299 = vrot.slane %v1297, 5
  %v1300 = vor.u32 %v1296, %v1299
  %v1301 = vrot.slane %v1300, 4
  %v1303 = vshll.u32 %v1082, 16
  %v1305 = vrot.slane %v1303, 5
  %v1306 = vsel %vm63, %v1301, %v1305
  %s1307 = scalar_lea.vmem %s1, 256
  %v1308 = vld [vmem:[%s1307] sm:$0xf]
  %v1309 = vld [vmem:[%s1307 + $0x4] sm:$0xf]
  %v1310 = vld [vmem:[%s1307 + $0x8] sm:$0xf]
  %v1311 = vld [vmem:[%s1307 + $0xc] sm:$0xf]
  %v1312 = vld [vmem:[%s1307 + $0x10] sm:$0xf]
  %v1313 = vld [vmem:[%s1307 + $0x14] sm:$0xf]
  %v1314 = vld [vmem:[%s1307 + $0x18] sm:$0xf]
  %v1315 = vld [vmem:[%s1307 + $0x1c] sm:$0xf]
  %v1316 = vld [vmem:[%s1307 + $0x20] sm:$0xf]
  %v1317 = vld [vmem:[%s1307 + $0x24] sm:$0xf]
  %v1318 = vld [vmem:[%s1307 + $0x28] sm:$0xf]
  %v1319 = vld [vmem:[%s1307 + $0x2c] sm:$0xf]
  %v1320 = vld [vmem:[%s1307 + $0x30] sm:$0xf]
  %v1321 = vld [vmem:[%s1307 + $0x34] sm:$0xf]
  %v1322 = vld [vmem:[%s1307 + $0x38] sm:$0xf]
  %v1323 = vld [vmem:[%s1307 + $0x3c] sm:$0xf]
  %v1324 = vunpack.c.l.b16 %v1096
  %v1325 = vunpack.c.l.b16 %v1110
  %v1326 = vunpack.c.l.b16 %v1124
  %v1327 = vunpack.c.l.b16 %v1138
  %v1328 = vunpack.c.l.b16 %v1152
  %v1329 = vunpack.c.l.b16 %v1166
  %v1330 = vunpack.c.l.b16 %v1180
  %v1331 = vunpack.c.l.b16 %v1194
  %v1332 = vunpack.c.l.b16 %v1208
  %v1333 = vunpack.c.l.b16 %v1222
  %v1334 = vunpack.c.l.b16 %v1236
  %v1335 = vunpack.c.l.b16 %v1250
  %v1336 = vunpack.c.l.b16 %v1264
  %v1337 = vunpack.c.l.b16 %v1278
  %v1338 = vunpack.c.l.b16 %v1292
  %v1339 = vunpack.c.l.b16 %v1306
  %v1340 = vpack.c.b16 %v1325, %v1324
  %v1341 = vpack.c.b16 %v1327, %v1326
  %v1342 = vpack.c.b16 %v1329, %v1328
  %v1343 = vpack.c.b16 %v1331, %v1330
  %v1344 = vpack.c.b16 %v1333, %v1332
  %v1345 = vpack.c.b16 %v1335, %v1334
  %v1346 = vpack.c.b16 %v1337, %v1336
  %v1347 = vpack.c.b16 %v1339, %v1338
  %v1372 = vunpack.c.l.b16 %v1308
  %v1373 = vunpack.c.l.b16 %v1309
  %v1374 = vunpack.c.l.b16 %v1310
  %v1375 = vunpack.c.l.b16 %v1311
  %v1376 = vunpack.c.l.b16 %v1312
  %v1377 = vunpack.c.l.b16 %v1313
  %v1378 = vunpack.c.l.b16 %v1314
  %v1379 = vunpack.c.l.b16 %v1315
  %v1380 = vunpack.c.l.b16 %v1316
  %v1381 = vunpack.c.l.b16 %v1317
  %v1382 = vunpack.c.l.b16 %v1318
  %v1383 = vunpack.c.l.b16 %v1319
  %v1384 = vunpack.c.l.b16 %v1320
  %v1385 = vunpack.c.l.b16 %v1321
  %v1386 = vunpack.c.l.b16 %v1322
  %v1387 = vunpack.c.l.b16 %v1323
  %v1388 = vpack.c.b16 %v1373, %v1372
  %v1389 = vpack.c.b16 %v1375, %v1374
  %v1390 = vpack.c.b16 %v1377, %v1376
  %v1391 = vpack.c.b16 %v1379, %v1378
  %v1392 = vpack.c.b16 %v1381, %v1380
  %v1393 = vpack.c.b16 %v1383, %v1382
  %v1394 = vpack.c.b16 %v1385, %v1384
  %v1395 = vpack.c.b16 %v1387, %v1386
  %1404 = vmatpush.bf16.msra.mxu0 %v1395
  %1405 = vmatpush.bf16.msra.mxu0 %v1394
  %1406 = vmatpush.bf16.msra.mxu0 %v1393
  %1407 = vmatpush.bf16.msra.mxu0 %v1392
  %1408 = vmatpush.bf16.msra.mxu0 %v1391
  %1409 = vmatpush.bf16.msra.mxu0 %v1390
  %1410 = vmatpush.bf16.msra.mxu0 %v1389
  %1411 = vmatpush.bf16.msra.mxu0 %v1388
  %1412 = vmatmul.bf16.gmra.mxu0 %v1340
  %v1413 = vpop.f32.mrf.mxu0
  %v1414 = vadd.f32 0.0, %v1413
  %v1415 = vpop.f32.mrf.mxu0
  %v1416 = vadd.f32 0.0, %v1415
  %1417 = vmatmul.bf16.gmra.mxu0 %v1341
  %v1418 = vpop.f32.mrf.mxu0
  %v1419 = vadd.f32 0.0, %v1418
  %v1420 = vpop.f32.mrf.mxu0
  %v1421 = vadd.f32 0.0, %v1420
  %1422 = vmatmul.bf16.gmra.mxu0 %v1342
  %v1423 = vpop.f32.mrf.mxu0
  %v1424 = vadd.f32 0.0, %v1423
  %v1425 = vpop.f32.mrf.mxu0
  %v1426 = vadd.f32 0.0, %v1425
  %1427 = vmatmul.bf16.gmra.mxu0 %v1343
  %v1428 = vpop.f32.mrf.mxu0
  %v1429 = vadd.f32 0.0, %v1428
  %v1430 = vpop.f32.mrf.mxu0
  %v1431 = vadd.f32 0.0, %v1430
  %1432 = vmatmul.bf16.gmra.mxu0 %v1344
  %v1433 = vpop.f32.mrf.mxu0
  %v1434 = vadd.f32 0.0, %v1433
  %v1435 = vpop.f32.mrf.mxu0
  %v1436 = vadd.f32 0.0, %v1435
  %1437 = vmatmul.bf16.gmra.mxu0 %v1345
  %v1438 = vpop.f32.mrf.mxu0
  %v1439 = vadd.f32 0.0, %v1438
  %v1440 = vpop.f32.mrf.mxu0
  %v1441 = vadd.f32 0.0, %v1440
  %1442 = vmatmul.bf16.gmra.mxu0 %v1346
  %v1443 = vpop.f32.mrf.mxu0
  %v1444 = vadd.f32 0.0, %v1443
  %v1445 = vpop.f32.mrf.mxu0
  %v1446 = vadd.f32 0.0, %v1445
  %1447 = vmatmul.bf16.gmra.mxu0 %v1347
  %v1448 = vpop.f32.mrf.mxu0
  %v1449 = vadd.f32 0.0, %v1448
  %v1450 = vpop.f32.mrf.mxu0
  %v1451 = vadd.f32 0.0, %v1450
  %1452 = vdwg.mxu0
  %v1453 = vadd.f32 %v1035, %v1414
  %v1454 = vadd.f32 %v1036, %v1416
  %v1455 = vadd.f32 %v1037, %v1419
  %v1456 = vadd.f32 %v1038, %v1421
  %v1457 = vadd.f32 %v1039, %v1424
  %v1458 = vadd.f32 %v1040, %v1426
  %v1459 = vadd.f32 %v1041, %v1429
  %v1460 = vadd.f32 %v1042, %v1431
  %v1461 = vadd.f32 %v1043, %v1434
  %v1462 = vadd.f32 %v1044, %v1436
  %v1463 = vadd.f32 %v1045, %v1439
  %v1464 = vadd.f32 %v1046, %v1441
  %v1465 = vadd.f32 %v1047, %v1444
  %v1466 = vadd.f32 %v1048, %v1446
  %v1467 = vadd.f32 %v1049, %v1449
  %v1468 = vadd.f32 %v1050, %v1451
  %v1469 = vld [vmem:[%s856] sm:$0xe]
  %v1470 = vld [vmem:[%s856 + $0x8] sm:$0xe]
  %v1471 = vld [vmem:[%s856 + $0x10] sm:$0xe]
  %v1472 = vld [vmem:[%s856 + $0x18] sm:$0xe]
  %v1473 = vld [vmem:[%s856 + $0x20] sm:$0xe]
  %v1474 = vld [vmem:[%s856 + $0x28] sm:$0xe]
  %v1475 = vld [vmem:[%s856 + $0x30] sm:$0xe]
  %v1476 = vld [vmem:[%s856 + $0x38] sm:$0xe]
  %v1477 = vld [vmem:[%s856 + $0x50] sm:$0xe]
  %v1478 = vld [vmem:[%s856 + $0x58] sm:$0xe]
  %v1479 = vld [vmem:[%s856 + $0x60] sm:$0xe]
  %v1480 = vld [vmem:[%s856 + $0x68] sm:$0xe]
  %v1481 = vld [vmem:[%s856 + $0x70] sm:$0xe]
  %v1482 = vld [vmem:[%s856 + $0x78] sm:$0xe]
  %v1483 = vld [vmem:[%s856 + $0x80] sm:$0xe]
  %v1484 = vld [vmem:[%s856 + $0x88] sm:$0xe]
  %v1517 = vrot.slane %v1469, 5
  %v1518 = vrot.slane %v1517, 4
  %v1519 = vrot.slane %v1052, 5
  %v1520 = vsel %vm629, %v1518, %v1519
  %v1521 = vrot.slane %v1470, 5
  %v1522 = vrot.slane %v1521, 4
  %v1523 = vrot.slane %v1054, 5
  %v1524 = vsel %vm629, %v1522, %v1523
  %v1525 = vrot.slane %v1471, 5
  %v1526 = vrot.slane %v1525, 4
  %v1527 = vrot.slane %v1056, 5
  %v1528 = vsel %vm629, %v1526, %v1527
  %v1529 = vrot.slane %v1472, 5
  %v1530 = vrot.slane %v1529, 4
  %v1531 = vrot.slane %v1058, 5
  %v1532 = vsel %vm629, %v1530, %v1531
  %v1533 = vrot.slane %v1473, 5
  %v1534 = vrot.slane %v1533, 4
  %v1535 = vrot.slane %v1060, 5
  %v1536 = vsel %vm629, %v1534, %v1535
  %v1537 = vrot.slane %v1474, 5
  %v1538 = vrot.slane %v1537, 4
  %v1539 = vrot.slane %v1062, 5
  %v1540 = vsel %vm629, %v1538, %v1539
  %v1541 = vrot.slane %v1475, 5
  %v1542 = vrot.slane %v1541, 4
  %v1543 = vrot.slane %v1064, 5
  %v1544 = vsel %vm629, %v1542, %v1543
  %v1545 = vrot.slane %v1476, 5
  %v1546 = vrot.slane %v1545, 4
  %v1547 = vrot.slane %v1066, 5
  %v1548 = vsel %vm629, %v1546, %v1547
  %v1549 = vrot.slane %v1477, 5
  %v1550 = vrot.slane %v1549, 4
  %v1551 = vrot.slane %v1068, 5
  %v1552 = vsel %vm629, %v1550, %v1551
  %v1553 = vrot.slane %v1478, 5
  %v1554 = vrot.slane %v1553, 4
  %v1555 = vrot.slane %v1070, 5
  %v1556 = vsel %vm629, %v1554, %v1555
  %v1557 = vrot.slane %v1479, 5
  %v1558 = vrot.slane %v1557, 4
  %v1559 = vrot.slane %v1072, 5
  %v1560 = vsel %vm629, %v1558, %v1559
  %v1561 = vrot.slane %v1480, 5
  %v1562 = vrot.slane %v1561, 4
  %v1563 = vrot.slane %v1074, 5
  %v1564 = vsel %vm629, %v1562, %v1563
  %v1565 = vrot.slane %v1481, 5
  %v1566 = vrot.slane %v1565, 4
  %v1567 = vrot.slane %v1076, 5
  %v1568 = vsel %vm629, %v1566, %v1567
  %v1569 = vrot.slane %v1482, 5
  %v1570 = vrot.slane %v1569, 4
  %v1571 = vrot.slane %v1078, 5
  %v1572 = vsel %vm629, %v1570, %v1571
  %v1573 = vrot.slane %v1483, 5
  %v1574 = vrot.slane %v1573, 4
  %v1575 = vrot.slane %v1080, 5
  %v1576 = vsel %vm629, %v1574, %v1575
  %v1577 = vrot.slane %v1484, 5
  %v1578 = vrot.slane %v1577, 4
  %v1579 = vrot.slane %v1082, 5
  %v1580 = vsel %vm629, %v1578, %v1579
  %s1581 = scalar_lea.vmem %s1, 320
  %v1582 = vld [vmem:[%s1581] sm:$0xf]
  %v1583 = vld [vmem:[%s1581 + $0x4] sm:$0xf]
  %v1584 = vld [vmem:[%s1581 + $0x8] sm:$0xf]
  %v1585 = vld [vmem:[%s1581 + $0xc] sm:$0xf]
  %v1586 = vld [vmem:[%s1581 + $0x10] sm:$0xf]
  %v1587 = vld [vmem:[%s1581 + $0x14] sm:$0xf]
  %v1588 = vld [vmem:[%s1581 + $0x18] sm:$0xf]
  %v1589 = vld [vmem:[%s1581 + $0x1c] sm:$0xf]
  %v1590 = vld [vmem:[%s1581 + $0x20] sm:$0xf]
  %v1591 = vld [vmem:[%s1581 + $0x24] sm:$0xf]
  %v1592 = vld [vmem:[%s1581 + $0x28] sm:$0xf]
  %v1593 = vld [vmem:[%s1581 + $0x2c] sm:$0xf]
  %v1594 = vld [vmem:[%s1581 + $0x30] sm:$0xf]
  %v1595 = vld [vmem:[%s1581 + $0x34] sm:$0xf]
  %v1596 = vld [vmem:[%s1581 + $0x38] sm:$0xf]
  %v1597 = vld [vmem:[%s1581 + $0x3c] sm:$0xf]
  %v1598 = vunpack.c.l.b16 %v1520
  %v1599 = vunpack.c.l.b16 %v1524
  %v1600 = vunpack.c.l.b16 %v1528
  %v1601 = vunpack.c.l.b16 %v1532
  %v1602 = vunpack.c.l.b16 %v1536
  %v1603 = vunpack.c.l.b16 %v1540
  %v1604 = vunpack.c.l.b16 %v1544
  %v1605 = vunpack.c.l.b16 %v1548
  %v1606 = vunpack.c.l.b16 %v1552
  %v1607 = vunpack.c.l.b16 %v1556
  %v1608 = vunpack.c.l.b16 %v1560
  %v1609 = vunpack.c.l.b16 %v1564
  %v1610 = vunpack.c.l.b16 %v1568
  %v1611 = vunpack.c.l.b16 %v1572
  %v1612 = vunpack.c.l.b16 %v1576
  %v1613 = vunpack.c.l.b16 %v1580
  %v1614 = vpack.c.b16 %v1599, %v1598
  %v1615 = vpack.c.b16 %v1601, %v1600
  %v1616 = vpack.c.b16 %v1603, %v1602
  %v1617 = vpack.c.b16 %v1605, %v1604
  %v1618 = vpack.c.b16 %v1607, %v1606
  %v1619 = vpack.c.b16 %v1609, %v1608
  %v1620 = vpack.c.b16 %v1611, %v1610
  %v1621 = vpack.c.b16 %v1613, %v1612
  %v1646 = vunpack.c.l.b16 %v1582
  %v1647 = vunpack.c.l.b16 %v1583
  %v1648 = vunpack.c.l.b16 %v1584
  %v1649 = vunpack.c.l.b16 %v1585
  %v1650 = vunpack.c.l.b16 %v1586
  %v1651 = vunpack.c.l.b16 %v1587
  %v1652 = vunpack.c.l.b16 %v1588
  %v1653 = vunpack.c.l.b16 %v1589
  %v1654 = vunpack.c.l.b16 %v1590
  %v1655 = vunpack.c.l.b16 %v1591
  %v1656 = vunpack.c.l.b16 %v1592
  %v1657 = vunpack.c.l.b16 %v1593
  %v1658 = vunpack.c.l.b16 %v1594
  %v1659 = vunpack.c.l.b16 %v1595
  %v1660 = vunpack.c.l.b16 %v1596
  %v1661 = vunpack.c.l.b16 %v1597
  %v1662 = vpack.c.b16 %v1647, %v1646
  %v1663 = vpack.c.b16 %v1649, %v1648
  %v1664 = vpack.c.b16 %v1651, %v1650
  %v1665 = vpack.c.b16 %v1653, %v1652
  %v1666 = vpack.c.b16 %v1655, %v1654
  %v1667 = vpack.c.b16 %v1657, %v1656
  %v1668 = vpack.c.b16 %v1659, %v1658
  %v1669 = vpack.c.b16 %v1661, %v1660
  %1678 = vmatpush.bf16.msra.mxu0 %v1669
  %1679 = vmatpush.bf16.msra.mxu0 %v1668
  %1680 = vmatpush.bf16.msra.mxu0 %v1667
  %1681 = vmatpush.bf16.msra.mxu0 %v1666
  %1682 = vmatpush.bf16.msra.mxu0 %v1665
  %1683 = vmatpush.bf16.msra.mxu0 %v1664
  %1684 = vmatpush.bf16.msra.mxu0 %v1663
  %1685 = vmatpush.bf16.msra.mxu0 %v1662
  %1686 = vmatmul.bf16.gmra.mxu0 %v1614
  %v1687 = vpop.f32.mrf.mxu0
  %v1688 = vadd.f32 0.0, %v1687
  %v1689 = vpop.f32.mrf.mxu0
  %v1690 = vadd.f32 0.0, %v1689
  %1691 = vmatmul.bf16.gmra.mxu0 %v1615
  %v1692 = vpop.f32.mrf.mxu0
  %v1693 = vadd.f32 0.0, %v1692
  %v1694 = vpop.f32.mrf.mxu0
  %v1695 = vadd.f32 0.0, %v1694
  %1696 = vmatmul.bf16.gmra.mxu0 %v1616
  %v1697 = vpop.f32.mrf.mxu0
  %v1698 = vadd.f32 0.0, %v1697
  %v1699 = vpop.f32.mrf.mxu0
  %v1700 = vadd.f32 0.0, %v1699
  %1701 = vmatmul.bf16.gmra.mxu0 %v1617
  %v1702 = vpop.f32.mrf.mxu0
  %v1703 = vadd.f32 0.0, %v1702
  %v1704 = vpop.f32.mrf.mxu0
  %v1705 = vadd.f32 0.0, %v1704
  %1706 = vmatmul.bf16.gmra.mxu0 %v1618
  %v1707 = vpop.f32.mrf.mxu0
  %v1708 = vadd.f32 0.0, %v1707
  %v1709 = vpop.f32.mrf.mxu0
  %v1710 = vadd.f32 0.0, %v1709
  %1711 = vmatmul.bf16.gmra.mxu0 %v1619
  %v1712 = vpop.f32.mrf.mxu0
  %v1713 = vadd.f32 0.0, %v1712
  %v1714 = vpop.f32.mrf.mxu0
  %v1715 = vadd.f32 0.0, %v1714
  %1716 = vmatmul.bf16.gmra.mxu0 %v1620
  %v1717 = vpop.f32.mrf.mxu0
  %v1718 = vadd.f32 0.0, %v1717
  %v1719 = vpop.f32.mrf.mxu0
  %v1720 = vadd.f32 0.0, %v1719
  %1721 = vmatmul.bf16.gmra.mxu0 %v1621
  %v1722 = vpop.f32.mrf.mxu0
  %v1723 = vadd.f32 0.0, %v1722
  %v1724 = vpop.f32.mrf.mxu0
  %v1725 = vadd.f32 0.0, %v1724
  %1726 = vdwg.mxu0
  %v1727 = vadd.f32 %v1453, %v1688
  %v1728 = vadd.f32 %v1454, %v1690
  %v1729 = vadd.f32 %v1455, %v1693
  %v1730 = vadd.f32 %v1456, %v1695
  %v1731 = vadd.f32 %v1457, %v1698
  %v1732 = vadd.f32 %v1458, %v1700
  %v1733 = vadd.f32 %v1459, %v1703
  %v1734 = vadd.f32 %v1460, %v1705
  %v1735 = vadd.f32 %v1461, %v1708
  %v1736 = vadd.f32 %v1462, %v1710
  %v1737 = vadd.f32 %v1463, %v1713
  %v1738 = vadd.f32 %v1464, %v1715
  %v1739 = vadd.f32 %v1465, %v1718
  %v1740 = vadd.f32 %v1466, %v1720
  %v1741 = vadd.f32 %v1467, %v1723
  %v1742 = vadd.f32 %v1468, %v1725
  %s1743 = scalar_lea.vmem %s0, 16
  %v1744 = vld [vmem:[%s1743] sm:$0xf]
  %v1745 = vld [vmem:[%s1743 + $0x8] sm:$0xf]
  %v1746 = vld [vmem:[%s1743 + $0x10] sm:$0xf]
  %v1747 = vld [vmem:[%s1743 + $0x18] sm:$0xf]
  %v1748 = vld [vmem:[%s1743 + $0x20] sm:$0xf]
  %v1749 = vld [vmem:[%s1743 + $0x28] sm:$0xf]
  %v1750 = vld [vmem:[%s1743 + $0x30] sm:$0xf]
  %v1751 = vld [vmem:[%s1743 + $0x38] sm:$0xf]
  %v1752 = vld [vmem:[%s1743 + $0x50] sm:$0xf]
  %v1753 = vld [vmem:[%s1743 + $0x58] sm:$0xf]
  %v1754 = vld [vmem:[%s1743 + $0x60] sm:$0xf]
  %v1755 = vld [vmem:[%s1743 + $0x68] sm:$0xf]
  %v1756 = vld [vmem:[%s1743 + $0x70] sm:$0xf]
  %v1757 = vld [vmem:[%s1743 + $0x78] sm:$0xf]
  %v1758 = vld [vmem:[%s1743 + $0x80] sm:$0xf]
  %v1759 = vld [vmem:[%s1743 + $0x88] sm:$0xf]
  %s1760 = scalar_lea.vmem %s1, 384
  %v1761 = vld [vmem:[%s1760] sm:$0xf]
  %v1762 = vld [vmem:[%s1760 + $0x4] sm:$0xf]
  %v1763 = vld [vmem:[%s1760 + $0x8] sm:$0xf]
  %v1764 = vld [vmem:[%s1760 + $0xc] sm:$0xf]
  %v1765 = vld [vmem:[%s1760 + $0x10] sm:$0xf]
  %v1766 = vld [vmem:[%s1760 + $0x14] sm:$0xf]
  %v1767 = vld [vmem:[%s1760 + $0x18] sm:$0xf]
  %v1768 = vld [vmem:[%s1760 + $0x1c] sm:$0xf]
  %v1769 = vld [vmem:[%s1760 + $0x20] sm:$0xf]
  %v1770 = vld [vmem:[%s1760 + $0x24] sm:$0xf]
  %v1771 = vld [vmem:[%s1760 + $0x28] sm:$0xf]
  %v1772 = vld [vmem:[%s1760 + $0x2c] sm:$0xf]
  %v1773 = vld [vmem:[%s1760 + $0x30] sm:$0xf]
  %v1774 = vld [vmem:[%s1760 + $0x34] sm:$0xf]
  %v1775 = vld [vmem:[%s1760 + $0x38] sm:$0xf]
  %v1776 = vld [vmem:[%s1760 + $0x3c] sm:$0xf]
  %v1793 = vunpack.c.l.b16 %v1744
  %v1794 = vunpack.c.l.b16 %v1745
  %v1795 = vunpack.c.l.b16 %v1746
  %v1796 = vunpack.c.l.b16 %v1747
  %v1797 = vunpack.c.l.b16 %v1748
  %v1798 = vunpack.c.l.b16 %v1749
  %v1799 = vunpack.c.l.b16 %v1750
  %v1800 = vunpack.c.l.b16 %v1751
  %v1801 = vunpack.c.l.b16 %v1752
  %v1802 = vunpack.c.l.b16 %v1753
  %v1803 = vunpack.c.l.b16 %v1754
  %v1804 = vunpack.c.l.b16 %v1755
  %v1805 = vunpack.c.l.b16 %v1756
  %v1806 = vunpack.c.l.b16 %v1757
  %v1807 = vunpack.c.l.b16 %v1758
  %v1808 = vunpack.c.l.b16 %v1759
  %v1809 = vpack.c.b16 %v1794, %v1793
  %v1810 = vpack.c.b16 %v1796, %v1795
  %v1811 = vpack.c.b16 %v1798, %v1797
  %v1812 = vpack.c.b16 %v1800, %v1799
  %v1813 = vpack.c.b16 %v1802, %v1801
  %v1814 = vpack.c.b16 %v1804, %v1803
  %v1815 = vpack.c.b16 %v1806, %v1805
  %v1816 = vpack.c.b16 %v1808, %v1807
  %v1841 = vunpack.c.l.b16 %v1761
  %v1842 = vunpack.c.l.b16 %v1762
  %v1843 = vunpack.c.l.b16 %v1763
  %v1844 = vunpack.c.l.b16 %v1764
  %v1845 = vunpack.c.l.b16 %v1765
  %v1846 = vunpack.c.l.b16 %v1766
  %v1847 = vunpack.c.l.b16 %v1767
  %v1848 = vunpack.c.l.b16 %v1768
  %v1849 = vunpack.c.l.b16 %v1769
  %v1850 = vunpack.c.l.b16 %v1770
  %v1851 = vunpack.c.l.b16 %v1771
  %v1852 = vunpack.c.l.b16 %v1772
  %v1853 = vunpack.c.l.b16 %v1773
  %v1854 = vunpack.c.l.b16 %v1774
  %v1855 = vunpack.c.l.b16 %v1775
  %v1856 = vunpack.c.l.b16 %v1776
  %v1857 = vpack.c.b16 %v1842, %v1841
  %v1858 = vpack.c.b16 %v1844, %v1843
  %v1859 = vpack.c.b16 %v1846, %v1845
  %v1860 = vpack.c.b16 %v1848, %v1847
  %v1861 = vpack.c.b16 %v1850, %v1849
  %v1862 = vpack.c.b16 %v1852, %v1851
  %v1863 = vpack.c.b16 %v1854, %v1853
  %v1864 = vpack.c.b16 %v1856, %v1855
  %1873 = vmatpush.bf16.msra.mxu0 %v1864
  %1874 = vmatpush.bf16.msra.mxu0 %v1863
  %1875 = vmatpush.bf16.msra.mxu0 %v1862
  %1876 = vmatpush.bf16.msra.mxu0 %v1861
  %1877 = vmatpush.bf16.msra.mxu0 %v1860
  %1878 = vmatpush.bf16.msra.mxu0 %v1859
  %1879 = vmatpush.bf16.msra.mxu0 %v1858
  %1880 = vmatpush.bf16.msra.mxu0 %v1857
  %1881 = vmatmul.bf16.gmra.mxu0 %v1809
  %v1882 = vpop.f32.mrf.mxu0
  %v1883 = vadd.f32 0.0, %v1882
  %v1884 = vpop.f32.mrf.mxu0
  %v1885 = vadd.f32 0.0, %v1884
  %1886 = vmatmul.bf16.gmra.mxu0 %v1810
  %v1887 = vpop.f32.mrf.mxu0
  %v1888 = vadd.f32 0.0, %v1887
  %v1889 = vpop.f32.mrf.mxu0
  %v1890 = vadd.f32 0.0, %v1889
  %1891 = vmatmul.bf16.gmra.mxu0 %v1811
  %v1892 = vpop.f32.mrf.mxu0
  %v1893 = vadd.f32 0.0, %v1892
  %v1894 = vpop.f32.mrf.mxu0
  %v1895 = vadd.f32 0.0, %v1894
  %1896 = vmatmul.bf16.gmra.mxu0 %v1812
  %v1897 = vpop.f32.mrf.mxu0
  %v1898 = vadd.f32 0.0, %v1897
  %v1899 = vpop.f32.mrf.mxu0
  %v1900 = vadd.f32 0.0, %v1899
  %1901 = vmatmul.bf16.gmra.mxu0 %v1813
  %v1902 = vpop.f32.mrf.mxu0
  %v1903 = vadd.f32 0.0, %v1902
  %v1904 = vpop.f32.mrf.mxu0
  %v1905 = vadd.f32 0.0, %v1904
  %1906 = vmatmul.bf16.gmra.mxu0 %v1814
  %v1907 = vpop.f32.mrf.mxu0
  %v1908 = vadd.f32 0.0, %v1907
  %v1909 = vpop.f32.mrf.mxu0
  %v1910 = vadd.f32 0.0, %v1909
  %1911 = vmatmul.bf16.gmra.mxu0 %v1815
  %v1912 = vpop.f32.mrf.mxu0
  %v1913 = vadd.f32 0.0, %v1912
  %v1914 = vpop.f32.mrf.mxu0
  %v1915 = vadd.f32 0.0, %v1914
  %1916 = vmatmul.bf16.gmra.mxu0 %v1816
  %v1917 = vpop.f32.mrf.mxu0
  %v1918 = vadd.f32 0.0, %v1917
  %v1919 = vpop.f32.mrf.mxu0
  %v1920 = vadd.f32 0.0, %v1919
  %1921 = vdwg.mxu0
  %v1922 = vadd.f32 %v1727, %v1883
  %v1923 = vadd.f32 %v1728, %v1885
  %v1924 = vadd.f32 %v1729, %v1888
  %v1925 = vadd.f32 %v1730, %v1890
  %v1926 = vadd.f32 %v1731, %v1893
  %v1927 = vadd.f32 %v1732, %v1895
  %v1928 = vadd.f32 %v1733, %v1898
  %v1929 = vadd.f32 %v1734, %v1900
  %v1930 = vadd.f32 %v1735, %v1903
  %v1931 = vadd.f32 %v1736, %v1905
  %v1932 = vadd.f32 %v1737, %v1908
  %v1933 = vadd.f32 %v1738, %v1910
  %v1934 = vadd.f32 %v1739, %v1913
  %v1935 = vadd.f32 %v1740, %v1915
  %v1936 = vadd.f32 %v1741, %v1918
  %v1937 = vadd.f32 %v1742, %v1920
  %v1938 = vld [vmem:[%s1743] sm:$0xf]
  %v1939 = vld [vmem:[%s1743 + $0x4] sm:$0x1]
  %v1940 = vld [vmem:[%s1743 + $0x8] sm:$0xf]
  %v1941 = vld [vmem:[%s1743 + $0xc] sm:$0x1]
  %v1942 = vld [vmem:[%s1743 + $0x10] sm:$0xf]
  %v1943 = vld [vmem:[%s1743 + $0x14] sm:$0x1]
  %v1944 = vld [vmem:[%s1743 + $0x18] sm:$0xf]
  %v1945 = vld [vmem:[%s1743 + $0x1c] sm:$0x1]
  %v1946 = vld [vmem:[%s1743 + $0x20] sm:$0xf]
  %v1947 = vld [vmem:[%s1743 + $0x24] sm:$0x1]
  %v1948 = vld [vmem:[%s1743 + $0x28] sm:$0xf]
  %v1949 = vld [vmem:[%s1743 + $0x2c] sm:$0x1]
  %v1950 = vld [vmem:[%s1743 + $0x30] sm:$0xf]
  %v1951 = vld [vmem:[%s1743 + $0x34] sm:$0x1]
  %v1952 = vld [vmem:[%s1743 + $0x38] sm:$0xf]
  %v1953 = vld [vmem:[%s1743 + $0x3c] sm:$0x1]
  %v1954 = vld [vmem:[%s1743 + $0x50] sm:$0xf]
  %v1955 = vld [vmem:[%s1743 + $0x54] sm:$0x1]
  %v1956 = vld [vmem:[%s1743 + $0x58] sm:$0xf]
  %v1957 = vld [vmem:[%s1743 + $0x5c] sm:$0x1]
  %v1958 = vld [vmem:[%s1743 + $0x60] sm:$0xf]
  %v1959 = vld [vmem:[%s1743 + $0x64] sm:$0x1]
  %v1960 = vld [vmem:[%s1743 + $0x68] sm:$0xf]
  %v1961 = vld [vmem:[%s1743 + $0x6c] sm:$0x1]
  %v1962 = vld [vmem:[%s1743 + $0x70] sm:$0xf]
  %v1963 = vld [vmem:[%s1743 + $0x74] sm:$0x1]
  %v1964 = vld [vmem:[%s1743 + $0x78] sm:$0xf]
  %v1965 = vld [vmem:[%s1743 + $0x7c] sm:$0x1]
  %v1966 = vld [vmem:[%s1743 + $0x80] sm:$0xf]
  %v1967 = vld [vmem:[%s1743 + $0x84] sm:$0x1]
  %v1968 = vld [vmem:[%s1743 + $0x88] sm:$0xf]
  %v1969 = vld [vmem:[%s1743 + $0x8c] sm:$0x1]
  %v1971 = vshrl.u32 %v1938, 16
  %v1973 = vrot.slane %v1971, 4
  %v1974 = vshll.u32 %v1938, 16
  %v1976 = vrot.slane %v1974, 5
  %v1977 = vor.u32 %v1973, %v1976
  %v1978 = vrot.slane %v1977, 4
  %v1980 = vshll.u32 %v1939, 16
  %v1982 = vrot.slane %v1980, 5
  %v1983 = vsel %vm63, %v1978, %v1982
  %v1985 = vshrl.u32 %v1940, 16
  %v1987 = vrot.slane %v1985, 4
  %v1988 = vshll.u32 %v1940, 16
  %v1990 = vrot.slane %v1988, 5
  %v1991 = vor.u32 %v1987, %v1990
  %v1992 = vrot.slane %v1991, 4
  %v1994 = vshll.u32 %v1941, 16
  %v1996 = vrot.slane %v1994, 5
  %v1997 = vsel %vm63, %v1992, %v1996
  %v1999 = vshrl.u32 %v1942, 16
  %v2001 = vrot.slane %v1999, 4
  %v2002 = vshll.u32 %v1942, 16
  %v2004 = vrot.slane %v2002, 5
  %v2005 = vor.u32 %v2001, %v2004
  %v2006 = vrot.slane %v2005, 4
  %v2008 = vshll.u32 %v1943, 16
  %v2010 = vrot.slane %v2008, 5
  %v2011 = vsel %vm63, %v2006, %v2010
  %v2013 = vshrl.u32 %v1944, 16
  %v2015 = vrot.slane %v2013, 4
  %v2016 = vshll.u32 %v1944, 16
  %v2018 = vrot.slane %v2016, 5
  %v2019 = vor.u32 %v2015, %v2018
  %v2020 = vrot.slane %v2019, 4
  %v2022 = vshll.u32 %v1945, 16
  %v2024 = vrot.slane %v2022, 5
  %v2025 = vsel %vm63, %v2020, %v2024
  %v2027 = vshrl.u32 %v1946, 16
  %v2029 = vrot.slane %v2027, 4
  %v2030 = vshll.u32 %v1946, 16
  %v2032 = vrot.slane %v2030, 5
  %v2033 = vor.u32 %v2029, %v2032
  %v2034 = vrot.slane %v2033, 4
  %v2036 = vshll.u32 %v1947, 16
  %v2038 = vrot.slane %v2036, 5
  %v2039 = vsel %vm63, %v2034, %v2038
  %v2041 = vshrl.u32 %v1948, 16
  %v2043 = vrot.slane %v2041, 4
  %v2044 = vshll.u32 %v1948, 16
  %v2046 = vrot.slane %v2044, 5
  %v2047 = vor.u32 %v2043, %v2046
  %v2048 = vrot.slane %v2047, 4
  %v2050 = vshll.u32 %v1949, 16
  %v2052 = vrot.slane %v2050, 5
  %v2053 = vsel %vm63, %v2048, %v2052
  %v2055 = vshrl.u32 %v1950, 16
  %v2057 = vrot.slane %v2055, 4
  %v2058 = vshll.u32 %v1950, 16
  %v2060 = vrot.slane %v2058, 5
  %v2061 = vor.u32 %v2057, %v2060
  %v2062 = vrot.slane %v2061, 4
  %v2064 = vshll.u32 %v1951, 16
  %v2066 = vrot.slane %v2064, 5
  %v2067 = vsel %vm63, %v2062, %v2066
  %v2069 = vshrl.u32 %v1952, 16
  %v2071 = vrot.slane %v2069, 4
  %v2072 = vshll.u32 %v1952, 16
  %v2074 = vrot.slane %v2072, 5
  %v2075 = vor.u32 %v2071, %v2074
  %v2076 = vrot.slane %v2075, 4
  %v2078 = vshll.u32 %v1953, 16
  %v2080 = vrot.slane %v2078, 5
  %v2081 = vsel %vm63, %v2076, %v2080
  %v2083 = vshrl.u32 %v1954, 16
  %v2085 = vrot.slane %v2083, 4
  %v2086 = vshll.u32 %v1954, 16
  %v2088 = vrot.slane %v2086, 5
  %v2089 = vor.u32 %v2085, %v2088
  %v2090 = vrot.slane %v2089, 4
  %v2092 = vshll.u32 %v1955, 16
  %v2094 = vrot.slane %v2092, 5
  %v2095 = vsel %vm63, %v2090, %v2094
  %v2097 = vshrl.u32 %v1956, 16
  %v2099 = vrot.slane %v2097, 4
  %v2100 = vshll.u32 %v1956, 16
  %v2102 = vrot.slane %v2100, 5
  %v2103 = vor.u32 %v2099, %v2102
  %v2104 = vrot.slane %v2103, 4
  %v2106 = vshll.u32 %v1957, 16
  %v2108 = vrot.slane %v2106, 5
  %v2109 = vsel %vm63, %v2104, %v2108
  %v2111 = vshrl.u32 %v1958, 16
  %v2113 = vrot.slane %v2111, 4
  %v2114 = vshll.u32 %v1958, 16
  %v2116 = vrot.slane %v2114, 5
  %v2117 = vor.u32 %v2113, %v2116
  %v2118 = vrot.slane %v2117, 4
  %v2120 = vshll.u32 %v1959, 16
  %v2122 = vrot.slane %v2120, 5
  %v2123 = vsel %vm63, %v2118, %v2122
  %v2125 = vshrl.u32 %v1960, 16
  %v2127 = vrot.slane %v2125, 4
  %v2128 = vshll.u32 %v1960, 16
  %v2130 = vrot.slane %v2128, 5
  %v2131 = vor.u32 %v2127, %v2130
  %v2132 = vrot.slane %v2131, 4
  %v2134 = vshll.u32 %v1961, 16
  %v2136 = vrot.slane %v2134, 5
  %v2137 = vsel %vm63, %v2132, %v2136
  %v2139 = vshrl.u32 %v1962, 16
  %v2141 = vrot.slane %v2139, 4
  %v2142 = vshll.u32 %v1962, 16
  %v2144 = vrot.slane %v2142, 5
  %v2145 = vor.u32 %v2141, %v2144
  %v2146 = vrot.slane %v2145, 4
  %v2148 = vshll.u32 %v1963, 16
  %v2150 = vrot.slane %v2148, 5
  %v2151 = vsel %vm63, %v2146, %v2150
  %v2153 = vshrl.u32 %v1964, 16
  %v2155 = vrot.slane %v2153, 4
  %v2156 = vshll.u32 %v1964, 16
  %v2158 = vrot.slane %v2156, 5
  %v2159 = vor.u32 %v2155, %v2158
  %v2160 = vrot.slane %v2159, 4
  %v2162 = vshll.u32 %v1965, 16
  %v2164 = vrot.slane %v2162, 5
  %v2165 = vsel %vm63, %v2160, %v2164
  %v2167 = vshrl.u32 %v1966, 16
  %v2169 = vrot.slane %v2167, 4
  %v2170 = vshll.u32 %v1966, 16
  %v2172 = vrot.slane %v2170, 5
  %v2173 = vor.u32 %v2169, %v2172
  %v2174 = vrot.slane %v2173, 4
  %v2176 = vshll.u32 %v1967, 16
  %v2178 = vrot.slane %v2176, 5
  %v2179 = vsel %vm63, %v2174, %v2178
  %v2181 = vshrl.u32 %v1968, 16
  %v2183 = vrot.slane %v2181, 4
  %v2184 = vshll.u32 %v1968, 16
  %v2186 = vrot.slane %v2184, 5
  %v2187 = vor.u32 %v2183, %v2186
  %v2188 = vrot.slane %v2187, 4
  %v2190 = vshll.u32 %v1969, 16
  %v2192 = vrot.slane %v2190, 5
  %v2193 = vsel %vm63, %v2188, %v2192
  %s2194 = scalar_lea.vmem %s1, 448
  %v2195 = vld [vmem:[%s2194] sm:$0xf]
  %v2196 = vld [vmem:[%s2194 + $0x4] sm:$0xf]
  %v2197 = vld [vmem:[%s2194 + $0x8] sm:$0xf]
  %v2198 = vld [vmem:[%s2194 + $0xc] sm:$0xf]
  %v2199 = vld [vmem:[%s2194 + $0x10] sm:$0xf]
  %v2200 = vld [vmem:[%s2194 + $0x14] sm:$0xf]
  %v2201 = vld [vmem:[%s2194 + $0x18] sm:$0xf]
  %v2202 = vld [vmem:[%s2194 + $0x1c] sm:$0xf]
  %v2203 = vld [vmem:[%s2194 + $0x20] sm:$0xf]
  %v2204 = vld [vmem:[%s2194 + $0x24] sm:$0xf]
  %v2205 = vld [vmem:[%s2194 + $0x28] sm:$0xf]
  %v2206 = vld [vmem:[%s2194 + $0x2c] sm:$0xf]
  %v2207 = vld [vmem:[%s2194 + $0x30] sm:$0xf]
  %v2208 = vld [vmem:[%s2194 + $0x34] sm:$0xf]
  %v2209 = vld [vmem:[%s2194 + $0x38] sm:$0xf]
  %v2210 = vld [vmem:[%s2194 + $0x3c] sm:$0xf]
  %v2211 = vunpack.c.l.b16 %v1983
  %v2212 = vunpack.c.l.b16 %v1997
  %v2213 = vunpack.c.l.b16 %v2011
  %v2214 = vunpack.c.l.b16 %v2025
  %v2215 = vunpack.c.l.b16 %v2039
  %v2216 = vunpack.c.l.b16 %v2053
  %v2217 = vunpack.c.l.b16 %v2067
  %v2218 = vunpack.c.l.b16 %v2081
  %v2219 = vunpack.c.l.b16 %v2095
  %v2220 = vunpack.c.l.b16 %v2109
  %v2221 = vunpack.c.l.b16 %v2123
  %v2222 = vunpack.c.l.b16 %v2137
  %v2223 = vunpack.c.l.b16 %v2151
  %v2224 = vunpack.c.l.b16 %v2165
  %v2225 = vunpack.c.l.b16 %v2179
  %v2226 = vunpack.c.l.b16 %v2193
  %v2227 = vpack.c.b16 %v2212, %v2211
  %v2228 = vpack.c.b16 %v2214, %v2213
  %v2229 = vpack.c.b16 %v2216, %v2215
  %v2230 = vpack.c.b16 %v2218, %v2217
  %v2231 = vpack.c.b16 %v2220, %v2219
  %v2232 = vpack.c.b16 %v2222, %v2221
  %v2233 = vpack.c.b16 %v2224, %v2223
  %v2234 = vpack.c.b16 %v2226, %v2225
  %v2259 = vunpack.c.l.b16 %v2195
  %v2260 = vunpack.c.l.b16 %v2196
  %v2261 = vunpack.c.l.b16 %v2197
  %v2262 = vunpack.c.l.b16 %v2198
  %v2263 = vunpack.c.l.b16 %v2199
  %v2264 = vunpack.c.l.b16 %v2200
  %v2265 = vunpack.c.l.b16 %v2201
  %v2266 = vunpack.c.l.b16 %v2202
  %v2267 = vunpack.c.l.b16 %v2203
  %v2268 = vunpack.c.l.b16 %v2204
  %v2269 = vunpack.c.l.b16 %v2205
  %v2270 = vunpack.c.l.b16 %v2206
  %v2271 = vunpack.c.l.b16 %v2207
  %v2272 = vunpack.c.l.b16 %v2208
  %v2273 = vunpack.c.l.b16 %v2209
  %v2274 = vunpack.c.l.b16 %v2210
  %v2275 = vpack.c.b16 %v2260, %v2259
  %v2276 = vpack.c.b16 %v2262, %v2261
  %v2277 = vpack.c.b16 %v2264, %v2263
  %v2278 = vpack.c.b16 %v2266, %v2265
  %v2279 = vpack.c.b16 %v2268, %v2267
  %v2280 = vpack.c.b16 %v2270, %v2269
  %v2281 = vpack.c.b16 %v2272, %v2271
  %v2282 = vpack.c.b16 %v2274, %v2273
  %2291 = vmatpush.bf16.msra.mxu0 %v2282
  %2292 = vmatpush.bf16.msra.mxu0 %v2281
  %2293 = vmatpush.bf16.msra.mxu0 %v2280
  %2294 = vmatpush.bf16.msra.mxu0 %v2279
  %2295 = vmatpush.bf16.msra.mxu0 %v2278
  %2296 = vmatpush.bf16.msra.mxu0 %v2277
  %2297 = vmatpush.bf16.msra.mxu0 %v2276
  %2298 = vmatpush.bf16.msra.mxu0 %v2275
  %2299 = vmatmul.bf16.gmra.mxu0 %v2227
  %v2300 = vpop.f32.mrf.mxu0
  %v2301 = vadd.f32 0.0, %v2300
  %v2302 = vpop.f32.mrf.mxu0
  %v2303 = vadd.f32 0.0, %v2302
  %2304 = vmatmul.bf16.gmra.mxu0 %v2228
  %v2305 = vpop.f32.mrf.mxu0
  %v2306 = vadd.f32 0.0, %v2305
  %v2307 = vpop.f32.mrf.mxu0
  %v2308 = vadd.f32 0.0, %v2307
  %2309 = vmatmul.bf16.gmra.mxu0 %v2229
  %v2310 = vpop.f32.mrf.mxu0
  %v2311 = vadd.f32 0.0, %v2310
  %v2312 = vpop.f32.mrf.mxu0
  %v2313 = vadd.f32 0.0, %v2312
  %2314 = vmatmul.bf16.gmra.mxu0 %v2230
  %v2315 = vpop.f32.mrf.mxu0
  %v2316 = vadd.f32 0.0, %v2315
  %v2317 = vpop.f32.mrf.mxu0
  %v2318 = vadd.f32 0.0, %v2317
  %2319 = vmatmul.bf16.gmra.mxu0 %v2231
  %v2320 = vpop.f32.mrf.mxu0
  %v2321 = vadd.f32 0.0, %v2320
  %v2322 = vpop.f32.mrf.mxu0
  %v2323 = vadd.f32 0.0, %v2322
  %2324 = vmatmul.bf16.gmra.mxu0 %v2232
  %v2325 = vpop.f32.mrf.mxu0
  %v2326 = vadd.f32 0.0, %v2325
  %v2327 = vpop.f32.mrf.mxu0
  %v2328 = vadd.f32 0.0, %v2327
  %2329 = vmatmul.bf16.gmra.mxu0 %v2233
  %v2330 = vpop.f32.mrf.mxu0
  %v2331 = vadd.f32 0.0, %v2330
  %v2332 = vpop.f32.mrf.mxu0
  %v2333 = vadd.f32 0.0, %v2332
  %2334 = vmatmul.bf16.gmra.mxu0 %v2234
  %v2335 = vpop.f32.mrf.mxu0
  %v2336 = vadd.f32 0.0, %v2335
  %v2337 = vpop.f32.mrf.mxu0
  %v2338 = vadd.f32 0.0, %v2337
  %2339 = vdwg.mxu0
  %v2340 = vadd.f32 %v1922, %v2301
  %v2341 = vadd.f32 %v1923, %v2303
  %v2342 = vadd.f32 %v1924, %v2306
  %v2343 = vadd.f32 %v1925, %v2308
  %v2344 = vadd.f32 %v1926, %v2311
  %v2345 = vadd.f32 %v1927, %v2313
  %v2346 = vadd.f32 %v1928, %v2316
  %v2347 = vadd.f32 %v1929, %v2318
  %v2348 = vadd.f32 %v1930, %v2321
  %v2349 = vadd.f32 %v1931, %v2323
  %v2350 = vadd.f32 %v1932, %v2326
  %v2351 = vadd.f32 %v1933, %v2328
  %v2352 = vadd.f32 %v1934, %v2331
  %v2353 = vadd.f32 %v1935, %v2333
  %v2354 = vadd.f32 %v1936, %v2336
  %v2355 = vadd.f32 %v1937, %v2338
  %v2356 = vld [vmem:[%s1743] sm:$0xe]
  %v2357 = vld [vmem:[%s1743 + $0x8] sm:$0xe]
  %v2358 = vld [vmem:[%s1743 + $0x10] sm:$0xe]
  %v2359 = vld [vmem:[%s1743 + $0x18] sm:$0xe]
  %v2360 = vld [vmem:[%s1743 + $0x20] sm:$0xe]
  %v2361 = vld [vmem:[%s1743 + $0x28] sm:$0xe]
  %v2362 = vld [vmem:[%s1743 + $0x30] sm:$0xe]
  %v2363 = vld [vmem:[%s1743 + $0x38] sm:$0xe]
  %v2364 = vld [vmem:[%s1743 + $0x50] sm:$0xe]
  %v2365 = vld [vmem:[%s1743 + $0x58] sm:$0xe]
  %v2366 = vld [vmem:[%s1743 + $0x60] sm:$0xe]
  %v2367 = vld [vmem:[%s1743 + $0x68] sm:$0xe]
  %v2368 = vld [vmem:[%s1743 + $0x70] sm:$0xe]
  %v2369 = vld [vmem:[%s1743 + $0x78] sm:$0xe]
  %v2370 = vld [vmem:[%s1743 + $0x80] sm:$0xe]
  %v2371 = vld [vmem:[%s1743 + $0x88] sm:$0xe]
  %v2404 = vrot.slane %v2356, 5
  %v2405 = vrot.slane %v2404, 4
  %v2406 = vrot.slane %v1939, 5
  %v2407 = vsel %vm629, %v2405, %v2406
  %v2408 = vrot.slane %v2357, 5
  %v2409 = vrot.slane %v2408, 4
  %v2410 = vrot.slane %v1941, 5
  %v2411 = vsel %vm629, %v2409, %v2410
  %v2412 = vrot.slane %v2358, 5
  %v2413 = vrot.slane %v2412, 4
  %v2414 = vrot.slane %v1943, 5
  %v2415 = vsel %vm629, %v2413, %v2414
  %v2416 = vrot.slane %v2359, 5
  %v2417 = vrot.slane %v2416, 4
  %v2418 = vrot.slane %v1945, 5
  %v2419 = vsel %vm629, %v2417, %v2418
  %v2420 = vrot.slane %v2360, 5
  %v2421 = vrot.slane %v2420, 4
  %v2422 = vrot.slane %v1947, 5
  %v2423 = vsel %vm629, %v2421, %v2422
  %v2424 = vrot.slane %v2361, 5
  %v2425 = vrot.slane %v2424, 4
  %v2426 = vrot.slane %v1949, 5
  %v2427 = vsel %vm629, %v2425, %v2426
  %v2428 = vrot.slane %v2362, 5
  %v2429 = vrot.slane %v2428, 4
  %v2430 = vrot.slane %v1951, 5
  %v2431 = vsel %vm629, %v2429, %v2430
  %v2432 = vrot.slane %v2363, 5
  %v2433 = vrot.slane %v2432, 4
  %v2434 = vrot.slane %v1953, 5
  %v2435 = vsel %vm629, %v2433, %v2434
  %v2436 = vrot.slane %v2364, 5
  %v2437 = vrot.slane %v2436, 4
  %v2438 = vrot.slane %v1955, 5
  %v2439 = vsel %vm629, %v2437, %v2438
  %v2440 = vrot.slane %v2365, 5
  %v2441 = vrot.slane %v2440, 4
  %v2442 = vrot.slane %v1957, 5
  %v2443 = vsel %vm629, %v2441, %v2442
  %v2444 = vrot.slane %v2366, 5
  %v2445 = vrot.slane %v2444, 4
  %v2446 = vrot.slane %v1959, 5
  %v2447 = vsel %vm629, %v2445, %v2446
  %v2448 = vrot.slane %v2367, 5
  %v2449 = vrot.slane %v2448, 4
  %v2450 = vrot.slane %v1961, 5
  %v2451 = vsel %vm629, %v2449, %v2450
  %v2452 = vrot.slane %v2368, 5
  %v2453 = vrot.slane %v2452, 4
  %v2454 = vrot.slane %v1963, 5
  %v2455 = vsel %vm629, %v2453, %v2454
  %v2456 = vrot.slane %v2369, 5
  %v2457 = vrot.slane %v2456, 4
  %v2458 = vrot.slane %v1965, 5
  %v2459 = vsel %vm629, %v2457, %v2458
  %v2460 = vrot.slane %v2370, 5
  %v2461 = vrot.slane %v2460, 4
  %v2462 = vrot.slane %v1967, 5
  %v2463 = vsel %vm629, %v2461, %v2462
  %v2464 = vrot.slane %v2371, 5
  %v2465 = vrot.slane %v2464, 4
  %v2466 = vrot.slane %v1969, 5
  %v2467 = vsel %vm629, %v2465, %v2466
  %s2468 = scalar_lea.vmem %s1, 512
  %v2469 = vld [vmem:[%s2468] sm:$0xf]
  %v2470 = vld [vmem:[%s2468 + $0x4] sm:$0xf]
  %v2471 = vld [vmem:[%s2468 + $0x8] sm:$0xf]
  %v2472 = vld [vmem:[%s2468 + $0xc] sm:$0xf]
  %v2473 = vld [vmem:[%s2468 + $0x10] sm:$0xf]
  %v2474 = vld [vmem:[%s2468 + $0x14] sm:$0xf]
  %v2475 = vld [vmem:[%s2468 + $0x18] sm:$0xf]
  %v2476 = vld [vmem:[%s2468 + $0x1c] sm:$0xf]
  %v2477 = vld [vmem:[%s2468 + $0x20] sm:$0xf]
  %v2478 = vld [vmem:[%s2468 + $0x24] sm:$0xf]
  %v2479 = vld [vmem:[%s2468 + $0x28] sm:$0xf]
  %v2480 = vld [vmem:[%s2468 + $0x2c] sm:$0xf]
  %v2481 = vld [vmem:[%s2468 + $0x30] sm:$0xf]
  %v2482 = vld [vmem:[%s2468 + $0x34] sm:$0xf]
  %v2483 = vld [vmem:[%s2468 + $0x38] sm:$0xf]
  %v2484 = vld [vmem:[%s2468 + $0x3c] sm:$0xf]
  %v2485 = vunpack.c.l.b16 %v2407
  %v2486 = vunpack.c.l.b16 %v2411
  %v2487 = vunpack.c.l.b16 %v2415
  %v2488 = vunpack.c.l.b16 %v2419
  %v2489 = vunpack.c.l.b16 %v2423
  %v2490 = vunpack.c.l.b16 %v2427
  %v2491 = vunpack.c.l.b16 %v2431
  %v2492 = vunpack.c.l.b16 %v2435
  %v2493 = vunpack.c.l.b16 %v2439
  %v2494 = vunpack.c.l.b16 %v2443
  %v2495 = vunpack.c.l.b16 %v2447
  %v2496 = vunpack.c.l.b16 %v2451
  %v2497 = vunpack.c.l.b16 %v2455
  %v2498 = vunpack.c.l.b16 %v2459
  %v2499 = vunpack.c.l.b16 %v2463
  %v2500 = vunpack.c.l.b16 %v2467
  %v2501 = vpack.c.b16 %v2486, %v2485
  %v2502 = vpack.c.b16 %v2488, %v2487
  %v2503 = vpack.c.b16 %v2490, %v2489
  %v2504 = vpack.c.b16 %v2492, %v2491
  %v2505 = vpack.c.b16 %v2494, %v2493
  %v2506 = vpack.c.b16 %v2496, %v2495
  %v2507 = vpack.c.b16 %v2498, %v2497
  %v2508 = vpack.c.b16 %v2500, %v2499
  %v2533 = vunpack.c.l.b16 %v2469
  %v2534 = vunpack.c.l.b16 %v2470
  %v2535 = vunpack.c.l.b16 %v2471
  %v2536 = vunpack.c.l.b16 %v2472
  %v2537 = vunpack.c.l.b16 %v2473
  %v2538 = vunpack.c.l.b16 %v2474
  %v2539 = vunpack.c.l.b16 %v2475
  %v2540 = vunpack.c.l.b16 %v2476
  %v2541 = vunpack.c.l.b16 %v2477
  %v2542 = vunpack.c.l.b16 %v2478
  %v2543 = vunpack.c.l.b16 %v2479
  %v2544 = vunpack.c.l.b16 %v2480
  %v2545 = vunpack.c.l.b16 %v2481
  %v2546 = vunpack.c.l.b16 %v2482
  %v2547 = vunpack.c.l.b16 %v2483
  %v2548 = vunpack.c.l.b16 %v2484
  %v2549 = vpack.c.b16 %v2534, %v2533
  %v2550 = vpack.c.b16 %v2536, %v2535
  %v2551 = vpack.c.b16 %v2538, %v2537
  %v2552 = vpack.c.b16 %v2540, %v2539
  %v2553 = vpack.c.b16 %v2542, %v2541
  %v2554 = vpack.c.b16 %v2544, %v2543
  %v2555 = vpack.c.b16 %v2546, %v2545
  %v2556 = vpack.c.b16 %v2548, %v2547
  %2565 = vmatpush.bf16.msra.mxu0 %v2556
  %2566 = vmatpush.bf16.msra.mxu0 %v2555
  %2567 = vmatpush.bf16.msra.mxu0 %v2554
  %2568 = vmatpush.bf16.msra.mxu0 %v2553
  %2569 = vmatpush.bf16.msra.mxu0 %v2552
  %2570 = vmatpush.bf16.msra.mxu0 %v2551
  %2571 = vmatpush.bf16.msra.mxu0 %v2550
  %2572 = vmatpush.bf16.msra.mxu0 %v2549
  %2573 = vmatmul.bf16.gmra.mxu0 %v2501
  %v2574 = vpop.f32.mrf.mxu0
  %v2575 = vadd.f32 0.0, %v2574
  %v2576 = vpop.f32.mrf.mxu0
  %v2577 = vadd.f32 0.0, %v2576
  %2578 = vmatmul.bf16.gmra.mxu0 %v2502
  %v2579 = vpop.f32.mrf.mxu0
  %v2580 = vadd.f32 0.0, %v2579
  %v2581 = vpop.f32.mrf.mxu0
  %v2582 = vadd.f32 0.0, %v2581
  %2583 = vmatmul.bf16.gmra.mxu0 %v2503
  %v2584 = vpop.f32.mrf.mxu0
  %v2585 = vadd.f32 0.0, %v2584
  %v2586 = vpop.f32.mrf.mxu0
  %v2587 = vadd.f32 0.0, %v2586
  %2588 = vmatmul.bf16.gmra.mxu0 %v2504
  %v2589 = vpop.f32.mrf.mxu0
  %v2590 = vadd.f32 0.0, %v2589
  %v2591 = vpop.f32.mrf.mxu0
  %v2592 = vadd.f32 0.0, %v2591
  %2593 = vmatmul.bf16.gmra.mxu0 %v2505
  %v2594 = vpop.f32.mrf.mxu0
  %v2595 = vadd.f32 0.0, %v2594
  %v2596 = vpop.f32.mrf.mxu0
  %v2597 = vadd.f32 0.0, %v2596
  %2598 = vmatmul.bf16.gmra.mxu0 %v2506
  %v2599 = vpop.f32.mrf.mxu0
  %v2600 = vadd.f32 0.0, %v2599
  %v2601 = vpop.f32.mrf.mxu0
  %v2602 = vadd.f32 0.0, %v2601
  %2603 = vmatmul.bf16.gmra.mxu0 %v2507
  %v2604 = vpop.f32.mrf.mxu0
  %v2605 = vadd.f32 0.0, %v2604
  %v2606 = vpop.f32.mrf.mxu0
  %v2607 = vadd.f32 0.0, %v2606
  %2608 = vmatmul.bf16.gmra.mxu0 %v2508
  %v2609 = vpop.f32.mrf.mxu0
  %v2610 = vadd.f32 0.0, %v2609
  %v2611 = vpop.f32.mrf.mxu0
  %v2612 = vadd.f32 0.0, %v2611
  %2613 = vdwg.mxu0
  %v2614 = vadd.f32 %v2340, %v2575
  %v2615 = vadd.f32 %v2341, %v2577
  %v2616 = vadd.f32 %v2342, %v2580
  %v2617 = vadd.f32 %v2343, %v2582
  %v2618 = vadd.f32 %v2344, %v2585
  %v2619 = vadd.f32 %v2345, %v2587
  %v2620 = vadd.f32 %v2346, %v2590
  %v2621 = vadd.f32 %v2347, %v2592
  %v2622 = vadd.f32 %v2348, %v2595
  %v2623 = vadd.f32 %v2349, %v2597
  %v2624 = vadd.f32 %v2350, %v2600
  %v2625 = vadd.f32 %v2351, %v2602
  %v2626 = vadd.f32 %v2352, %v2605
  %v2627 = vadd.f32 %v2353, %v2607
  %v2628 = vadd.f32 %v2354, %v2610
  %v2629 = vadd.f32 %v2355, %v2612
  %v2630 = vpack.c.bf16 %v2614, %v2614
  %v2631 = vpack.c.bf16 %v2615, %v2615
  %v2632 = vpack.c.bf16 %v2616, %v2616
  %v2633 = vpack.c.bf16 %v2617, %v2617
  %v2634 = vpack.c.bf16 %v2618, %v2618
  %v2635 = vpack.c.bf16 %v2619, %v2619
  %v2636 = vpack.c.bf16 %v2620, %v2620
  %v2637 = vpack.c.bf16 %v2621, %v2621
  %v2638 = vpack.c.bf16 %v2622, %v2622
  %v2639 = vpack.c.bf16 %v2623, %v2623
  %v2640 = vpack.c.bf16 %v2624, %v2624
  %v2641 = vpack.c.bf16 %v2625, %v2625
  %v2642 = vpack.c.bf16 %v2626, %v2626
  %v2643 = vpack.c.bf16 %v2627, %v2627
  %v2644 = vpack.c.bf16 %v2628, %v2628
  %v2645 = vpack.c.bf16 %v2629, %v2629
  %2646 = vst [vmem:[%s2] sm:$0xf] %v2630
  %2647 = vst [vmem:[%s2 + $0x4] sm:$0xf] %v2631
  %2648 = vst [vmem:[%s2 + $0x8] sm:$0xf] %v2632
  %2649 = vst [vmem:[%s2 + $0xc] sm:$0xf] %v2633
  %2650 = vst [vmem:[%s2 + $0x10] sm:$0xf] %v2634
  %2651 = vst [vmem:[%s2 + $0x14] sm:$0xf] %v2635
  %2652 = vst [vmem:[%s2 + $0x18] sm:$0xf] %v2636
  %2653 = vst [vmem:[%s2 + $0x1c] sm:$0xf] %v2637
  %2654 = vst [vmem:[%s2 + $0x20] sm:$0xf] %v2638
  %2655 = vst [vmem:[%s2 + $0x24] sm:$0xf] %v2639
  %2656 = vst [vmem:[%s2 + $0x28] sm:$0xf] %v2640
  %2657 = vst [vmem:[%s2 + $0x2c] sm:$0xf] %v2641
  %2658 = vst [vmem:[%s2 + $0x30] sm:$0xf] %v2642
  %2659 = vst [vmem:[%s2 + $0x34] sm:$0xf] %v2643
  %2660 = vst [vmem:[%s2 + $0x38] sm:$0xf] %v2644
  %2661 = vst [vmem:[%s2 + $0x3c] sm:$0xf] %v2645
  %v2662 = vadd.f32 %v2614, %v2615
  %v2663 = vadd.f32 %v2662, %v2616
  %v2664 = vadd.f32 %v2663, %v2617
  %v2665 = vadd.f32 %v2664, %v2618
  %v2666 = vadd.f32 %v2665, %v2619
  %v2667 = vadd.f32 %v2666, %v2620
  %v2668 = vadd.f32 %v2667, %v2621
  %v2669 = vadd.f32 %v2668, %v2622
  %v2670 = vadd.f32 %v2669, %v2623
  %v2671 = vadd.f32 %v2670, %v2624
  %v2672 = vadd.f32 %v2671, %v2625
  %v2673 = vadd.f32 %v2672, %v2626
  %v2674 = vadd.f32 %v2673, %v2627
  %v2675 = vadd.f32 %v2674, %v2628
  %v2676 = vadd.f32 %v2675, %v2629
  %v2677 = vrot.slane %v2676, 4
  %v2678 = vadd.f32 %v2676, %v2677
  %v2679 = vrot.slane %v2678, 2
  %v2680 = vadd.f32 %v2678, %v2679
  %v2681 = vrot.slane %v2680, 1
  %v2682 = vadd.f32 %v2680, %v2681
  %v2683 = vmul.f32 %v2682, 0.0078125
  %v2684 = vsub.f32 %v2614, %v2683
  %v2685 = vsub.f32 %v2615, %v2683
  %v2686 = vsub.f32 %v2616, %v2683
  %v2687 = vsub.f32 %v2617, %v2683
  %v2688 = vsub.f32 %v2618, %v2683
  %v2689 = vsub.f32 %v2619, %v2683
  %v2690 = vsub.f32 %v2620, %v2683
  %v2691 = vsub.f32 %v2621, %v2683
  %v2692 = vsub.f32 %v2622, %v2683
  %v2693 = vsub.f32 %v2623, %v2683
  %v2694 = vsub.f32 %v2624, %v2683
  %v2695 = vsub.f32 %v2625, %v2683
  %v2696 = vsub.f32 %v2626, %v2683
  %v2697 = vsub.f32 %v2627, %v2683
  %v2698 = vsub.f32 %v2628, %v2683
  %v2699 = vsub.f32 %v2629, %v2683
  %v2700 = vmul.f32 %v2684, %v2684
  %v2701 = vmul.f32 %v2685, %v2685
  %v2702 = vmul.f32 %v2686, %v2686
  %v2703 = vmul.f32 %v2687, %v2687
  %v2704 = vmul.f32 %v2688, %v2688
  %v2705 = vmul.f32 %v2689, %v2689
  %v2706 = vmul.f32 %v2690, %v2690
  %v2707 = vmul.f32 %v2691, %v2691
  %v2708 = vmul.f32 %v2692, %v2692
  %v2709 = vmul.f32 %v2693, %v2693
  %v2710 = vmul.f32 %v2694, %v2694
  %v2711 = vmul.f32 %v2695, %v2695
  %v2712 = vmul.f32 %v2696, %v2696
  %v2713 = vmul.f32 %v2697, %v2697
  %v2714 = vmul.f32 %v2698, %v2698
  %v2715 = vmul.f32 %v2699, %v2699
  %v2716 = vadd.f32 %v2700, %v2701
  %v2717 = vadd.f32 %v2716, %v2702
  %v2718 = vadd.f32 %v2717, %v2703
  %v2719 = vadd.f32 %v2718, %v2704
  %v2720 = vadd.f32 %v2719, %v2705
  %v2721 = vadd.f32 %v2720, %v2706
  %v2722 = vadd.f32 %v2721, %v2707
  %v2723 = vadd.f32 %v2722, %v2708
  %v2724 = vadd.f32 %v2723, %v2709
  %v2725 = vadd.f32 %v2724, %v2710
  %v2726 = vadd.f32 %v2725, %v2711
  %v2727 = vadd.f32 %v2726, %v2712
  %v2728 = vadd.f32 %v2727, %v2713
  %v2729 = vadd.f32 %v2728, %v2714
  %v2730 = vadd.f32 %v2729, %v2715
  %v2731 = vrot.slane %v2730, 4
  %v2732 = vadd.f32 %v2730, %v2731
  %v2733 = vrot.slane %v2732, 2
  %v2734 = vadd.f32 %v2732, %v2733
  %v2735 = vrot.slane %v2734, 1
  %v2736 = vadd.f32 %v2734, %v2735
  %vm2737 = vcmask 1040384
  %v2738 = vsel %vm2737, %v2683, %v2736
  %2739 = vst [vmem:[%s3] sm:$0x3] %v2738
  // Predicated region
  $region10: #{unet_central_block.6} parent=0 // pred_check
    _
  $region11: #{unet_central_block.6} parent=0 // pred_check_branch
    %2741 = sbr.rel (0) target = $region13
  $region12: #{unet_central_block.6} parent=0 // pred_region
    _
  $region13: #{unet_central_block.6} parent=0 // pred_fallthru
    _
  // Predicated region
  $region14: #{unet_central_block.6} parent=0 // pred_check
    _
  $region15: #{unet_central_block.6} parent=0 // pred_check_branch
    %2743 = sbr.rel (0) target = $region17
  $region16: #{unet_central_block.6} parent=0 // pred_region
    _
  $region17: #{unet_central_block.6} parent=0 // pred_fallthru
    _
  // Predicated region
  $region18: #{unet_central_block.6} parent=0 // pred_check
    _
  $region19: #{unet_central_block.6} parent=0 // pred_check_branch
    %2745 = sbr.rel (0) target = $region21
  $region20: #{unet_central_block.6} parent=0 // pred_region
    _
  $region21: #{unet_central_block.6} parent=0 // pred_fallthru
    _
  // Predicated region
  $region22: #{unet_central_block.6} parent=0 // pred_check
    _
  $region23: #{unet_central_block.6} parent=0 // pred_check_branch
    %2747 = sbr.rel (0) target = $region25
  $region24: #{unet_central_block.6} parent=0 // pred_region
    _
  $region25: #{unet_central_block.6} parent=0 // pred_fallthru
    _

</llo_original>
